<compile_context>
chip_gen: v7x
topology: tpu7x:2x2x1
jax: 0.10.0
libtpu: 0.0.40
codegen_flags: <defaults>
</compile_context>

<pallas_src>
import functools

import jax
import jax.numpy as jnp
from jax import lax
from jax.experimental import pallas as pl
from jax.experimental.pallas import tpu as pltpu


# ---------------------------------------------------------------------------
# Fused kernel. Layout inside the kernel: time-major flattened rows (row = t*TB + b),
# channels last; TB (batch tile) is a multiple of 8.
# ---------------------------------------------------------------------------
def _cnn_lstm_kernel(xcat_ref, w1_ref, b1c_ref, w2_ref, b2c_ref,
                     wih0_ref, whh0_ref, b0_ref,
                     w1cat_ref, b1_ref, fcw_ref, fcb_ref,
                     o_ref, gih0_s, *, seq_len, hidden_pad):
    L = seq_len
    T = L // 2                      # MaxPool1d(2) output length (trailing odd step dropped)
    HP = hidden_pad                 # per-gate lane-padded hidden size (multiple of 128)
    TB = o_ref.shape[0]             # batch tile (multiple of 8)
    LTB = L * TB
    C3 = xcat_ref.shape[-1]

    # ---- conv1 (k=3, pad=1) + ReLU: taps pre-concatenated -> one bf16 matmul, f32 acc ----
    x_cat = xcat_ref[...].reshape(LTB, C3).astype(jnp.bfloat16)
    h1 = jnp.maximum(
        jnp.dot(x_cat, w1_ref[...], preferred_element_type=jnp.float32) + b1c_ref[...],
        0.0)                                                     # (L*TB, 64) f32
    # TODO(synk): nn.Dropout(0.2) after conv1 is identity in inference mode.

    # ---- conv2 (k=3, pad=1) + ReLU: sublane-aligned rolls (shift = TB, multiple of 8) ----
    r = lax.broadcasted_iota(jnp.int32, h1.shape, 0)
    h1_prev = jnp.where(r < TB, 0.0, pltpu.roll(h1, shift=TB, axis=0))               # h1[t-1]
    h1_next = jnp.where(r >= LTB - TB, 0.0, pltpu.roll(h1, shift=LTB - TB, axis=0))  # h1[t+1]
    acc2 = jnp.dot(h1_prev.astype(jnp.bfloat16), w2_ref[0],
                   preferred_element_type=jnp.float32)
    acc2 = acc2 + jnp.dot(h1.astype(jnp.bfloat16), w2_ref[1],
                          preferred_element_type=jnp.float32)
    acc2 = acc2 + jnp.dot(h1_next.astype(jnp.bfloat16), w2_ref[2],
                          preferred_element_type=jnp.float32)
    h2 = jnp.maximum(acc2 + b2c_ref[...], 0.0)                   # (L*TB, 128) f32

    # ---- MaxPool1d(2): compact pooled rows BEFORE the LSTM input projection ----
    # Tile-preserving reshape (TB is one full sublane tile) + static slice; only T*TB rows
    # flow into the LSTM projection below.
    h2p = h2[:2 * T * TB].reshape(T, 2, TB, h2.shape[-1])
    pooled = jnp.maximum(h2p[:, 0], h2p[:, 1]).reshape(T * TB, h2.shape[-1])
    # TODO(synk): nn.Dropout(0.2) after the pool is identity in inference mode.

    # ---- 2-layer LSTM: layer-0 input projection hoisted out of the recurrence ----
    gih0_s[...] = (jnp.dot(pooled.astype(jnp.bfloat16), wih0_ref[...],
                           preferred_element_type=jnp.float32)
                   + b0_ref[...]).reshape(T, TB, 4 * HP)

    whh0 = whh0_ref[...]                                          # (HP, 4HP) f32
    w1cat = w1cat_ref[...]                                        # (2HP, 4HP) f32 (wih1;whh1)
    b1g = jnp.broadcast_to(b1_ref[...], (TB, 4 * HP))             # hoisted bias broadcast

    def step(t, carry):
        h0, c0, h1s, c1s = carry
        # layer 0: hoisted input projection + one recurrent matmul
        g0 = gih0_s[t] + jnp.dot(h0, whh0, preferred_element_type=jnp.float32)
        i0 = jax.nn.sigmoid(g0[:, 0:HP])                          # 128-lane aligned slices
        f0 = jax.nn.sigmoid(g0[:, HP:2 * HP])
        n0 = jnp.tanh(g0[:, 2 * HP:3 * HP])
        o0 = jax.nn.sigmoid(g0[:, 3 * HP:4 * HP])
        c0 = f0 * c0 + i0 * n0
        h0 = o0 * jnp.tanh(c0)
        # TODO(synk): nn.LSTM inter-layer dropout(0.2) is identity in inference mode.
        # layer 1: fused input+recurrent matmul (K = 2*HP)
        g1 = jnp.dot(jnp.concatenate([h0, h1s], axis=1), w1cat,
                     preferred_element_type=jnp.float32) + b1g
        i1 = jax.nn.sigmoid(g1[:, 0:HP])
        f1 = jax.nn.sigmoid(g1[:, HP:2 * HP])
        n1 = jnp.tanh(g1[:, 2 * HP:3 * HP])
        o1 = jax.nn.sigmoid(g1[:, 3 * HP:4 * HP])
        c1s = f1 * c1s + i1 * n1
        h1s = o1 * jnp.tanh(c1s)
        return h0, c0, h1s, c1s

    z = jnp.zeros((TB, HP), jnp.float32)
    unroll = 4 if T % 4 == 0 else (2 if T % 2 == 0 else 1)
    _, _, h1s, _ = lax.fori_loop(0, T, step, (z, z, z, z), unroll=unroll)

    # ---- BatchNorm1d (eval, folded into fc at trace time) + Linear(H, 2) ----
    # TODO(synk): nn.Dropout(0.2) before fc is identity in inference mode.
    o_ref[...] = (jnp.dot(h1s, fcw_ref[...], preferred_element_type=jnp.float32)
                  + fcb_ref[...])


# ---------------------------------------------------------------------------
# Wrapper: trace-time layout plumbing / parameter folding + the pallas_call.
# ---------------------------------------------------------------------------
def cnn_lstm_forward(x, params, *, batch_tile=None):
    # x: (B, seq_len, input_size) -- same as the PyTorch forward (batch_first)
    B, L, Cin = x.shape
    H = params["whh0"].shape[0]
    HP = ((H + 127) // 128) * 128            # per-gate lane padding
    T = L // 2
    assert T >= 1, "sequence_length must be >= 2"

    # batch tile: multiple of 8 (sublane aligned); 64 keeps several parallel grid steps for
    # large batches (v7x megacore) and bounds per-step VMEM.
    TB = batch_tile if batch_tile is not None else min(64, ((B + 7) // 8) * 8)
    B_pad = ((B + TB - 1) // TB) * TB
    n_bt = B_pad // TB

    # time-major layout, batch padded, 3 conv1 taps pre-concatenated along channels
    x_tm = jnp.transpose(x, (1, 0, 2))                                   # (L, B, Cin)
    x_tm = jnp.pad(x_tm, ((1, 1), (0, B_pad - B), (0, 0)))               # time + batch pad
    x_cat = jnp.concatenate([x_tm[:-2], x_tm[1:-1], x_tm[2:]], axis=-1)  # (L, B_pad, 3*Cin)

    # conv weights: tap-major rows match x_cat; bf16 operands (f32 accumulate in kernel)
    w1 = params["w1"].reshape(3 * Cin, 64).astype(jnp.bfloat16)
    w2 = params["w2"].astype(jnp.bfloat16)

    # LSTM weights: pad every gate's columns H -> HP (128-lane blocks) and, where the input
    # is a hidden state, pad rows H -> HP.  Zero padding keeps padded state lanes exactly 0.
    def pad_lstm(w, rows_to=None):
        K = w.shape[0]
        row_pad = 0 if rows_to is None else rows_to - K
        wg = w.reshape(K, 4, H)
        wg = jnp.pad(wg, ((0, row_pad), (0, 0), (0, HP - H)))
        return wg.reshape(K + row_pad, 4 * HP)

    wih0 = pad_lstm(params["wih0"]).astype(jnp.bfloat16)       # (128, 4HP)
    whh0 = pad_lstm(params["whh0"], rows_to=HP)                # (HP, 4HP)
    wih1 = pad_lstm(params["wih1"], rows_to=HP)                # (HP, 4HP)
    whh1 = pad_lstm(params["whh1"], rows_to=HP)                # (HP, 4HP)
    w1cat = jnp.concatenate([wih1, whh1], axis=0)              # (2HP, 4HP) fused layer-1 W
    b0 = pad_lstm(params["b0"])                                # (1, 4HP)
    b1 = pad_lstm(params["b1"])                                # (1, 4HP)

    # fold eval-mode BatchNorm1d into the final Linear (once, at trace time)
    inv_std = lax.rsqrt(params["var"] + 1e-5)
    scale = params["gamma"] * inv_std                          # (1, H)
    fcw = scale.reshape(H, 1) * params["fcw"]                  # (H, 2)
    fcb = params["fcb"] + jnp.dot(params["beta"] - params["mean"] * scale, params["fcw"])
    fcw = jnp.pad(fcw, ((0, HP - H), (0, 0)))                  # (HP, 2)

    def bcast_spec(*shape):
        return pl.BlockSpec(shape, lambda i, _n=len(shape): (0,) * _n)

    args = (x_cat, w1, params["b1c"], w2, params["b2c"],
            wih0, whh0, b0, w1cat, b1, fcw, fcb)
    kernel = functools.partial(_cnn_lstm_kernel, seq_len=L, hidden_pad=HP)

    out = pl.pallas_call(
        kernel,
        out_shape=jax.ShapeDtypeStruct((B_pad, 2), jnp.float32),
        grid=(n_bt,),
        in_specs=[
            pl.BlockSpec((L, TB, 3 * Cin), lambda i: (0, i, 0)),   # batch-tiled input
            bcast_spec(3 * Cin, 64),
            bcast_spec(1, 64),
            bcast_spec(3, 64, 128),
            bcast_spec(1, 128),
            bcast_spec(128, 4 * HP),
            bcast_spec(HP, 4 * HP),
            bcast_spec(1, 4 * HP),
            bcast_spec(2 * HP, 4 * HP),
            bcast_spec(1, 4 * HP),
            bcast_spec(HP, 2),
            bcast_spec(1, 2),
        ],
        out_specs=pl.BlockSpec((TB, 2), lambda i: (i, 0)),
        scratch_shapes=[pltpu.VMEM((T, TB, 4 * HP), jnp.float32)],   # hoisted gih0 blocks
        compiler_params=pltpu.CompilerParams(
            dimension_semantics=("parallel",),
            vmem_limit_bytes=48 * 1024 * 1024),
    )(*args)
    return out[:B]


def init_params(key, input_size, hidden):
    ks = jax.random.split(key, 12)
    u = lambda k, shape, s: jax.random.uniform(k, shape, jnp.float32, -s, s)
    H = hidden
    s1 = (1.0 / (input_size * 3)) ** 0.5
    s2 = (1.0 / (64 * 3)) ** 0.5
    sl = (1.0 / H) ** 0.5
    return {
        # conv weights stored as (kernel_tap, Cin, Cout) == transpose of torch (Cout, Cin, K)
        "w1": u(ks[0], (3, input_size, 64), s1),
        "b1c": u(ks[1], (1, 64), s1),
        "w2": u(ks[2], (3, 64, 128), s2),
        "b2c": u(ks[3], (1, 128), s2),
        # LSTM layer 0 (input 128 -> H), layer 1 (H -> H); weights pre-transposed to
        # (in, 4H) with torch gate order i,f,g,o; biases fused (b_ih + b_hh)
        "wih0": u(ks[4], (128, 4 * H), sl),
        "whh0": u(ks[5], (H, 4 * H), sl),
        "b0": u(ks[6], (1, 4 * H), sl),
        "wih1": u(ks[7], (H, 4 * H), sl),
        "whh1": u(ks[8], (H, 4 * H), sl),
        "b1": u(ks[9], (1, 4 * H), sl),
        # BatchNorm1d defaults (fresh init, eval mode)
        "gamma": jnp.ones((1, H), jnp.float32),
        "beta": jnp.zeros((1, H), jnp.float32),
        "mean": jnp.zeros((1, H), jnp.float32),
        "var": jnp.ones((1, H), jnp.float32),
        # fc: Linear(H, 2)
        "fcw": u(ks[10], (H, 2), sl),
        "fcb": u(ks[11], (1, 2), sl),
    }


if __name__ == "__main__":
    B, seq_len, input_size, hidden = 2, 8, 4, 32
    key = jax.random.PRNGKey(0)
    kx, kp = jax.random.split(key)
    x = jax.random.normal(kx, (B, seq_len, input_size), jnp.float32)
    params = init_params(kp, input_size, hidden)

    out = jax.jit(lambda xx: cnn_lstm_forward(xx, params))(x)
    out = jax.block_until_ready(out)
    assert out.shape == (B, 2) and out.dtype == jnp.float32
    assert bool(jnp.all(jnp.isfinite(out)))
    print("KERNEL_OK")
</pallas_src>

<mosaic_0001>
module attributes {stable_mosaic.version = 11 : i64} {
  func.func @_cnn_lstm_kernel(%arg0: i32, %arg1: memref<8x8x12xf32, #tpu.memory_space<vmem>>, %arg2: memref<12x64xbf16, #tpu.memory_space<vmem>>, %arg3: memref<1x64xf32, #tpu.memory_space<vmem>>, %arg4: memref<3x64x128xbf16, #tpu.memory_space<vmem>>, %arg5: memref<1x128xf32, #tpu.memory_space<vmem>>, %arg6: memref<128x512xbf16, #tpu.memory_space<vmem>>, %arg7: memref<128x512xf32, #tpu.memory_space<vmem>>, %arg8: memref<1x512xf32, #tpu.memory_space<vmem>>, %arg9: memref<256x512xf32, #tpu.memory_space<vmem>>, %arg10: memref<1x512xf32, #tpu.memory_space<vmem>>, %arg11: memref<128x2xf32, #tpu.memory_space<vmem>>, %arg12: memref<1x2xf32, #tpu.memory_space<vmem>>, %arg13: memref<8x2xf32, #tpu.memory_space<vmem>>, %arg14: memref<4x8x512xf32, #tpu.memory_space<vmem>>) attributes {dimension_semantics = [#tpu.dimension_semantics<parallel>], iteration_bounds = array<i64: 1>, scalar_prefetch = 0 : i64, scratch_operands = 1 : i64, tpu.core_type = #tpu.core_type<tc>, window_params = [{transform_indices = @transform_0, window_bounds = array<i64: 8, 8, 12>}, {pipeline_mode = #tpu.pipeline_mode<synchronous>, transform_indices = @transform_1, window_bounds = array<i64: 12, 64>}, {pipeline_mode = #tpu.pipeline_mode<synchronous>, transform_indices = @transform_2, window_bounds = array<i64: 1, 64>}, {pipeline_mode = #tpu.pipeline_mode<synchronous>, transform_indices = @transform_3, window_bounds = array<i64: 3, 64, 128>}, {pipeline_mode = #tpu.pipeline_mode<synchronous>, transform_indices = @transform_4, window_bounds = array<i64: 1, 128>}, {pipeline_mode = #tpu.pipeline_mode<synchronous>, transform_indices = @transform_5, window_bounds = array<i64: 128, 512>}, {pipeline_mode = #tpu.pipeline_mode<synchronous>, transform_indices = @transform_6, window_bounds = array<i64: 128, 512>}, {pipeline_mode = #tpu.pipeline_mode<synchronous>, transform_indices = @transform_7, window_bounds = array<i64: 1, 512>}, {pipeline_mode = #tpu.pipeline_mode<synchronous>, transform_indices = @transform_8, window_bounds = array<i64: 256, 512>}, {pipeline_mode = #tpu.pipeline_mode<synchronous>, transform_indices = @transform_9, window_bounds = array<i64: 1, 512>}, {pipeline_mode = #tpu.pipeline_mode<synchronous>, transform_indices = @transform_10, window_bounds = array<i64: 128, 2>}, {pipeline_mode = #tpu.pipeline_mode<synchronous>, transform_indices = @transform_11, window_bounds = array<i64: 1, 2>}, {transform_indices = @transform_12, window_bounds = array<i64: 8, 2>}]} {
    %c0 = arith.constant 0 : index
    %c0_0 = arith.constant 0 : index
    %c0_1 = arith.constant 0 : index
    %0 = vector.load %arg1[%c0, %c0_0, %c0_1] : memref<8x8x12xf32, #tpu.memory_space<vmem>>, vector<8x8x12xf32>
    %1 = vector.shape_cast %0 : vector<8x8x12xf32> to vector<64x12xf32>
    %2 = arith.truncf %1 : vector<64x12xf32> to vector<64x12xbf16>
    %c0_2 = arith.constant 0 : index
    %c0_3 = arith.constant 0 : index
    %3 = vector.load %arg2[%c0_2, %c0_3] : memref<12x64xbf16, #tpu.memory_space<vmem>>, vector<12x64xbf16>
    %cst = arith.constant dense<0.000000e+00> : vector<64x64xf32>
    %4 = tpu.matmul %2, %3, %cst {dimension_numbers = #tpu.dot_dimension_numbers<[1], [0], [0], [1], [0, 0, 1, 1], [], []>} : vector<64x12xbf16>, vector<12x64xbf16>, vector<64x64xf32> -> vector<64x64xf32>
    %c0_4 = arith.constant 0 : index
    %c0_5 = arith.constant 0 : index
    %5 = vector.load %arg3[%c0_4, %c0_5] : memref<1x64xf32, #tpu.memory_space<vmem>>, vector<1x64xf32>
    %6 = vector.broadcast %5 : vector<1x64xf32> to vector<64x64xf32>
    %7 = arith.addf %4, %6 : vector<64x64xf32>
    %cst_6 = arith.constant 0.000000e+00 : f32
    %8 = vector.broadcast %cst_6 : f32 to vector<64x64xf32>
    %9 = arith.maximumf %7, %8 : vector<64x64xf32>
    %10 = tpu.iota {dimensions = array<i32: 0>} : vector<64x64xi32>
    %c8_i32 = arith.constant 8 : i32
    %11 = vector.broadcast %c8_i32 : i32 to vector<64x64xi32>
    %12 = arith.cmpi slt, %10, %11 : vector<64x64xi32>
    %c8_i32_7 = arith.constant 8 : i32
    %13 = tpu.dynamic_rotate %9 by %c8_i32_7 dim 0 : vector<64x64xf32>, i32 -> vector<64x64xf32>
    %cst_8 = arith.constant 0.000000e+00 : f32
    %14 = vector.broadcast %cst_8 : f32 to vector<64x64xf32>
    %15 = arith.select %12, %14, %13 : vector<64x64xi1>, vector<64x64xf32>
    %c56_i32 = arith.constant 56 : i32
    %16 = vector.broadcast %c56_i32 : i32 to vector<64x64xi32>
    %17 = arith.cmpi sge, %10, %16 : vector<64x64xi32>
    %c56_i32_9 = arith.constant 56 : i32
    %18 = tpu.dynamic_rotate %9 by %c56_i32_9 dim 0 : vector<64x64xf32>, i32 -> vector<64x64xf32>
    %cst_10 = arith.constant 0.000000e+00 : f32
    %19 = vector.broadcast %cst_10 : f32 to vector<64x64xf32>
    %20 = arith.select %17, %19, %18 : vector<64x64xi1>, vector<64x64xf32>
    %21 = arith.truncf %15 : vector<64x64xf32> to vector<64x64xbf16>
    %c0_11 = arith.constant 0 : index
    %c0_12 = arith.constant 0 : index
    %c0_13 = arith.constant 0 : index
    %22 = vector.load %arg4[%c0_11, %c0_12, %c0_13] : memref<3x64x128xbf16, #tpu.memory_space<vmem>>, vector<1x64x128xbf16>
    %23 = vector.shape_cast %22 : vector<1x64x128xbf16> to vector<64x128xbf16>
    %cst_14 = arith.constant dense<0.000000e+00> : vector<64x128xf32>
    %24 = tpu.matmul %21, %23, %cst_14 {dimension_numbers = #tpu.dot_dimension_numbers<[1], [0], [0], [1], [0, 0, 1, 1], [], []>} : vector<64x64xbf16>, vector<64x128xbf16>, vector<64x128xf32> -> vector<64x128xf32>
    %25 = arith.truncf %9 : vector<64x64xf32> to vector<64x64xbf16>
    %c1 = arith.constant 1 : index
    %c0_15 = arith.constant 0 : index
    %c0_16 = arith.constant 0 : index
    %26 = vector.load %arg4[%c1, %c0_15, %c0_16] : memref<3x64x128xbf16, #tpu.memory_space<vmem>>, vector<1x64x128xbf16>
    %27 = vector.shape_cast %26 : vector<1x64x128xbf16> to vector<64x128xbf16>
    %cst_17 = arith.constant dense<0.000000e+00> : vector<64x128xf32>
    %28 = tpu.matmul %25, %27, %cst_17 {dimension_numbers = #tpu.dot_dimension_numbers<[1], [0], [0], [1], [0, 0, 1, 1], [], []>} : vector<64x64xbf16>, vector<64x128xbf16>, vector<64x128xf32> -> vector<64x128xf32>
    %29 = arith.addf %24, %28 : vector<64x128xf32>
    %30 = arith.truncf %20 : vector<64x64xf32> to vector<64x64xbf16>
    %c2 = arith.constant 2 : index
    %c0_18 = arith.constant 0 : index
    %c0_19 = arith.constant 0 : index
    %31 = vector.load %arg4[%c2, %c0_18, %c0_19] : memref<3x64x128xbf16, #tpu.memory_space<vmem>>, vector<1x64x128xbf16>
    %32 = vector.shape_cast %31 : vector<1x64x128xbf16> to vector<64x128xbf16>
    %cst_20 = arith.constant dense<0.000000e+00> : vector<64x128xf32>
    %33 = tpu.matmul %30, %32, %cst_20 {dimension_numbers = #tpu.dot_dimension_numbers<[1], [0], [0], [1], [0, 0, 1, 1], [], []>} : vector<64x64xbf16>, vector<64x128xbf16>, vector<64x128xf32> -> vector<64x128xf32>
    %34 = arith.addf %29, %33 : vector<64x128xf32>
    %c0_21 = arith.constant 0 : index
    %c0_22 = arith.constant 0 : index
    %35 = vector.load %arg5[%c0_21, %c0_22] : memref<1x128xf32, #tpu.memory_space<vmem>>, vector<1x128xf32>
    %36 = vector.broadcast %35 : vector<1x128xf32> to vector<64x128xf32>
    %37 = arith.addf %34, %36 : vector<64x128xf32>
    %cst_23 = arith.constant 0.000000e+00 : f32
    %38 = vector.broadcast %cst_23 : f32 to vector<64x128xf32>
    %39 = arith.maximumf %37, %38 : vector<64x128xf32>
    %40 = vector.shape_cast %39 : vector<64x128xf32> to vector<4x2x8x128xf32>
    %41 = vector.extract_strided_slice %40 {offsets = [0, 0, 0, 0], sizes = [4, 1, 8, 128], strides = [1, 1, 1, 1]} : vector<4x2x8x128xf32> to vector<4x1x8x128xf32>
    %42 = vector.shape_cast %41 : vector<4x1x8x128xf32> to vector<4x8x128xf32>
    %43 = vector.extract_strided_slice %40 {offsets = [0, 1, 0, 0], sizes = [4, 1, 8, 128], strides = [1, 1, 1, 1]} : vector<4x2x8x128xf32> to vector<4x1x8x128xf32>
    %44 = vector.shape_cast %43 : vector<4x1x8x128xf32> to vector<4x8x128xf32>
    %45 = arith.maximumf %42, %44 : vector<4x8x128xf32>
    %46 = vector.shape_cast %45 : vector<4x8x128xf32> to vector<32x128xf32>
    %47 = arith.truncf %46 : vector<32x128xf32> to vector<32x128xbf16>
    %c0_24 = arith.constant 0 : index
    %c0_25 = arith.constant 0 : index
    %48 = vector.load %arg6[%c0_24, %c0_25] : memref<128x512xbf16, #tpu.memory_space<vmem>>, vector<128x512xbf16>
    %cst_26 = arith.constant dense<0.000000e+00> : vector<32x512xf32>
    %49 = tpu.matmul %47, %48, %cst_26 {dimension_numbers = #tpu.dot_dimension_numbers<[1], [0], [0], [1], [0, 0, 1, 1], [], []>} : vector<32x128xbf16>, vector<128x512xbf16>, vector<32x512xf32> -> vector<32x512xf32>
    %c0_27 = arith.constant 0 : index
    %c0_28 = arith.constant 0 : index
    %50 = vector.load %arg8[%c0_27, %c0_28] : memref<1x512xf32, #tpu.memory_space<vmem>>, vector<1x512xf32>
    %51 = vector.broadcast %50 : vector<1x512xf32> to vector<32x512xf32>
    %52 = arith.addf %49, %51 : vector<32x512xf32>
    %53 = vector.shape_cast %52 : vector<32x512xf32> to vector<4x8x512xf32>
    %c0_29 = arith.constant 0 : index
    %c0_30 = arith.constant 0 : index
    %c0_31 = arith.constant 0 : index
    %54 = vector.load %arg14[%c0_29, %c0_30, %c0_31] : memref<4x8x512xf32, #tpu.memory_space<vmem>>, vector<4x8x512xf32>
    tpu.vector_store %arg14[%c0_29, %c0_30, %c0_31], %53 {strides = array<i32>} : memref<4x8x512xf32, #tpu.memory_space<vmem>>, vector<4x8x512xf32>,
    %c0_32 = arith.constant 0 : index
    %c0_33 = arith.constant 0 : index
    %55 = vector.load %arg7[%c0_32, %c0_33] : memref<128x512xf32, #tpu.memory_space<vmem>>, vector<128x512xf32>
    %c0_34 = arith.constant 0 : index
    %c0_35 = arith.constant 0 : index
    %56 = vector.load %arg9[%c0_34, %c0_35] : memref<256x512xf32, #tpu.memory_space<vmem>>, vector<256x512xf32>
    %c0_36 = arith.constant 0 : index
    %c0_37 = arith.constant 0 : index
    %57 = vector.load %arg10[%c0_36, %c0_37] : memref<1x512xf32, #tpu.memory_space<vmem>>, vector<1x512xf32>
    %58 = vector.shape_cast %57 : vector<1x512xf32> to vector<1x512xf32>
    %59 = vector.broadcast %58 : vector<1x512xf32> to vector<8x512xf32>
    %cst_38 = arith.constant 0.000000e+00 : f32
    %60 = vector.broadcast %cst_38 : f32 to vector<8x128xf32>
    %c0_i32 = arith.constant 0 : i32
    %61 = arith.index_cast %c0_i32 : i32 to index
    %c0_39 = arith.constant 0 : index
    %c0_40 = arith.constant 0 : index
    %62 = vector.load %arg14[%61, %c0_39, %c0_40] : memref<4x8x512xf32, #tpu.memory_space<vmem>>, vector<1x8x512xf32>
    %63 = vector.shape_cast %62 : vector<1x8x512xf32> to vector<8x512xf32>
    %cst_41 = arith.constant dense<0.000000e+00> : vector<8x512xf32>
    %64 = tpu.matmul %60, %55, %cst_41 {dimension_numbers = #tpu.dot_dimension_numbers<[1], [0], [0], [1], [0, 0, 1, 1], [], []>} : vector<8x128xf32>, vector<128x512xf32>, vector<8x512xf32> -> vector<8x512xf32>
    %65 = arith.addf %63, %64 : vector<8x512xf32>
    %66 = vector.extract_strided_slice %65 {offsets = [0, 0], sizes = [8, 128], strides = [1, 1]} : vector<8x512xf32> to vector<8x128xf32>
    %67 = arith.negf %66 : vector<8x128xf32>
    %68 = math.exp %67 : vector<8x128xf32>
    %cst_42 = arith.constant 1.000000e+00 : f32
    %69 = vector.broadcast %cst_42 : f32 to vector<8x128xf32>
    %70 = arith.addf %69, %68 : vector<8x128xf32>
    %71 = arith.divf %69, %70 : vector<8x128xf32>
    %72 = vector.extract_strided_slice %65 {offsets = [0, 128], sizes = [8, 128], strides = [1, 1]} : vector<8x512xf32> to vector<8x128xf32>
    %73 = arith.negf %72 : vector<8x128xf32>
    %74 = math.exp %73 : vector<8x128xf32>
    %cst_43 = arith.constant 1.000000e+00 : f32
    %75 = vector.broadcast %cst_43 : f32 to vector<8x128xf32>
    %76 = arith.addf %75, %74 : vector<8x128xf32>
    %77 = arith.divf %75, %76 : vector<8x128xf32>
    %78 = vector.extract_strided_slice %65 {offsets = [0, 256], sizes = [8, 128], strides = [1, 1]} : vector<8x512xf32> to vector<8x128xf32>
    %79 = math.tanh %78 : vector<8x128xf32>
    %80 = vector.extract_strided_slice %65 {offsets = [0, 384], sizes = [8, 128], strides = [1, 1]} : vector<8x512xf32> to vector<8x128xf32>
    %81 = arith.negf %80 : vector<8x128xf32>
    %82 = math.exp %81 : vector<8x128xf32>
    %cst_44 = arith.constant 1.000000e+00 : f32
    %83 = vector.broadcast %cst_44 : f32 to vector<8x128xf32>
    %84 = arith.addf %83, %82 : vector<8x128xf32>
    %85 = arith.divf %83, %84 : vector<8x128xf32>
    %86 = arith.mulf %77, %60 : vector<8x128xf32>
    %87 = arith.mulf %71, %79 : vector<8x128xf32>
    %88 = arith.addf %86, %87 : vector<8x128xf32>
    %89 = math.tanh %88 : vector<8x128xf32>
    %90 = arith.mulf %85, %89 : vector<8x128xf32>
    %91 = tpu.concatenate %90, %60 in 1 : vector<8x128xf32>, vector<8x128xf32> -> vector<8x256xf32>
    %cst_45 = arith.constant dense<0.000000e+00> : vector<8x512xf32>
    %92 = tpu.matmul %91, %56, %cst_45 {dimension_numbers = #tpu.dot_dimension_numbers<[1], [0], [0], [1], [0, 0, 1, 1], [], []>} : vector<8x256xf32>, vector<256x512xf32>, vector<8x512xf32> -> vector<8x512xf32>
    %93 = arith.addf %92, %59 : vector<8x512xf32>
    %94 = vector.extract_strided_slice %93 {offsets = [0, 0], sizes = [8, 128], strides = [1, 1]} : vector<8x512xf32> to vector<8x128xf32>
    %95 = arith.negf %94 : vector<8x128xf32>
    %96 = math.exp %95 : vector<8x128xf32>
    %cst_46 = arith.constant 1.000000e+00 : f32
    %97 = vector.broadcast %cst_46 : f32 to vector<8x128xf32>
    %98 = arith.addf %97, %96 : vector<8x128xf32>
    %99 = arith.divf %97, %98 : vector<8x128xf32>
    %100 = vector.extract_strided_slice %93 {offsets = [0, 128], sizes = [8, 128], strides = [1, 1]} : vector<8x512xf32> to vector<8x128xf32>
    %101 = arith.negf %100 : vector<8x128xf32>
    %102 = math.exp %101 : vector<8x128xf32>
    %cst_47 = arith.constant 1.000000e+00 : f32
    %103 = vector.broadcast %cst_47 : f32 to vector<8x128xf32>
    %104 = arith.addf %103, %102 : vector<8x128xf32>
    %105 = arith.divf %103, %104 : vector<8x128xf32>
    %106 = vector.extract_strided_slice %93 {offsets = [0, 256], sizes = [8, 128], strides = [1, 1]} : vector<8x512xf32> to vector<8x128xf32>
    %107 = math.tanh %106 : vector<8x128xf32>
    %108 = vector.extract_strided_slice %93 {offsets = [0, 384], sizes = [8, 128], strides = [1, 1]} : vector<8x512xf32> to vector<8x128xf32>
    %109 = arith.negf %108 : vector<8x128xf32>
    %110 = math.exp %109 : vector<8x128xf32>
    %cst_48 = arith.constant 1.000000e+00 : f32
    %111 = vector.broadcast %cst_48 : f32 to vector<8x128xf32>
    %112 = arith.addf %111, %110 : vector<8x128xf32>
    %113 = arith.divf %111, %112 : vector<8x128xf32>
    %114 = arith.mulf %105, %60 : vector<8x128xf32>
    %115 = arith.mulf %99, %107 : vector<8x128xf32>
    %116 = arith.addf %114, %115 : vector<8x128xf32>
    %117 = math.tanh %116 : vector<8x128xf32>
    %118 = arith.mulf %113, %117 : vector<8x128xf32>
    %c1_i32 = arith.constant 1 : i32
    %119 = arith.index_cast %c1_i32 : i32 to index
    %c0_49 = arith.constant 0 : index
    %c0_50 = arith.constant 0 : index
    %120 = vector.load %arg14[%119, %c0_49, %c0_50] : memref<4x8x512xf32, #tpu.memory_space<vmem>>, vector<1x8x512xf32>
    %121 = vector.shape_cast %120 : vector<1x8x512xf32> to vector<8x512xf32>
    %cst_51 = arith.constant dense<0.000000e+00> : vector<8x512xf32>
    %122 = tpu.matmul %90, %55, %cst_51 {dimension_numbers = #tpu.dot_dimension_numbers<[1], [0], [0], [1], [0, 0, 1, 1], [], []>} : vector<8x128xf32>, vector<128x512xf32>, vector<8x512xf32> -> vector<8x512xf32>
    %123 = arith.addf %121, %122 : vector<8x512xf32>
    %124 = vector.extract_strided_slice %123 {offsets = [0, 0], sizes = [8, 128], strides = [1, 1]} : vector<8x512xf32> to vector<8x128xf32>
    %125 = arith.negf %124 : vector<8x128xf32>
    %126 = math.exp %125 : vector<8x128xf32>
    %cst_52 = arith.constant 1.000000e+00 : f32
    %127 = vector.broadcast %cst_52 : f32 to vector<8x128xf32>
    %128 = arith.addf %127, %126 : vector<8x128xf32>
    %129 = arith.divf %127, %128 : vector<8x128xf32>
    %130 = vector.extract_strided_slice %123 {offsets = [0, 128], sizes = [8, 128], strides = [1, 1]} : vector<8x512xf32> to vector<8x128xf32>
    %131 = arith.negf %130 : vector<8x128xf32>
    %132 = math.exp %131 : vector<8x128xf32>
    %cst_53 = arith.constant 1.000000e+00 : f32
    %133 = vector.broadcast %cst_53 : f32 to vector<8x128xf32>
    %134 = arith.addf %133, %132 : vector<8x128xf32>
    %135 = arith.divf %133, %134 : vector<8x128xf32>
    %136 = vector.extract_strided_slice %123 {offsets = [0, 256], sizes = [8, 128], strides = [1, 1]} : vector<8x512xf32> to vector<8x128xf32>
    %137 = math.tanh %136 : vector<8x128xf32>
    %138 = vector.extract_strided_slice %123 {offsets = [0, 384], sizes = [8, 128], strides = [1, 1]} : vector<8x512xf32> to vector<8x128xf32>
    %139 = arith.negf %138 : vector<8x128xf32>
    %140 = math.exp %139 : vector<8x128xf32>
    %cst_54 = arith.constant 1.000000e+00 : f32
    %141 = vector.broadcast %cst_54 : f32 to vector<8x128xf32>
    %142 = arith.addf %141, %140 : vector<8x128xf32>
    %143 = arith.divf %141, %142 : vector<8x128xf32>
    %144 = arith.mulf %135, %88 : vector<8x128xf32>
    %145 = arith.mulf %129, %137 : vector<8x128xf32>
    %146 = arith.addf %144, %145 : vector<8x128xf32>
    %147 = math.tanh %146 : vector<8x128xf32>
    %148 = arith.mulf %143, %147 : vector<8x128xf32>
    %149 = tpu.concatenate %148, %118 in 1 : vector<8x128xf32>, vector<8x128xf32> -> vector<8x256xf32>
    %cst_55 = arith.constant dense<0.000000e+00> : vector<8x512xf32>
    %150 = tpu.matmul %149, %56, %cst_55 {dimension_numbers = #tpu.dot_dimension_numbers<[1], [0], [0], [1], [0, 0, 1, 1], [], []>} : vector<8x256xf32>, vector<256x512xf32>, vector<8x512xf32> -> vector<8x512xf32>
    %151 = arith.addf %150, %59 : vector<8x512xf32>
    %152 = vector.extract_strided_slice %151 {offsets = [0, 0], sizes = [8, 128], strides = [1, 1]} : vector<8x512xf32> to vector<8x128xf32>
    %153 = arith.negf %152 : vector<8x128xf32>
    %154 = math.exp %153 : vector<8x128xf32>
    %cst_56 = arith.constant 1.000000e+00 : f32
    %155 = vector.broadcast %cst_56 : f32 to vector<8x128xf32>
    %156 = arith.addf %155, %154 : vector<8x128xf32>
    %157 = arith.divf %155, %156 : vector<8x128xf32>
    %158 = vector.extract_strided_slice %151 {offsets = [0, 128], sizes = [8, 128], strides = [1, 1]} : vector<8x512xf32> to vector<8x128xf32>
    %159 = arith.negf %158 : vector<8x128xf32>
    %160 = math.exp %159 : vector<8x128xf32>
    %cst_57 = arith.constant 1.000000e+00 : f32
    %161 = vector.broadcast %cst_57 : f32 to vector<8x128xf32>
    %162 = arith.addf %161, %160 : vector<8x128xf32>
    %163 = arith.divf %161, %162 : vector<8x128xf32>
    %164 = vector.extract_strided_slice %151 {offsets = [0, 256], sizes = [8, 128], strides = [1, 1]} : vector<8x512xf32> to vector<8x128xf32>
    %165 = math.tanh %164 : vector<8x128xf32>
    %166 = vector.extract_strided_slice %151 {offsets = [0, 384], sizes = [8, 128], strides = [1, 1]} : vector<8x512xf32> to vector<8x128xf32>
    %167 = arith.negf %166 : vector<8x128xf32>
    %168 = math.exp %167 : vector<8x128xf32>
    %cst_58 = arith.constant 1.000000e+00 : f32
    %169 = vector.broadcast %cst_58 : f32 to vector<8x128xf32>
    %170 = arith.addf %169, %168 : vector<8x128xf32>
    %171 = arith.divf %169, %170 : vector<8x128xf32>
    %172 = arith.mulf %163, %116 : vector<8x128xf32>
    %173 = arith.mulf %157, %165 : vector<8x128xf32>
    %174 = arith.addf %172, %173 : vector<8x128xf32>
    %175 = math.tanh %174 : vector<8x128xf32>
    %176 = arith.mulf %171, %175 : vector<8x128xf32>
    %c2_i32 = arith.constant 2 : i32
    %177 = arith.index_cast %c2_i32 : i32 to index
    %c0_59 = arith.constant 0 : index
    %c0_60 = arith.constant 0 : index
    %178 = vector.load %arg14[%177, %c0_59, %c0_60] : memref<4x8x512xf32, #tpu.memory_space<vmem>>, vector<1x8x512xf32>
    %179 = vector.shape_cast %178 : vector<1x8x512xf32> to vector<8x512xf32>
    %cst_61 = arith.constant dense<0.000000e+00> : vector<8x512xf32>
    %180 = tpu.matmul %148, %55, %cst_61 {dimension_numbers = #tpu.dot_dimension_numbers<[1], [0], [0], [1], [0, 0, 1, 1], [], []>} : vector<8x128xf32>, vector<128x512xf32>, vector<8x512xf32> -> vector<8x512xf32>
    %181 = arith.addf %179, %180 : vector<8x512xf32>
    %182 = vector.extract_strided_slice %181 {offsets = [0, 0], sizes = [8, 128], strides = [1, 1]} : vector<8x512xf32> to vector<8x128xf32>
    %183 = arith.negf %182 : vector<8x128xf32>
    %184 = math.exp %183 : vector<8x128xf32>
    %cst_62 = arith.constant 1.000000e+00 : f32
    %185 = vector.broadcast %cst_62 : f32 to vector<8x128xf32>
    %186 = arith.addf %185, %184 : vector<8x128xf32>
    %187 = arith.divf %185, %186 : vector<8x128xf32>
    %188 = vector.extract_strided_slice %181 {offsets = [0, 128], sizes = [8, 128], strides = [1, 1]} : vector<8x512xf32> to vector<8x128xf32>
    %189 = arith.negf %188 : vector<8x128xf32>
    %190 = math.exp %189 : vector<8x128xf32>
    %cst_63 = arith.constant 1.000000e+00 : f32
    %191 = vector.broadcast %cst_63 : f32 to vector<8x128xf32>
    %192 = arith.addf %191, %190 : vector<8x128xf32>
    %193 = arith.divf %191, %192 : vector<8x128xf32>
    %194 = vector.extract_strided_slice %181 {offsets = [0, 256], sizes = [8, 128], strides = [1, 1]} : vector<8x512xf32> to vector<8x128xf32>
    %195 = math.tanh %194 : vector<8x128xf32>
    %196 = vector.extract_strided_slice %181 {offsets = [0, 384], sizes = [8, 128], strides = [1, 1]} : vector<8x512xf32> to vector<8x128xf32>
    %197 = arith.negf %196 : vector<8x128xf32>
    %198 = math.exp %197 : vector<8x128xf32>
    %cst_64 = arith.constant 1.000000e+00 : f32
    %199 = vector.broadcast %cst_64 : f32 to vector<8x128xf32>
    %200 = arith.addf %199, %198 : vector<8x128xf32>
    %201 = arith.divf %199, %200 : vector<8x128xf32>
    %202 = arith.mulf %193, %146 : vector<8x128xf32>
    %203 = arith.mulf %187, %195 : vector<8x128xf32>
    %204 = arith.addf %202, %203 : vector<8x128xf32>
    %205 = math.tanh %204 : vector<8x128xf32>
    %206 = arith.mulf %201, %205 : vector<8x128xf32>
    %207 = tpu.concatenate %206, %176 in 1 : vector<8x128xf32>, vector<8x128xf32> -> vector<8x256xf32>
    %cst_65 = arith.constant dense<0.000000e+00> : vector<8x512xf32>
    %208 = tpu.matmul %207, %56, %cst_65 {dimension_numbers = #tpu.dot_dimension_numbers<[1], [0], [0], [1], [0, 0, 1, 1], [], []>} : vector<8x256xf32>, vector<256x512xf32>, vector<8x512xf32> -> vector<8x512xf32>
    %209 = arith.addf %208, %59 : vector<8x512xf32>
    %210 = vector.extract_strided_slice %209 {offsets = [0, 0], sizes = [8, 128], strides = [1, 1]} : vector<8x512xf32> to vector<8x128xf32>
    %211 = arith.negf %210 : vector<8x128xf32>
    %212 = math.exp %211 : vector<8x128xf32>
    %cst_66 = arith.constant 1.000000e+00 : f32
    %213 = vector.broadcast %cst_66 : f32 to vector<8x128xf32>
    %214 = arith.addf %213, %212 : vector<8x128xf32>
    %215 = arith.divf %213, %214 : vector<8x128xf32>
    %216 = vector.extract_strided_slice %209 {offsets = [0, 128], sizes = [8, 128], strides = [1, 1]} : vector<8x512xf32> to vector<8x128xf32>
    %217 = arith.negf %216 : vector<8x128xf32>
    %218 = math.exp %217 : vector<8x128xf32>
    %cst_67 = arith.constant 1.000000e+00 : f32
    %219 = vector.broadcast %cst_67 : f32 to vector<8x128xf32>
    %220 = arith.addf %219, %218 : vector<8x128xf32>
    %221 = arith.divf %219, %220 : vector<8x128xf32>
    %222 = vector.extract_strided_slice %209 {offsets = [0, 256], sizes = [8, 128], strides = [1, 1]} : vector<8x512xf32> to vector<8x128xf32>
    %223 = math.tanh %222 : vector<8x128xf32>
    %224 = vector.extract_strided_slice %209 {offsets = [0, 384], sizes = [8, 128], strides = [1, 1]} : vector<8x512xf32> to vector<8x128xf32>
    %225 = arith.negf %224 : vector<8x128xf32>
    %226 = math.exp %225 : vector<8x128xf32>
    %cst_68 = arith.constant 1.000000e+00 : f32
    %227 = vector.broadcast %cst_68 : f32 to vector<8x128xf32>
    %228 = arith.addf %227, %226 : vector<8x128xf32>
    %229 = arith.divf %227, %228 : vector<8x128xf32>
    %230 = arith.mulf %221, %174 : vector<8x128xf32>
    %231 = arith.mulf %215, %223 : vector<8x128xf32>
    %232 = arith.addf %230, %231 : vector<8x128xf32>
    %233 = math.tanh %232 : vector<8x128xf32>
    %234 = arith.mulf %229, %233 : vector<8x128xf32>
    %c3_i32 = arith.constant 3 : i32
    %235 = arith.index_cast %c3_i32 : i32 to index
    %c0_69 = arith.constant 0 : index
    %c0_70 = arith.constant 0 : index
    %236 = vector.load %arg14[%235, %c0_69, %c0_70] : memref<4x8x512xf32, #tpu.memory_space<vmem>>, vector<1x8x512xf32>
    %237 = vector.shape_cast %236 : vector<1x8x512xf32> to vector<8x512xf32>
    %cst_71 = arith.constant dense<0.000000e+00> : vector<8x512xf32>
    %238 = tpu.matmul %206, %55, %cst_71 {dimension_numbers = #tpu.dot_dimension_numbers<[1], [0], [0], [1], [0, 0, 1, 1], [], []>} : vector<8x128xf32>, vector<128x512xf32>, vector<8x512xf32> -> vector<8x512xf32>
    %239 = arith.addf %237, %238 : vector<8x512xf32>
    %240 = vector.extract_strided_slice %239 {offsets = [0, 0], sizes = [8, 128], strides = [1, 1]} : vector<8x512xf32> to vector<8x128xf32>
    %241 = arith.negf %240 : vector<8x128xf32>
    %242 = math.exp %241 : vector<8x128xf32>
    %cst_72 = arith.constant 1.000000e+00 : f32
    %243 = vector.broadcast %cst_72 : f32 to vector<8x128xf32>
    %244 = arith.addf %243, %242 : vector<8x128xf32>
    %245 = arith.divf %243, %244 : vector<8x128xf32>
    %246 = vector.extract_strided_slice %239 {offsets = [0, 128], sizes = [8, 128], strides = [1, 1]} : vector<8x512xf32> to vector<8x128xf32>
    %247 = arith.negf %246 : vector<8x128xf32>
    %248 = math.exp %247 : vector<8x128xf32>
    %cst_73 = arith.constant 1.000000e+00 : f32
    %249 = vector.broadcast %cst_73 : f32 to vector<8x128xf32>
    %250 = arith.addf %249, %248 : vector<8x128xf32>
    %251 = arith.divf %249, %250 : vector<8x128xf32>
    %252 = vector.extract_strided_slice %239 {offsets = [0, 256], sizes = [8, 128], strides = [1, 1]} : vector<8x512xf32> to vector<8x128xf32>
    %253 = math.tanh %252 : vector<8x128xf32>
    %254 = vector.extract_strided_slice %239 {offsets = [0, 384], sizes = [8, 128], strides = [1, 1]} : vector<8x512xf32> to vector<8x128xf32>
    %255 = arith.negf %254 : vector<8x128xf32>
    %256 = math.exp %255 : vector<8x128xf32>
    %cst_74 = arith.constant 1.000000e+00 : f32
    %257 = vector.broadcast %cst_74 : f32 to vector<8x128xf32>
    %258 = arith.addf %257, %256 : vector<8x128xf32>
    %259 = arith.divf %257, %258 : vector<8x128xf32>
    %260 = arith.mulf %251, %204 : vector<8x128xf32>
    %261 = arith.mulf %245, %253 : vector<8x128xf32>
    %262 = arith.addf %260, %261 : vector<8x128xf32>
    %263 = math.tanh %262 : vector<8x128xf32>
    %264 = arith.mulf %259, %263 : vector<8x128xf32>
    %265 = tpu.concatenate %264, %234 in 1 : vector<8x128xf32>, vector<8x128xf32> -> vector<8x256xf32>
    %cst_75 = arith.constant dense<0.000000e+00> : vector<8x512xf32>
    %266 = tpu.matmul %265, %56, %cst_75 {dimension_numbers = #tpu.dot_dimension_numbers<[1], [0], [0], [1], [0, 0, 1, 1], [], []>} : vector<8x256xf32>, vector<256x512xf32>, vector<8x512xf32> -> vector<8x512xf32>
    %267 = arith.addf %266, %59 : vector<8x512xf32>
    %268 = vector.extract_strided_slice %267 {offsets = [0, 0], sizes = [8, 128], strides = [1, 1]} : vector<8x512xf32> to vector<8x128xf32>
    %269 = arith.negf %268 : vector<8x128xf32>
    %270 = math.exp %269 : vector<8x128xf32>
    %cst_76 = arith.constant 1.000000e+00 : f32
    %271 = vector.broadcast %cst_76 : f32 to vector<8x128xf32>
    %272 = arith.addf %271, %270 : vector<8x128xf32>
    %273 = arith.divf %271, %272 : vector<8x128xf32>
    %274 = vector.extract_strided_slice %267 {offsets = [0, 128], sizes = [8, 128], strides = [1, 1]} : vector<8x512xf32> to vector<8x128xf32>
    %275 = arith.negf %274 : vector<8x128xf32>
    %276 = math.exp %275 : vector<8x128xf32>
    %cst_77 = arith.constant 1.000000e+00 : f32
    %277 = vector.broadcast %cst_77 : f32 to vector<8x128xf32>
    %278 = arith.addf %277, %276 : vector<8x128xf32>
    %279 = arith.divf %277, %278 : vector<8x128xf32>
    %280 = vector.extract_strided_slice %267 {offsets = [0, 256], sizes = [8, 128], strides = [1, 1]} : vector<8x512xf32> to vector<8x128xf32>
    %281 = math.tanh %280 : vector<8x128xf32>
    %282 = vector.extract_strided_slice %267 {offsets = [0, 384], sizes = [8, 128], strides = [1, 1]} : vector<8x512xf32> to vector<8x128xf32>
    %283 = arith.negf %282 : vector<8x128xf32>
    %284 = math.exp %283 : vector<8x128xf32>
    %cst_78 = arith.constant 1.000000e+00 : f32
    %285 = vector.broadcast %cst_78 : f32 to vector<8x128xf32>
    %286 = arith.addf %285, %284 : vector<8x128xf32>
    %287 = arith.divf %285, %286 : vector<8x128xf32>
    %288 = arith.mulf %279, %232 : vector<8x128xf32>
    %289 = arith.mulf %273, %281 : vector<8x128xf32>
    %290 = arith.addf %288, %289 : vector<8x128xf32>
    %291 = math.tanh %290 : vector<8x128xf32>
    %292 = arith.mulf %287, %291 : vector<8x128xf32>
    %c4_i32 = arith.constant 4 : i32
    %c0_79 = arith.constant 0 : index
    %c0_80 = arith.constant 0 : index
    %293 = vector.load %arg11[%c0_79, %c0_80] : memref<128x2xf32, #tpu.memory_space<vmem>>, vector<128x2xf32>
    %cst_81 = arith.constant dense<0.000000e+00> : vector<8x2xf32>
    %294 = tpu.matmul %292, %293, %cst_81 {dimension_numbers = #tpu.dot_dimension_numbers<[1], [0], [0], [1], [0, 0, 1, 1], [], []>} : vector<8x128xf32>, vector<128x2xf32>, vector<8x2xf32> -> vector<8x2xf32>
    %c0_82 = arith.constant 0 : index
    %c0_83 = arith.constant 0 : index
    %295 = vector.load %arg12[%c0_82, %c0_83] : memref<1x2xf32, #tpu.memory_space<vmem>>, vector<1x2xf32>
    %296 = vector.broadcast %295 : vector<1x2xf32> to vector<8x2xf32>
    %297 = arith.addf %294, %296 : vector<8x2xf32>
    %c0_84 = arith.constant 0 : index
    %c0_85 = arith.constant 0 : index
    %298 = vector.load %arg13[%c0_84, %c0_85] : memref<8x2xf32, #tpu.memory_space<vmem>>, vector<8x2xf32>
    tpu.vector_store %arg13[%c0_84, %c0_85], %297 {strides = array<i32>} : memref<8x2xf32, #tpu.memory_space<vmem>>, vector<8x2xf32>,
    return
  }
  func.func @transform_0(%arg0: i32) -> (i32, i32, i32) {
    %c0_i32 = arith.constant 0 : i32
    %c0_i32_0 = arith.constant 0 : i32
    %c0_i32_1 = arith.constant 0 : i32
    return %c0_i32, %arg0, %c0_i32_0 : i32, i32, i32
  }
  func.func @transform_1(%arg0: i32) -> (i32, i32) {
    %c0_i32 = arith.constant 0 : i32
    %c0_i32_0 = arith.constant 0 : i32
    %c0_i32_1 = arith.constant 0 : i32
    return %c0_i32, %c0_i32_0 : i32, i32
  }
  func.func @transform_2(%arg0: i32) -> (i32, i32) {
    %c0_i32 = arith.constant 0 : i32
    %c0_i32_0 = arith.constant 0 : i32
    %c0_i32_1 = arith.constant 0 : i32
    return %c0_i32, %c0_i32_0 : i32, i32
  }
  func.func @transform_3(%arg0: i32) -> (i32, i32, i32) {
    %c0_i32 = arith.constant 0 : i32
    %c0_i32_0 = arith.constant 0 : i32
    %c0_i32_1 = arith.constant 0 : i32
    %c0_i32_2 = arith.constant 0 : i32
    return %c0_i32, %c0_i32_0, %c0_i32_1 : i32, i32, i32
  }
  func.func @transform_4(%arg0: i32) -> (i32, i32) {
    %c0_i32 = arith.constant 0 : i32
    %c0_i32_0 = arith.constant 0 : i32
    %c0_i32_1 = arith.constant 0 : i32
    return %c0_i32, %c0_i32_0 : i32, i32
  }
  func.func @transform_5(%arg0: i32) -> (i32, i32) {
    %c0_i32 = arith.constant 0 : i32
    %c0_i32_0 = arith.constant 0 : i32
    %c0_i32_1 = arith.constant 0 : i32
    return %c0_i32, %c0_i32_0 : i32, i32
  }
  func.func @transform_6(%arg0: i32) -> (i32, i32) {
    %c0_i32 = arith.constant 0 : i32
    %c0_i32_0 = arith.constant 0 : i32
    %c0_i32_1 = arith.constant 0 : i32
    return %c0_i32, %c0_i32_0 : i32, i32
  }
  func.func @transform_7(%arg0: i32) -> (i32, i32) {
    %c0_i32 = arith.constant 0 : i32
    %c0_i32_0 = arith.constant 0 : i32
    %c0_i32_1 = arith.constant 0 : i32
    return %c0_i32, %c0_i32_0 : i32, i32
  }
  func.func @transform_8(%arg0: i32) -> (i32, i32) {
    %c0_i32 = arith.constant 0 : i32
    %c0_i32_0 = arith.constant 0 : i32
    %c0_i32_1 = arith.constant 0 : i32
    return %c0_i32, %c0_i32_0 : i32, i32
  }
  func.func @transform_9(%arg0: i32) -> (i32, i32) {
    %c0_i32 = arith.constant 0 : i32
    %c0_i32_0 = arith.constant 0 : i32
    %c0_i32_1 = arith.constant 0 : i32
    return %c0_i32, %c0_i32_0 : i32, i32
  }
  func.func @transform_10(%arg0: i32) -> (i32, i32) {
    %c0_i32 = arith.constant 0 : i32
    %c0_i32_0 = arith.constant 0 : i32
    %c0_i32_1 = arith.constant 0 : i32
    return %c0_i32, %c0_i32_0 : i32, i32
  }
  func.func @transform_11(%arg0: i32) -> (i32, i32) {
    %c0_i32 = arith.constant 0 : i32
    %c0_i32_0 = arith.constant 0 : i32
    %c0_i32_1 = arith.constant 0 : i32
    return %c0_i32, %c0_i32_0 : i32, i32
  }
  func.func @transform_12(%arg0: i32) -> (i32, i32) {
    %c0_i32 = arith.constant 0 : i32
    %c0_i32_0 = arith.constant 0 : i32
    return %arg0, %c0_i32 : i32, i32
  }
}

</mosaic_0001>

<llo_original>
// kernel: _lambda_.1
$region0: #{_lambda_.1}
  #allocation0 [shape = 'u32[]', space=smem, size = 0x4, offset = 0x4, fixed_abs, tag = 'smem constant byte address 0x4 - core index']
  #allocation1 [shape = 'u32[144,128]{1,0:T(1,128)}', space=vmem, size = 0x12000, scoped, tag = 'internal scratch']
  #allocation2 [shape = 'f32[4,8,512]{2,1,0:T(8,128)}', space=vmem, size = 0x10000, scoped, tag = 'scratch operand']
  %s0 = inlined_call_operand.vmem [shape: f32[8,8,12], index: 0, kind: input, shape index: {}]
  %s1 = inlined_call_operand.vmem [shape: bf16[12,64], index: 1, kind: input, shape index: {}]
  %s2 = inlined_call_operand.hbm [shape: f32[1,64], index: 2, kind: input, shape index: {}]
  %s3 = inlined_call_operand.hbm [shape: bf16[3,64,128], index: 3, kind: input, shape index: {}]
  %s4 = inlined_call_operand.hbm [shape: f32[1,128], index: 4, kind: input, shape index: {}]
  %s5 = inlined_call_operand.vmem [shape: bf16[128,512], index: 5, kind: input, shape index: {}]
  %s6 = inlined_call_operand.hbm [shape: f32[128,512], index: 6, kind: input, shape index: {}]
  %s7 = inlined_call_operand.vmem [shape: f32[1,512], index: 7, kind: input, shape index: {}]
  %s8 = inlined_call_operand.vmem [shape: f32[256,512], index: 8, kind: input, shape index: {}]
  %s9 = inlined_call_operand.vmem [shape: f32[1,512], index: 9, kind: input, shape index: {}]
  %s10 = inlined_call_operand.hbm [shape: f32[128,2], index: 10, kind: input, shape index: {}]
  %s11 = inlined_call_operand.vmem [shape: f32[1,2], index: 11, kind: input, shape index: {}]
  %s12 = inlined_call_operand.vmem [shape: f32[8,2], index: 12, kind: output, shape index: {}]
  %s13 = sld [smem:[#allocation0]]
  $region78: #{_lambda_.1} parent=0
    _
  %s15 = ssub.s32 1, %s13
  %s16 = scalar_select 0, %s15, %s13
  $region1: #{_lambda_.1} parent=0
    #allocation3 [shape = 'u8[512]{0}', space=vmem, size = 0x400, scoped, tag = 'input window, operand 2, single buffered']
    #allocation4 [shape = 's32[1]{0}', space=sflag, size = 0x4, scoped, tag = 'scoped memory for _lambda_.1']
    #allocation5 [shape = 'u8[49152]{0}', space=vmem, size = 0xc000, scoped, tag = 'input window, operand 3, single buffered']
    #allocation6 [shape = 's32[1]{0}', space=sflag, size = 0x4, scoped, tag = 'scoped memory for _lambda_.1']
    #allocation7 [shape = 'u8[512]{0}', space=vmem, size = 0x400, scoped, tag = 'input window, operand 4, single buffered']
    #allocation8 [shape = 'u8[262144]{0}', space=vmem, size = 0x40000, scoped, tag = 'input window, operand 6, single buffered']
    #allocation9 [shape = 's32[1]{0}', space=sflag, size = 0x4, scoped, tag = 'scoped memory for _lambda_.1']
    #allocation10 [shape = 'u8[65536]{0}', space=vmem, size = 0x10000, scoped, tag = 'input window, operand 10, single buffered']
    %17 = vsyncpa [#allocation4], 0
    %18 = vsyncpa [#allocation6], 0
    %19 = vsyncpa [#allocation9], 0
    // Predicated region
    $region2: #{_lambda_.1} parent=1 // pred_check
      _
    $region3: #{_lambda_.1} parent=1 // pred_check_branch
      %21 = sbr.rel (0) target = $region5
    $region4: #{_lambda_.1} parent=1 // pred_region
      _
    $region5: #{_lambda_.1} parent=1 // pred_fallthru
      _
    // Predicated region
    $region6: #{_lambda_.1} parent=1 // pred_check
      _
    $region7: #{_lambda_.1} parent=1 // pred_check_branch
      %23 = sbr.rel (0) target = $region9
    $region8: #{_lambda_.1} parent=1 // pred_region
      _
    $region9: #{_lambda_.1} parent=1 // pred_fallthru
      _
    // Predicated region
    $region10: #{_lambda_.1} parent=1 // pred_check
      _
    $region11: #{_lambda_.1} parent=1 // pred_check_branch
      %25 = sbr.rel (0) target = $region13
    $region12: #{_lambda_.1} parent=1 // pred_region
      %s27 = ssub.s32 16, 16
      %28 = vsyncadd [#allocation4], %s27
      %s30 = sshll.u32 [#allocation3], 4
      %s31 = int_to_ptr.vmem [resolvable:$true] %s30
      %33 = dma.hbm_to_vmem [thread:$0]  %s2, 16, %s31, [#allocation4]
    $region13: #{_lambda_.1} parent=1 // pred_fallthru
      _
    // Predicated region
    $region14: #{_lambda_.1} parent=1 // pred_check
      _
    $region15: #{_lambda_.1} parent=1 // pred_check_branch
      %35 = sbr.rel (0) target = $region17
    $region16: #{_lambda_.1} parent=1 // pred_region
      %s37 = ssub.s32 1536, 1536
      %38 = vsyncadd [#allocation6], %s37
      %s39 = sshll.u32 [#allocation5], 4
      %s40 = int_to_ptr.vmem [resolvable:$true] %s39
      %45 = dma.hbm_to_vmem [thread:$0]  %s3, 1536, %s40, [#allocation6], 64, 64, 4
    $region17: #{_lambda_.1} parent=1 // pred_fallthru
      _
    // Predicated region
    $region18: #{_lambda_.1} parent=1 // pred_check
      _
    $region19: #{_lambda_.1} parent=1 // pred_check_branch
      %47 = sbr.rel (0) target = $region21
    $region20: #{_lambda_.1} parent=1 // pred_region
      %s49 = ssub.s32 16, 16
      %50 = vsyncadd [#allocation6], %s49
      %s52 = sshll.u32 [#allocation7], 4
      %s53 = int_to_ptr.vmem [resolvable:$true] %s52
      %55 = dma.hbm_to_vmem [thread:$0]  %s4, 16, %s53, [#allocation6]
    $region21: #{_lambda_.1} parent=1 // pred_fallthru
      _
    // Predicated region
    $region22: #{_lambda_.1} parent=1 // pred_check
      _
    $region23: #{_lambda_.1} parent=1 // pred_check_branch
      %57 = sbr.rel (0) target = $region25
    $region24: #{_lambda_.1} parent=1 // pred_region
      _
    $region25: #{_lambda_.1} parent=1 // pred_fallthru
      _
    // Predicated region
    $region26: #{_lambda_.1} parent=1 // pred_check
      _
    $region27: #{_lambda_.1} parent=1 // pred_check_branch
      %59 = sbr.rel (0) target = $region29
    $region28: #{_lambda_.1} parent=1 // pred_region
      %s61 = ssub.s32 8192, 8192
      %62 = vsyncadd [#allocation9], %s61
      %s63 = sshll.u32 [#allocation8], 4
      %s64 = int_to_ptr.vmem [resolvable:$true] %s63
      %69 = dma.hbm_to_vmem [thread:$0]  %s6, 8192, %s64, [#allocation9], 512, 512, 32
    $region29: #{_lambda_.1} parent=1 // pred_fallthru
      _
    // Predicated region
    $region30: #{_lambda_.1} parent=1 // pred_check
      _
    $region31: #{_lambda_.1} parent=1 // pred_check_branch
      %71 = sbr.rel (0) target = $region33
    $region32: #{_lambda_.1} parent=1 // pred_region
      _
    $region33: #{_lambda_.1} parent=1 // pred_fallthru
      _
    // Predicated region
    $region34: #{_lambda_.1} parent=1 // pred_check
      _
    $region35: #{_lambda_.1} parent=1 // pred_check_branch
      %73 = sbr.rel (0) target = $region37
    $region36: #{_lambda_.1} parent=1 // pred_region
      _
    $region37: #{_lambda_.1} parent=1 // pred_fallthru
      _
    // Predicated region
    $region38: #{_lambda_.1} parent=1 // pred_check
      _
    $region39: #{_lambda_.1} parent=1 // pred_check_branch
      %75 = sbr.rel (0) target = $region41
    $region40: #{_lambda_.1} parent=1 // pred_region
      _
    $region41: #{_lambda_.1} parent=1 // pred_fallthru
      _
    // Predicated region
    $region42: #{_lambda_.1} parent=1 // pred_check
      _
    $region43: #{_lambda_.1} parent=1 // pred_check_branch
      %77 = sbr.rel (0) target = $region45
    $region44: #{_lambda_.1} parent=1 // pred_region
      %s79 = ssub.s32 2048, 2048
      %80 = vsyncadd [#allocation9], %s79
      %s81 = sshll.u32 [#allocation10], 4
      %s82 = int_to_ptr.vmem [resolvable:$true] %s81
      %87 = dma.hbm_to_vmem [thread:$0]  %s10, 2048, %s82, [#allocation9], 128, 128, 8
    $region45: #{_lambda_.1} parent=1 // pred_fallthru
      _
    // Predicated region
    $region46: #{_lambda_.1} parent=1 // pred_check
      _
    $region47: #{_lambda_.1} parent=1 // pred_check_branch
      %89 = sbr.rel (0) target = $region49
    $region48: #{_lambda_.1} parent=1 // pred_region
      _
    $region49: #{_lambda_.1} parent=1 // pred_fallthru
      _
    // Predicated region
    $region50: #{_lambda_.1} parent=1 // pred_check
      _
    $region51: #{_lambda_.1} parent=1 // pred_check_branch
      %91 = sbr.rel (0) target = $region53
    $region52: #{_lambda_.1} parent=1 // pred_region
      %92 = dma.done [#allocation4], 16
    $region53: #{_lambda_.1} parent=1 // pred_fallthru
      _
    // Predicated region
    $region54: #{_lambda_.1} parent=1 // pred_check
      _
    $region55: #{_lambda_.1} parent=1 // pred_check_branch
      %94 = sbr.rel (0) target = $region57
    $region56: #{_lambda_.1} parent=1 // pred_region
      %95 = dma.done [#allocation6], 1536
    $region57: #{_lambda_.1} parent=1 // pred_fallthru
      _
    // Predicated region
    $region58: #{_lambda_.1} parent=1 // pred_check
      _
    $region59: #{_lambda_.1} parent=1 // pred_check_branch
      %97 = sbr.rel (0) target = $region61
    $region60: #{_lambda_.1} parent=1 // pred_region
      %98 = dma.done [#allocation6], 16
    $region61: #{_lambda_.1} parent=1 // pred_fallthru
      _
    // Predicated region
    $region62: #{_lambda_.1} parent=1 // pred_check
      _
    $region63: #{_lambda_.1} parent=1 // pred_check_branch
      %100 = sbr.rel (0) target = $region65
    $region64: #{_lambda_.1} parent=1 // pred_region
      %101 = dma.done [#allocation9], 8192
    $region65: #{_lambda_.1} parent=1 // pred_fallthru
      _
    // Predicated region
    $region66: #{_lambda_.1} parent=1 // pred_check
      _
    $region67: #{_lambda_.1} parent=1 // pred_check_branch
      %103 = sbr.rel (0) target = $region69
    $region68: #{_lambda_.1} parent=1 // pred_region
      %104 = dma.done [#allocation9], 2048
    $region69: #{_lambda_.1} parent=1 // pred_fallthru
      _
    %v106 = vld [vmem:[%s0] sm:$0xff]
    %v107 = vld [vmem:[%s0 + $0x8] sm:$0xff]
    %v108 = vld [vmem:[%s0 + $0x10] sm:$0xff]
    %v109 = vld [vmem:[%s0 + $0x18] sm:$0xff]
    %v110 = vld [vmem:[%s0 + $0x20] sm:$0xff]
    %v111 = vld [vmem:[%s0 + $0x28] sm:$0xff]
    %v112 = vld [vmem:[%s0 + $0x30] sm:$0xff]
    %v113 = vld [vmem:[%s0 + $0x38] sm:$0xff]
    %v114 = vpack.c.bf16 %v107, %v106
    %v115 = vpack.c.bf16 %v109, %v108
    %v116 = vpack.c.bf16 %v111, %v110
    %v117 = vpack.c.bf16 %v113, %v112
    %v118 = vld [vmem:[%s1] sm:$0xf]
    %v119 = vld [vmem:[%s1 + $0x4] sm:$0x3]
    %v120 = vld [vmem:[#allocation3] sm:$0x1]
    %v122 = vlaneseq
    %v123 = vshrl.u32 %v122, 7
    %v124 = vsub.s32 0, %v123
    %v125 = vrot.slane %v120, %v124
    %v129 = vunpack.c.l.b16 %v118
    %v130 = vunpack.c.l.b16 %v119
    %v131 = vpack.c.b16 %v130, %v129
    %vm132 = vcmask 97280
    %v134 = vsel %vm132, %v114, 0
    %v137 = vsel %vm132, %v115, 0
    %v140 = vsel %vm132, %v116, 0
    %v143 = vsel %vm132, %v117, 0
    %vm145 = vcmask 1045504
    %v147 = vsel %vm145, %v131, 0
    %149 = vmatprep.subr.bf16.mxu0 0
    %150 = vmatpush1.bf16.msra.mxu0 %v147
    %151 = vmatprep.subr.bf16.mxu0 0
    %152 = vmatpush1.bf16.msra.mxu0 0
    %153 = vmatprep.subr.bf16.mxu0 0
    %154 = vmatpush1.bf16.msra.mxu0 0
    %155 = vmatprep.subr.bf16.mxu0 0
    %156 = vmatpush1.bf16.msra.mxu0 0
    %157 = vmatprep.subr.bf16.mxu0 0
    %158 = vmatpush1.bf16.msra.mxu0 0
    %159 = vmatprep.subr.bf16.mxu0 0
    %160 = vmatpush1.bf16.msra.mxu0 0
    %161 = vmatprep.subr.bf16.mxu0 0
    %162 = vmatpush1.bf16.msra.mxu0 0
    %163 = vmatprep.subr.bf16.mxu0 0
    %164 = vmatpush1.bf16.msra.mxu0 0
    %165 = vmatprep.subr.bf16.mxu0 0
    %166 = vmatpush1.bf16.msra.mxu0 0
    %167 = vmatprep.subr.bf16.mxu0 0
    %168 = vmatpush1.bf16.msra.mxu0 0
    %169 = vmatprep.subr.bf16.mxu0 0
    %170 = vmatpush1.bf16.msra.mxu0 0
    %171 = vmatprep.subr.bf16.mxu0 0
    %172 = vmatpush1.bf16.msra.mxu0 0
    %173 = vmatprep.subr.bf16.mxu0 0
    %174 = vmatpush1.bf16.msra.mxu0 0
    %175 = vmatprep.subr.bf16.mxu0 0
    %176 = vmatpush1.bf16.msra.mxu0 0
    %177 = vmatprep.subr.bf16.mxu0 0
    %178 = vmatpush1.bf16.msra.mxu0 0
    %179 = vmatprep.subr.bf16.mxu0 0
    %180 = vmatpush1.bf16.msra.mxu0 0
    %181 = vmatprep.mubr.bf16.mxu0 0
    %182 = vmatmul.mubr.bf16.gmra.mrb[0].mxu0 %v134
    %v183 = vpop.f32.mrb[0].mxu0
    %v184 = vadd.f32 %v125, %v183
    %v185 = vpop.f32.mrb[0].mxu0
    %v186 = vpop.f32.mrb[0].mxu0
    %v187 = vadd.f32 %v125, %v186
    %v188 = vpop.f32.mrb[0].mxu0
    %189 = vmatprep.mubr.bf16.mxu0 0
    %190 = vmatmul.mubr.bf16.gmra.mrb[0].mxu0 %v137
    %v191 = vpop.f32.mrb[0].mxu0
    %v192 = vadd.f32 %v125, %v191
    %v193 = vpop.f32.mrb[0].mxu0
    %v194 = vpop.f32.mrb[0].mxu0
    %v195 = vadd.f32 %v125, %v194
    %v196 = vpop.f32.mrb[0].mxu0
    %197 = vmatprep.mubr.bf16.mxu0 0
    %198 = vmatmul.mubr.bf16.gmra.mrb[0].mxu0 %v140
    %v199 = vpop.f32.mrb[0].mxu0
    %v200 = vadd.f32 %v125, %v199
    %v201 = vpop.f32.mrb[0].mxu0
    %v202 = vpop.f32.mrb[0].mxu0
    %v203 = vadd.f32 %v125, %v202
    %v204 = vpop.f32.mrb[0].mxu0
    %205 = vmatprep.mubr.bf16.mxu0 0
    %206 = vmatmul.mubr.bf16.gmra.mrb[0].mxu0 %v143
    %v207 = vpop.f32.mrb[0].mxu0
    %v208 = vadd.f32 %v125, %v207
    %v209 = vpop.f32.mrb[0].mxu0
    %v210 = vpop.f32.mrb[0].mxu0
    %v211 = vadd.f32 %v125, %v210
    %v212 = vpop.f32.mrb[0].mxu0
    %213 = vdwg.mxu0
    %v214 = vmax.f32 %v184, 0.0
    %v215 = vmax.f32 %v187, 0.0
    %v216 = vmax.f32 %v192, 0.0
    %v217 = vmax.f32 %v195, 0.0
    %v218 = vmax.f32 %v200, 0.0
    %v219 = vmax.f32 %v203, 0.0
    %v220 = vmax.f32 %v208, 0.0
    %v221 = vmax.f32 %v211, 0.0
    %v222 = vlaneseq
    %v223 = vshrl.u32 %v222, 7
    %v224 = vadd.s32 %v223, 8
    %v225 = vadd.s32 %v223, 16
    %v226 = vadd.s32 %v223, 24
    %v227 = vadd.s32 %v223, 32
    %v228 = vadd.s32 %v223, 40
    %v229 = vadd.s32 %v223, 48
    %v230 = vadd.s32 %v223, 56
    %vm231 = vcmp.lt.s32.totalorder %v223, 8
    %vm232 = vcmp.lt.s32.totalorder %v224, 8
    %vm233 = vcmp.lt.s32.totalorder %v225, 8
    %vm234 = vcmp.lt.s32.totalorder %v226, 8
    %vm235 = vcmp.lt.s32.totalorder %v227, 8
    %vm236 = vcmp.lt.s32.totalorder %v228, 8
    %vm237 = vcmp.lt.s32.totalorder %v229, 8
    %vm238 = vcmp.lt.s32.totalorder %v230, 8
    %v239 = vsel %vm231, 0.0, %v221
    %v240 = vsel %vm232, 0.0, %v214
    %v241 = vsel %vm233, 0.0, %v215
    %v242 = vsel %vm234, 0.0, %v216
    %v243 = vsel %vm235, 0.0, %v217
    %v244 = vsel %vm236, 0.0, %v218
    %v245 = vsel %vm237, 0.0, %v219
    %v246 = vsel %vm238, 0.0, %v220
    %vm247 = vcmp.ge.s32.totalorder %v223, 56
    %vm248 = vcmp.ge.s32.totalorder %v224, 56
    %vm249 = vcmp.ge.s32.totalorder %v225, 56
    %vm250 = vcmp.ge.s32.totalorder %v226, 56
    %vm251 = vcmp.ge.s32.totalorder %v227, 56
    %vm252 = vcmp.ge.s32.totalorder %v228, 56
    %vm253 = vcmp.ge.s32.totalorder %v229, 56
    %vm254 = vcmp.ge.s32.totalorder %v230, 56
    %v255 = vsel %vm247, 0.0, %v215
    %v256 = vsel %vm248, 0.0, %v216
    %v257 = vsel %vm249, 0.0, %v217
    %v258 = vsel %vm250, 0.0, %v218
    %v259 = vsel %vm251, 0.0, %v219
    %v260 = vsel %vm252, 0.0, %v220
    %v261 = vsel %vm253, 0.0, %v221
    %v262 = vsel %vm254, 0.0, %v214
    %v263 = vpack.c.bf16 %v240, %v239
    %v264 = vpack.c.bf16 %v242, %v241
    %v265 = vpack.c.bf16 %v244, %v243
    %v266 = vpack.c.bf16 %v246, %v245
    %v267 = vld [vmem:[#allocation5] sm:$0xf]
    %v268 = vld [vmem:[#allocation5 + $0x4] sm:$0xf]
    %v269 = vld [vmem:[#allocation5 + $0x8] sm:$0xf]
    %v270 = vld [vmem:[#allocation5 + $0xc] sm:$0xf]
    %v271 = vld [vmem:[#allocation5 + $0x10] sm:$0xf]
    %v272 = vld [vmem:[#allocation5 + $0x14] sm:$0xf]
    %v273 = vld [vmem:[#allocation5 + $0x18] sm:$0xf]
    %v274 = vld [vmem:[#allocation5 + $0x1c] sm:$0xf]
    %v275 = vpack.c.bf16 %v215, %v214
    %v276 = vpack.c.bf16 %v217, %v216
    %v277 = vpack.c.bf16 %v219, %v218
    %v278 = vpack.c.bf16 %v221, %v220
    %s279 = scalar_lea.vmem [#allocation5], 32
    %v280 = vld [vmem:[%s279] sm:$0xf]
    %v281 = vld [vmem:[%s279 + $0x4] sm:$0xf]
    %v282 = vld [vmem:[%s279 + $0x8] sm:$0xf]
    %v283 = vld [vmem:[%s279 + $0xc] sm:$0xf]
    %v284 = vld [vmem:[%s279 + $0x10] sm:$0xf]
    %v285 = vld [vmem:[%s279 + $0x14] sm:$0xf]
    %v286 = vld [vmem:[%s279 + $0x18] sm:$0xf]
    %v287 = vld [vmem:[%s279 + $0x1c] sm:$0xf]
    %v296 = vunpack.c.l.b16 %v280
    %v297 = vunpack.c.l.b16 %v281
    %v298 = vunpack.c.l.b16 %v282
    %v299 = vunpack.c.l.b16 %v283
    %v300 = vunpack.c.l.b16 %v284
    %v301 = vunpack.c.l.b16 %v285
    %v302 = vunpack.c.l.b16 %v286
    %v303 = vunpack.c.l.b16 %v287
    %v304 = vpack.c.b16 %v297, %v296
    %v305 = vpack.c.b16 %v299, %v298
    %v306 = vpack.c.b16 %v301, %v300
    %v307 = vpack.c.b16 %v303, %v302
    %vm312 = vcmask 523264
    %v314 = vsel %vm312, %v275, 0
    %v317 = vsel %vm312, %v276, 0
    %v320 = vsel %vm312, %v277, 0
    %v323 = vsel %vm312, %v278, 0
    %325 = vmatprep.subr.bf16.mxu0 0
    %326 = vmatpush1.bf16.msra.mxu0 %v304
    %327 = vmatprep.subr.bf16.mxu0 0
    %328 = vmatpush1.bf16.msra.mxu0 %v305
    %329 = vmatprep.subr.bf16.mxu0 0
    %330 = vmatpush1.bf16.msra.mxu0 %v306
    %331 = vmatprep.subr.bf16.mxu0 0
    %332 = vmatpush1.bf16.msra.mxu0 %v307
    %333 = vmatprep.subr.bf16.mxu0 0
    %334 = vmatpush1.bf16.msra.mxu0 0
    %335 = vmatprep.subr.bf16.mxu0 0
    %336 = vmatpush1.bf16.msra.mxu0 0
    %337 = vmatprep.subr.bf16.mxu0 0
    %338 = vmatpush1.bf16.msra.mxu0 0
    %339 = vmatprep.subr.bf16.mxu0 0
    %340 = vmatpush1.bf16.msra.mxu0 0
    %341 = vmatprep.subr.bf16.mxu0 0
    %342 = vmatpush1.bf16.msra.mxu0 0
    %343 = vmatprep.subr.bf16.mxu0 0
    %344 = vmatpush1.bf16.msra.mxu0 0
    %345 = vmatprep.subr.bf16.mxu0 0
    %346 = vmatpush1.bf16.msra.mxu0 0
    %347 = vmatprep.subr.bf16.mxu0 0
    %348 = vmatpush1.bf16.msra.mxu0 0
    %349 = vmatprep.subr.bf16.mxu0 0
    %350 = vmatpush1.bf16.msra.mxu0 0
    %351 = vmatprep.subr.bf16.mxu0 0
    %352 = vmatpush1.bf16.msra.mxu0 0
    %353 = vmatprep.subr.bf16.mxu0 0
    %354 = vmatpush1.bf16.msra.mxu0 0
    %355 = vmatprep.subr.bf16.mxu0 0
    %356 = vmatpush1.bf16.msra.mxu0 0
    %357 = vmatprep.mubr.bf16.mxu0 0
    %358 = vmatmul.mubr.bf16.gmra.mrb[0].mxu0 %v314
    %v359 = vpop.f32.mrb[0].mxu0
    %v360 = vadd.f32 0.0, %v359
    %v361 = vpop.f32.mrb[0].mxu0
    %v362 = vpop.f32.mrb[0].mxu0
    %v363 = vadd.f32 0.0, %v362
    %v364 = vpop.f32.mrb[0].mxu0
    %365 = vmatprep.mubr.bf16.mxu0 0
    %366 = vmatmul.mubr.bf16.gmra.mrb[0].mxu0 %v317
    %v367 = vpop.f32.mrb[0].mxu0
    %v368 = vadd.f32 0.0, %v367
    %v369 = vpop.f32.mrb[0].mxu0
    %v370 = vpop.f32.mrb[0].mxu0
    %v371 = vadd.f32 0.0, %v370
    %v372 = vpop.f32.mrb[0].mxu0
    %373 = vmatprep.mubr.bf16.mxu0 0
    %374 = vmatmul.mubr.bf16.gmra.mrb[0].mxu0 %v320
    %v375 = vpop.f32.mrb[0].mxu0
    %v376 = vadd.f32 0.0, %v375
    %v377 = vpop.f32.mrb[0].mxu0
    %v378 = vpop.f32.mrb[0].mxu0
    %v379 = vadd.f32 0.0, %v378
    %v380 = vpop.f32.mrb[0].mxu0
    %381 = vmatprep.mubr.bf16.mxu0 0
    %382 = vmatmul.mubr.bf16.gmra.mrb[0].mxu0 %v323
    %v383 = vpop.f32.mrb[0].mxu0
    %v384 = vadd.f32 0.0, %v383
    %v385 = vpop.f32.mrb[0].mxu0
    %v386 = vpop.f32.mrb[0].mxu0
    %v387 = vadd.f32 0.0, %v386
    %v388 = vpop.f32.mrb[0].mxu0
    %389 = vdwg.mxu0
    %v398 = vunpack.c.l.b16 %v267
    %v399 = vunpack.c.l.b16 %v268
    %v400 = vunpack.c.l.b16 %v269
    %v401 = vunpack.c.l.b16 %v270
    %v402 = vunpack.c.l.b16 %v271
    %v403 = vunpack.c.l.b16 %v272
    %v404 = vunpack.c.l.b16 %v273
    %v405 = vunpack.c.l.b16 %v274
    %v406 = vpack.c.b16 %v399, %v398
    %v407 = vpack.c.b16 %v401, %v400
    %v408 = vpack.c.b16 %v403, %v402
    %v409 = vpack.c.b16 %v405, %v404
    %v415 = vsel %vm312, %v263, 0
    %v418 = vsel %vm312, %v264, 0
    %v421 = vsel %vm312, %v265, 0
    %v424 = vsel %vm312, %v266, 0
    %426 = vmatprep.subr.bf16.mxu0 0
    %427 = vmatpush1.bf16.msra.mxu0 %v406
    %428 = vmatprep.subr.bf16.mxu0 0
    %429 = vmatpush1.bf16.msra.mxu0 %v407
    %430 = vmatprep.subr.bf16.mxu0 0
    %431 = vmatpush1.bf16.msra.mxu0 %v408
    %432 = vmatprep.subr.bf16.mxu0 0
    %433 = vmatpush1.bf16.msra.mxu0 %v409
    %434 = vmatprep.subr.bf16.mxu0 0
    %435 = vmatpush1.bf16.msra.mxu0 0
    %436 = vmatprep.subr.bf16.mxu0 0
    %437 = vmatpush1.bf16.msra.mxu0 0
    %438 = vmatprep.subr.bf16.mxu0 0
    %439 = vmatpush1.bf16.msra.mxu0 0
    %440 = vmatprep.subr.bf16.mxu0 0
    %441 = vmatpush1.bf16.msra.mxu0 0
    %442 = vmatprep.subr.bf16.mxu0 0
    %443 = vmatpush1.bf16.msra.mxu0 0
    %444 = vmatprep.subr.bf16.mxu0 0
    %445 = vmatpush1.bf16.msra.mxu0 0
    %446 = vmatprep.subr.bf16.mxu0 0
    %447 = vmatpush1.bf16.msra.mxu0 0
    %448 = vmatprep.subr.bf16.mxu0 0
    %449 = vmatpush1.bf16.msra.mxu0 0
    %450 = vmatprep.subr.bf16.mxu0 0
    %451 = vmatpush1.bf16.msra.mxu0 0
    %452 = vmatprep.subr.bf16.mxu0 0
    %453 = vmatpush1.bf16.msra.mxu0 0
    %454 = vmatprep.subr.bf16.mxu0 0
    %455 = vmatpush1.bf16.msra.mxu0 0
    %456 = vmatprep.subr.bf16.mxu0 0
    %457 = vmatpush1.bf16.msra.mxu0 0
    %458 = vmatprep.mubr.bf16.mxu0 0
    %459 = vmatmul.mubr.bf16.gmra.mrb[0].mxu0 %v415
    %v460 = vpop.f32.mrb[0].mxu0
    %v461 = vadd.f32 %v360, %v460
    %v462 = vpop.f32.mrb[0].mxu0
    %v463 = vpop.f32.mrb[0].mxu0
    %v464 = vadd.f32 %v363, %v463
    %v465 = vpop.f32.mrb[0].mxu0
    %466 = vmatprep.mubr.bf16.mxu0 0
    %467 = vmatmul.mubr.bf16.gmra.mrb[0].mxu0 %v418
    %v468 = vpop.f32.mrb[0].mxu0
    %v469 = vadd.f32 %v368, %v468
    %v470 = vpop.f32.mrb[0].mxu0
    %v471 = vpop.f32.mrb[0].mxu0
    %v472 = vadd.f32 %v371, %v471
    %v473 = vpop.f32.mrb[0].mxu0
    %474 = vmatprep.mubr.bf16.mxu0 0
    %475 = vmatmul.mubr.bf16.gmra.mrb[0].mxu0 %v421
    %v476 = vpop.f32.mrb[0].mxu0
    %v477 = vadd.f32 %v376, %v476
    %v478 = vpop.f32.mrb[0].mxu0
    %v479 = vpop.f32.mrb[0].mxu0
    %v480 = vadd.f32 %v379, %v479
    %v481 = vpop.f32.mrb[0].mxu0
    %482 = vmatprep.mubr.bf16.mxu0 0
    %483 = vmatmul.mubr.bf16.gmra.mrb[0].mxu0 %v424
    %v484 = vpop.f32.mrb[0].mxu0
    %v485 = vadd.f32 %v384, %v484
    %v486 = vpop.f32.mrb[0].mxu0
    %v487 = vpop.f32.mrb[0].mxu0
    %v488 = vadd.f32 %v387, %v487
    %v489 = vpop.f32.mrb[0].mxu0
    %490 = vdwg.mxu0
    %v491 = vpack.c.bf16 %v256, %v255
    %v492 = vpack.c.bf16 %v258, %v257
    %v493 = vpack.c.bf16 %v260, %v259
    %v494 = vpack.c.bf16 %v262, %v261
    %s495 = scalar_lea.vmem [#allocation5], 64
    %v496 = vld [vmem:[%s495] sm:$0xf]
    %v497 = vld [vmem:[%s495 + $0x4] sm:$0xf]
    %v498 = vld [vmem:[%s495 + $0x8] sm:$0xf]
    %v499 = vld [vmem:[%s495 + $0xc] sm:$0xf]
    %v500 = vld [vmem:[%s495 + $0x10] sm:$0xf]
    %v501 = vld [vmem:[%s495 + $0x14] sm:$0xf]
    %v502 = vld [vmem:[%s495 + $0x18] sm:$0xf]
    %v503 = vld [vmem:[%s495 + $0x1c] sm:$0xf]
    %v512 = vunpack.c.l.b16 %v496
    %v513 = vunpack.c.l.b16 %v497
    %v514 = vunpack.c.l.b16 %v498
    %v515 = vunpack.c.l.b16 %v499
    %v516 = vunpack.c.l.b16 %v500
    %v517 = vunpack.c.l.b16 %v501
    %v518 = vunpack.c.l.b16 %v502
    %v519 = vunpack.c.l.b16 %v503
    %v520 = vpack.c.b16 %v513, %v512
    %v521 = vpack.c.b16 %v515, %v514
    %v522 = vpack.c.b16 %v517, %v516
    %v523 = vpack.c.b16 %v519, %v518
    %v529 = vsel %vm312, %v491, 0
    %v532 = vsel %vm312, %v492, 0
    %v535 = vsel %vm312, %v493, 0
    %v538 = vsel %vm312, %v494, 0
    %540 = vmatprep.subr.bf16.mxu0 0
    %541 = vmatpush1.bf16.msra.mxu0 %v520
    %542 = vmatprep.subr.bf16.mxu0 0
    %543 = vmatpush1.bf16.msra.mxu0 %v521
    %544 = vmatprep.subr.bf16.mxu0 0
    %545 = vmatpush1.bf16.msra.mxu0 %v522
    %546 = vmatprep.subr.bf16.mxu0 0
    %547 = vmatpush1.bf16.msra.mxu0 %v523
    %548 = vmatprep.subr.bf16.mxu0 0
    %549 = vmatpush1.bf16.msra.mxu0 0
    %550 = vmatprep.subr.bf16.mxu0 0
    %551 = vmatpush1.bf16.msra.mxu0 0
    %552 = vmatprep.subr.bf16.mxu0 0
    %553 = vmatpush1.bf16.msra.mxu0 0
    %554 = vmatprep.subr.bf16.mxu0 0
    %555 = vmatpush1.bf16.msra.mxu0 0
    %556 = vmatprep.subr.bf16.mxu0 0
    %557 = vmatpush1.bf16.msra.mxu0 0
    %558 = vmatprep.subr.bf16.mxu0 0
    %559 = vmatpush1.bf16.msra.mxu0 0
    %560 = vmatprep.subr.bf16.mxu0 0
    %561 = vmatpush1.bf16.msra.mxu0 0
    %562 = vmatprep.subr.bf16.mxu0 0
    %563 = vmatpush1.bf16.msra.mxu0 0
    %564 = vmatprep.subr.bf16.mxu0 0
    %565 = vmatpush1.bf16.msra.mxu0 0
    %566 = vmatprep.subr.bf16.mxu0 0
    %567 = vmatpush1.bf16.msra.mxu0 0
    %568 = vmatprep.subr.bf16.mxu0 0
    %569 = vmatpush1.bf16.msra.mxu0 0
    %570 = vmatprep.subr.bf16.mxu0 0
    %571 = vmatpush1.bf16.msra.mxu0 0
    %572 = vmatprep.mubr.bf16.mxu0 0
    %573 = vmatmul.mubr.bf16.gmra.mrb[0].mxu0 %v529
    %v574 = vpop.f32.mrb[0].mxu0
    %v575 = vadd.f32 0.0, %v574
    %v576 = vpop.f32.mrb[0].mxu0
    %v577 = vpop.f32.mrb[0].mxu0
    %v578 = vadd.f32 0.0, %v577
    %v579 = vpop.f32.mrb[0].mxu0
    %580 = vmatprep.mubr.bf16.mxu0 0
    %581 = vmatmul.mubr.bf16.gmra.mrb[0].mxu0 %v532
    %v582 = vpop.f32.mrb[0].mxu0
    %v583 = vadd.f32 0.0, %v582
    %v584 = vpop.f32.mrb[0].mxu0
    %v585 = vpop.f32.mrb[0].mxu0
    %v586 = vadd.f32 0.0, %v585
    %v587 = vpop.f32.mrb[0].mxu0
    %588 = vmatprep.mubr.bf16.mxu0 0
    %589 = vmatmul.mubr.bf16.gmra.mrb[0].mxu0 %v535
    %v590 = vpop.f32.mrb[0].mxu0
    %v591 = vadd.f32 0.0, %v590
    %v592 = vpop.f32.mrb[0].mxu0
    %v593 = vpop.f32.mrb[0].mxu0
    %v594 = vadd.f32 0.0, %v593
    %v595 = vpop.f32.mrb[0].mxu0
    %596 = vmatprep.mubr.bf16.mxu0 0
    %597 = vmatmul.mubr.bf16.gmra.mrb[0].mxu0 %v538
    %v598 = vpop.f32.mrb[0].mxu0
    %v599 = vadd.f32 0.0, %v598
    %v600 = vpop.f32.mrb[0].mxu0
    %v601 = vpop.f32.mrb[0].mxu0
    %v602 = vadd.f32 0.0, %v601
    %v603 = vpop.f32.mrb[0].mxu0
    %604 = vdwg.mxu0
    %v605 = vadd.f32 %v461, %v575
    %v606 = vadd.f32 %v464, %v578
    %v607 = vadd.f32 %v469, %v583
    %v608 = vadd.f32 %v472, %v586
    %v609 = vadd.f32 %v477, %v591
    %v610 = vadd.f32 %v480, %v594
    %v611 = vadd.f32 %v485, %v599
    %v612 = vadd.f32 %v488, %v602
    %v613 = vld [vmem:[#allocation7] sm:$0x1]
    %v615 = vlaneseq
    %v616 = vshrl.u32 %v615, 7
    %v617 = vsub.s32 0, %v616
    %v618 = vrot.slane %v613, %v617
    %v620 = vadd.f32 %v605, %v618
    %v621 = vadd.f32 %v606, %v618
    %v622 = vadd.f32 %v607, %v618
    %v623 = vadd.f32 %v608, %v618
    %v624 = vadd.f32 %v609, %v618
    %v625 = vadd.f32 %v610, %v618
    %v626 = vadd.f32 %v611, %v618
    %v627 = vadd.f32 %v612, %v618
    %v628 = vmax.f32 %v620, 0.0
    %v629 = vmax.f32 %v621, 0.0
    %v630 = vmax.f32 %v622, 0.0
    %v631 = vmax.f32 %v623, 0.0
    %v632 = vmax.f32 %v624, 0.0
    %v633 = vmax.f32 %v625, 0.0
    %v634 = vmax.f32 %v626, 0.0
    %v635 = vmax.f32 %v627, 0.0
    %v636 = vmax.f32 %v628, %v629
    %v637 = vmax.f32 %v630, %v631
    %v638 = vmax.f32 %v632, %v633
    %v639 = vmax.f32 %v634, %v635
    %v640 = vpack.c.bf16 %v637, %v636
    %v641 = vpack.c.bf16 %v639, %v638
    %v642 = vld [vmem:[%s5] sm:$0xff]
    %v643 = vld [vmem:[%s5 + $0x8] sm:$0xff]
    %v644 = vld [vmem:[%s5 + $0x10] sm:$0xff]
    %v645 = vld [vmem:[%s5 + $0x18] sm:$0xff]
    %v646 = vld [vmem:[%s5 + $0x20] sm:$0xff]
    %v647 = vld [vmem:[%s5 + $0x28] sm:$0xff]
    %v648 = vld [vmem:[%s5 + $0x30] sm:$0xff]
    %v649 = vld [vmem:[%s5 + $0x38] sm:$0xff]
    %v650 = vld [vmem:[%s5 + $0x40] sm:$0xff]
    %v651 = vld [vmem:[%s5 + $0x48] sm:$0xff]
    %v652 = vld [vmem:[%s5 + $0x50] sm:$0xff]
    %v653 = vld [vmem:[%s5 + $0x58] sm:$0xff]
    %v654 = vld [vmem:[%s5 + $0x60] sm:$0xff]
    %v655 = vld [vmem:[%s5 + $0x68] sm:$0xff]
    %v656 = vld [vmem:[%s5 + $0x70] sm:$0xff]
    %v657 = vld [vmem:[%s5 + $0x78] sm:$0xff]
    %v658 = vld [vmem:[%s5 + $0x80] sm:$0xff]
    %v659 = vld [vmem:[%s5 + $0x88] sm:$0xff]
    %v660 = vld [vmem:[%s5 + $0x90] sm:$0xff]
    %v661 = vld [vmem:[%s5 + $0x98] sm:$0xff]
    %v662 = vld [vmem:[%s5 + $0xa0] sm:$0xff]
    %v663 = vld [vmem:[%s5 + $0xa8] sm:$0xff]
    %v664 = vld [vmem:[%s5 + $0xb0] sm:$0xff]
    %v665 = vld [vmem:[%s5 + $0xb8] sm:$0xff]
    %v666 = vld [vmem:[%s5 + $0xc0] sm:$0xff]
    %v667 = vld [vmem:[%s5 + $0xc8] sm:$0xff]
    %v668 = vld [vmem:[%s5 + $0xd0] sm:$0xff]
    %v669 = vld [vmem:[%s5 + $0xd8] sm:$0xff]
    %v670 = vld [vmem:[%s5 + $0xe0] sm:$0xff]
    %v671 = vld [vmem:[%s5 + $0xe8] sm:$0xff]
    %v672 = vld [vmem:[%s5 + $0xf0] sm:$0xff]
    %v673 = vld [vmem:[%s5 + $0xf8] sm:$0xff]
    %v674 = vld [vmem:[%s7] sm:$0xf]
    %v676 = vlaneseq
    %v677 = vshrl.u32 %v676, 7
    %v678 = vsub.s32 0, %v677
    %v679 = vrot.slane %v674, %v678
    %v680 = vlaneseq
    %v681 = vshrl.u32 %v680, 7
    %v682 = vsub.s32 1, %v681
    %v683 = vrot.slane %v674, %v682
    %v684 = vlaneseq
    %v685 = vshrl.u32 %v684, 7
    %v686 = vsub.s32 2, %v685
    %v687 = vrot.slane %v674, %v686
    %v688 = vlaneseq
    %v689 = vshrl.u32 %v688, 7
    %v690 = vsub.s32 3, %v689
    %v691 = vrot.slane %v674, %v690
    %v728 = vunpack.c.l.b16 %v642
    %v729 = vunpack.c.h.b16 %v642
    %v730 = vunpack.c.l.b16 %v643
    %v731 = vunpack.c.h.b16 %v643
    %v732 = vunpack.c.l.b16 %v644
    %v733 = vunpack.c.h.b16 %v644
    %v734 = vunpack.c.l.b16 %v645
    %v735 = vunpack.c.h.b16 %v645
    %v736 = vunpack.c.l.b16 %v646
    %v737 = vunpack.c.h.b16 %v646
    %v738 = vunpack.c.l.b16 %v647
    %v739 = vunpack.c.h.b16 %v647
    %v740 = vunpack.c.l.b16 %v648
    %v741 = vunpack.c.h.b16 %v648
    %v742 = vunpack.c.l.b16 %v649
    %v743 = vunpack.c.h.b16 %v649
    %v744 = vunpack.c.l.b16 %v650
    %v745 = vunpack.c.h.b16 %v650
    %v746 = vunpack.c.l.b16 %v651
    %v747 = vunpack.c.h.b16 %v651
    %v748 = vunpack.c.l.b16 %v652
    %v749 = vunpack.c.h.b16 %v652
    %v750 = vunpack.c.l.b16 %v653
    %v751 = vunpack.c.h.b16 %v653
    %v752 = vunpack.c.l.b16 %v654
    %v753 = vunpack.c.h.b16 %v654
    %v754 = vunpack.c.l.b16 %v655
    %v755 = vunpack.c.h.b16 %v655
    %v756 = vunpack.c.l.b16 %v656
    %v757 = vunpack.c.h.b16 %v656
    %v758 = vunpack.c.l.b16 %v657
    %v759 = vunpack.c.h.b16 %v657
    %v760 = vunpack.c.l.b16 %v658
    %v761 = vunpack.c.h.b16 %v658
    %v762 = vunpack.c.l.b16 %v659
    %v763 = vunpack.c.h.b16 %v659
    %v764 = vunpack.c.l.b16 %v660
    %v765 = vunpack.c.h.b16 %v660
    %v766 = vunpack.c.l.b16 %v661
    %v767 = vunpack.c.h.b16 %v661
    %v768 = vunpack.c.l.b16 %v662
    %v769 = vunpack.c.h.b16 %v662
    %v770 = vunpack.c.l.b16 %v663
    %v771 = vunpack.c.h.b16 %v663
    %v772 = vunpack.c.l.b16 %v664
    %v773 = vunpack.c.h.b16 %v664
    %v774 = vunpack.c.l.b16 %v665
    %v775 = vunpack.c.h.b16 %v665
    %v776 = vunpack.c.l.b16 %v666
    %v777 = vunpack.c.h.b16 %v666
    %v778 = vunpack.c.l.b16 %v667
    %v779 = vunpack.c.h.b16 %v667
    %v780 = vunpack.c.l.b16 %v668
    %v781 = vunpack.c.h.b16 %v668
    %v782 = vunpack.c.l.b16 %v669
    %v783 = vunpack.c.h.b16 %v669
    %v784 = vunpack.c.l.b16 %v670
    %v785 = vunpack.c.h.b16 %v670
    %v786 = vunpack.c.l.b16 %v671
    %v787 = vunpack.c.h.b16 %v671
    %v788 = vunpack.c.l.b16 %v672
    %v789 = vunpack.c.h.b16 %v672
    %v790 = vunpack.c.l.b16 %v673
    %v791 = vunpack.c.h.b16 %v673
    %v792 = vpack.c.b16 %v732, %v728
    %v793 = vpack.c.b16 %v733, %v729
    %v794 = vpack.c.b16 %v734, %v730
    %v795 = vpack.c.b16 %v735, %v731
    %v796 = vpack.c.b16 %v740, %v736
    %v797 = vpack.c.b16 %v741, %v737
    %v798 = vpack.c.b16 %v742, %v738
    %v799 = vpack.c.b16 %v743, %v739
    %v800 = vpack.c.b16 %v748, %v744
    %v801 = vpack.c.b16 %v749, %v745
    %v802 = vpack.c.b16 %v750, %v746
    %v803 = vpack.c.b16 %v751, %v747
    %v804 = vpack.c.b16 %v756, %v752
    %v805 = vpack.c.b16 %v757, %v753
    %v806 = vpack.c.b16 %v758, %v754
    %v807 = vpack.c.b16 %v759, %v755
    %v808 = vpack.c.b16 %v764, %v760
    %v809 = vpack.c.b16 %v765, %v761
    %v810 = vpack.c.b16 %v766, %v762
    %v811 = vpack.c.b16 %v767, %v763
    %v812 = vpack.c.b16 %v772, %v768
    %v813 = vpack.c.b16 %v773, %v769
    %v814 = vpack.c.b16 %v774, %v770
    %v815 = vpack.c.b16 %v775, %v771
    %v816 = vpack.c.b16 %v780, %v776
    %v817 = vpack.c.b16 %v781, %v777
    %v818 = vpack.c.b16 %v782, %v778
    %v819 = vpack.c.b16 %v783, %v779
    %v820 = vpack.c.b16 %v788, %v784
    %v821 = vpack.c.b16 %v789, %v785
    %v822 = vpack.c.b16 %v790, %v786
    %v823 = vpack.c.b16 %v791, %v787
    %856 = vmatprep.subr.bf16.mxu0 %v793
    %857 = vmatpush1.bf16.msra.mxu0 %v792
    %858 = vmatprep.subr.bf16.mxu0 %v797
    %859 = vmatpush1.bf16.msra.mxu0 %v796
    %860 = vmatprep.subr.bf16.mxu0 %v801
    %861 = vmatpush1.bf16.msra.mxu0 %v800
    %862 = vmatprep.subr.bf16.mxu0 %v805
    %863 = vmatpush1.bf16.msra.mxu0 %v804
    %864 = vmatprep.subr.bf16.mxu0 %v809
    %865 = vmatpush1.bf16.msra.mxu0 %v808
    %866 = vmatprep.subr.bf16.mxu0 %v813
    %867 = vmatpush1.bf16.msra.mxu0 %v812
    %868 = vmatprep.subr.bf16.mxu0 %v817
    %869 = vmatpush1.bf16.msra.mxu0 %v816
    %870 = vmatprep.subr.bf16.mxu0 %v821
    %871 = vmatpush1.bf16.msra.mxu0 %v820
    %872 = vmatprep.subr.bf16.mxu0 0
    %873 = vmatpush1.bf16.msra.mxu0 0
    %874 = vmatprep.subr.bf16.mxu0 0
    %875 = vmatpush1.bf16.msra.mxu0 0
    %876 = vmatprep.subr.bf16.mxu0 0
    %877 = vmatpush1.bf16.msra.mxu0 0
    %878 = vmatprep.subr.bf16.mxu0 0
    %879 = vmatpush1.bf16.msra.mxu0 0
    %880 = vmatprep.subr.bf16.mxu0 0
    %881 = vmatpush1.bf16.msra.mxu0 0
    %882 = vmatprep.subr.bf16.mxu0 0
    %883 = vmatpush1.bf16.msra.mxu0 0
    %884 = vmatprep.subr.bf16.mxu0 0
    %885 = vmatpush1.bf16.msra.mxu0 0
    %886 = vmatprep.subr.bf16.mxu0 0
    %887 = vmatpush1.bf16.msra.mxu0 0
    %888 = vmatprep.mubr.bf16.mxu0 0
    %889 = vmatmul.mubr.bf16.gmra.mrb[0].mxu0 %v640
    %v890 = vpop.f32.mrb[0].mxu0
    %v891 = vadd.f32 %v679, %v890
    %v892 = vpop.f32.mrb[0].mxu0
    %v893 = vadd.f32 %v683, %v892
    %v894 = vpop.f32.mrb[0].mxu0
    %v895 = vadd.f32 %v679, %v894
    %v896 = vpop.f32.mrb[0].mxu0
    %v897 = vadd.f32 %v683, %v896
    %898 = vmatprep.mubr.bf16.mxu0 0
    %899 = vmatmul.mubr.bf16.gmra.mrb[0].mxu0 %v641
    %v900 = vpop.f32.mrb[0].mxu0
    %v901 = vadd.f32 %v679, %v900
    %v902 = vpop.f32.mrb[0].mxu0
    %v903 = vadd.f32 %v683, %v902
    %v904 = vpop.f32.mrb[0].mxu0
    %v905 = vadd.f32 %v679, %v904
    %v906 = vpop.f32.mrb[0].mxu0
    %v907 = vadd.f32 %v683, %v906
    %908 = vdwg.mxu0
    %909 = vmatprep.subr.bf16.mxu0 %v795
    %910 = vmatpush1.bf16.msra.mxu0 %v794
    %911 = vmatprep.subr.bf16.mxu0 %v799
    %912 = vmatpush1.bf16.msra.mxu0 %v798
    %913 = vmatprep.subr.bf16.mxu0 %v803
    %914 = vmatpush1.bf16.msra.mxu0 %v802
    %915 = vmatprep.subr.bf16.mxu0 %v807
    %916 = vmatpush1.bf16.msra.mxu0 %v806
    %917 = vmatprep.subr.bf16.mxu0 %v811
    %918 = vmatpush1.bf16.msra.mxu0 %v810
    %919 = vmatprep.subr.bf16.mxu0 %v815
    %920 = vmatpush1.bf16.msra.mxu0 %v814
    %921 = vmatprep.subr.bf16.mxu0 %v819
    %922 = vmatpush1.bf16.msra.mxu0 %v818
    %923 = vmatprep.subr.bf16.mxu0 %v823
    %924 = vmatpush1.bf16.msra.mxu0 %v822
    %925 = vmatprep.subr.bf16.mxu0 0
    %926 = vmatpush1.bf16.msra.mxu0 0
    %927 = vmatprep.subr.bf16.mxu0 0
    %928 = vmatpush1.bf16.msra.mxu0 0
    %929 = vmatprep.subr.bf16.mxu0 0
    %930 = vmatpush1.bf16.msra.mxu0 0
    %931 = vmatprep.subr.bf16.mxu0 0
    %932 = vmatpush1.bf16.msra.mxu0 0
    %933 = vmatprep.subr.bf16.mxu0 0
    %934 = vmatpush1.bf16.msra.mxu0 0
    %935 = vmatprep.subr.bf16.mxu0 0
    %936 = vmatpush1.bf16.msra.mxu0 0
    %937 = vmatprep.subr.bf16.mxu0 0
    %938 = vmatpush1.bf16.msra.mxu0 0
    %939 = vmatprep.subr.bf16.mxu0 0
    %940 = vmatpush1.bf16.msra.mxu0 0
    %941 = vmatprep.mubr.bf16.mxu0 0
    %942 = vmatmul.mubr.bf16.gmra.mrb[0].mxu0 %v640
    %v943 = vpop.f32.mrb[0].mxu0
    %v944 = vadd.f32 %v687, %v943
    %v945 = vpop.f32.mrb[0].mxu0
    %v946 = vadd.f32 %v691, %v945
    %v947 = vpop.f32.mrb[0].mxu0
    %v948 = vadd.f32 %v687, %v947
    %v949 = vpop.f32.mrb[0].mxu0
    %v950 = vadd.f32 %v691, %v949
    %951 = vmatprep.mubr.bf16.mxu0 0
    %952 = vmatmul.mubr.bf16.gmra.mrb[0].mxu0 %v641
    %v953 = vpop.f32.mrb[0].mxu0
    %v954 = vadd.f32 %v687, %v953
    %v955 = vpop.f32.mrb[0].mxu0
    %v956 = vadd.f32 %v691, %v955
    %v957 = vpop.f32.mrb[0].mxu0
    %v958 = vadd.f32 %v687, %v957
    %v959 = vpop.f32.mrb[0].mxu0
    %v960 = vadd.f32 %v691, %v959
    %961 = vdwg.mxu0
    %962 = vst [vmem:[#allocation2] sm:$0xff] %v891
    %963 = vst [vmem:[#allocation2 + $0x8] sm:$0xff] %v893
    %964 = vst [vmem:[#allocation2 + $0x10] sm:$0xff] %v944
    %965 = vst [vmem:[#allocation2 + $0x18] sm:$0xff] %v946
    %966 = vst [vmem:[#allocation2 + $0x20] sm:$0xff] %v895
    %967 = vst [vmem:[#allocation2 + $0x28] sm:$0xff] %v897
    %968 = vst [vmem:[#allocation2 + $0x30] sm:$0xff] %v948
    %969 = vst [vmem:[#allocation2 + $0x38] sm:$0xff] %v950
    %970 = vst [vmem:[#allocation2 + $0x40] sm:$0xff] %v901
    %971 = vst [vmem:[#allocation2 + $0x48] sm:$0xff] %v903
    %972 = vst [vmem:[#allocation2 + $0x50] sm:$0xff] %v954
    %973 = vst [vmem:[#allocation2 + $0x58] sm:$0xff] %v956
    %974 = vst [vmem:[#allocation2 + $0x60] sm:$0xff] %v905
    %975 = vst [vmem:[#allocation2 + $0x68] sm:$0xff] %v907
    %976 = vst [vmem:[#allocation2 + $0x70] sm:$0xff] %v958
    %977 = vst [vmem:[#allocation2 + $0x78] sm:$0xff] %v960
    %v978 = vld [vmem:[#allocation8] sm:$0xff]
    %v979 = vld [vmem:[#allocation8 + $0x8] sm:$0xff]
    %v980 = vld [vmem:[#allocation8 + $0x10] sm:$0xff]
    %v981 = vld [vmem:[#allocation8 + $0x18] sm:$0xff]
    %v982 = vld [vmem:[#allocation8 + $0x20] sm:$0xff]
    %v983 = vld [vmem:[#allocation8 + $0x28] sm:$0xff]
    %v984 = vld [vmem:[#allocation8 + $0x30] sm:$0xff]
    %v985 = vld [vmem:[#allocation8 + $0x38] sm:$0xff]
    %v986 = vld [vmem:[#allocation8 + $0x40] sm:$0xff]
    %v987 = vld [vmem:[#allocation8 + $0x48] sm:$0xff]
    %v988 = vld [vmem:[#allocation8 + $0x50] sm:$0xff]
    %v989 = vld [vmem:[#allocation8 + $0x58] sm:$0xff]
    %v990 = vld [vmem:[#allocation8 + $0x60] sm:$0xff]
    %v991 = vld [vmem:[#allocation8 + $0x68] sm:$0xff]
    %v992 = vld [vmem:[#allocation8 + $0x70] sm:$0xff]
    %v993 = vld [vmem:[#allocation8 + $0x78] sm:$0xff]
    %v994 = vld [vmem:[#allocation8 + $0x80] sm:$0xff]
    %v995 = vld [vmem:[#allocation8 + $0x88] sm:$0xff]
    %v996 = vld [vmem:[#allocation8 + $0x90] sm:$0xff]
    %v997 = vld [vmem:[#allocation8 + $0x98] sm:$0xff]
    %v998 = vld [vmem:[#allocation8 + $0xa0] sm:$0xff]
    %v999 = vld [vmem:[#allocation8 + $0xa8] sm:$0xff]
    %v1000 = vld [vmem:[#allocation8 + $0xb0] sm:$0xff]
    %v1001 = vld [vmem:[#allocation8 + $0xb8] sm:$0xff]
    %v1002 = vld [vmem:[#allocation8 + $0xc0] sm:$0xff]
    %v1003 = vld [vmem:[#allocation8 + $0xc8] sm:$0xff]
    %v1004 = vld [vmem:[#allocation8 + $0xd0] sm:$0xff]
    %v1005 = vld [vmem:[#allocation8 + $0xd8] sm:$0xff]
    %v1006 = vld [vmem:[#allocation8 + $0xe0] sm:$0xff]
    %v1007 = vld [vmem:[#allocation8 + $0xe8] sm:$0xff]
    %v1008 = vld [vmem:[#allocation8 + $0xf0] sm:$0xff]
    %v1009 = vld [vmem:[#allocation8 + $0xf8] sm:$0xff]
    %v1010 = vld [vmem:[#allocation8 + $0x100] sm:$0xff]
    %v1011 = vld [vmem:[#allocation8 + $0x108] sm:$0xff]
    %v1012 = vld [vmem:[#allocation8 + $0x110] sm:$0xff]
    %v1013 = vld [vmem:[#allocation8 + $0x118] sm:$0xff]
    %v1014 = vld [vmem:[#allocation8 + $0x120] sm:$0xff]
    %v1015 = vld [vmem:[#allocation8 + $0x128] sm:$0xff]
    %v1016 = vld [vmem:[#allocation8 + $0x130] sm:$0xff]
    %v1017 = vld [vmem:[#allocation8 + $0x138] sm:$0xff]
    %v1018 = vld [vmem:[#allocation8 + $0x140] sm:$0xff]
    %v1019 = vld [vmem:[#allocation8 + $0x148] sm:$0xff]
    %v1020 = vld [vmem:[#allocation8 + $0x150] sm:$0xff]
    %v1021 = vld [vmem:[#allocation8 + $0x158] sm:$0xff]
    %v1022 = vld [vmem:[#allocation8 + $0x160] sm:$0xff]
    %v1023 = vld [vmem:[#allocation8 + $0x168] sm:$0xff]
    %v1024 = vld [vmem:[#allocation8 + $0x170] sm:$0xff]
    %v1025 = vld [vmem:[#allocation8 + $0x178] sm:$0xff]
    %v1026 = vld [vmem:[#allocation8 + $0x180] sm:$0xff]
    %v1027 = vld [vmem:[#allocation8 + $0x188] sm:$0xff]
    %v1028 = vld [vmem:[#allocation8 + $0x190] sm:$0xff]
    %v1029 = vld [vmem:[#allocation8 + $0x198] sm:$0xff]
    %v1030 = vld [vmem:[#allocation8 + $0x1a0] sm:$0xff]
    %v1031 = vld [vmem:[#allocation8 + $0x1a8] sm:$0xff]
    %v1032 = vld [vmem:[#allocation8 + $0x1b0] sm:$0xff]
    %v1033 = vld [vmem:[#allocation8 + $0x1b8] sm:$0xff]
    %v1034 = vld [vmem:[#allocation8 + $0x1c0] sm:$0xff]
    %v1035 = vld [vmem:[#allocation8 + $0x1c8] sm:$0xff]
    %v1036 = vld [vmem:[#allocation8 + $0x1d0] sm:$0xff]
    %v1037 = vld [vmem:[#allocation8 + $0x1d8] sm:$0xff]
    %v1038 = vld [vmem:[#allocation8 + $0x1e0] sm:$0xff]
    %v1039 = vld [vmem:[#allocation8 + $0x1e8] sm:$0xff]
    %v1040 = vld [vmem:[#allocation8 + $0x1f0] sm:$0xff]
    %v1041 = vld [vmem:[#allocation8 + $0x1f8] sm:$0xff]
    %v1042 = vld [vmem:[%s8] sm:$0xff]
    %v1043 = vld [vmem:[%s8 + $0x8] sm:$0xff]
    %v1044 = vld [vmem:[%s8 + $0x10] sm:$0xff]
    %v1045 = vld [vmem:[%s8 + $0x18] sm:$0xff]
    %v1046 = vld [vmem:[%s8 + $0x20] sm:$0xff]
    %v1047 = vld [vmem:[%s8 + $0x28] sm:$0xff]
    %v1048 = vld [vmem:[%s8 + $0x30] sm:$0xff]
    %v1049 = vld [vmem:[%s8 + $0x38] sm:$0xff]
    %v1050 = vld [vmem:[%s8 + $0x40] sm:$0xff]
    %v1051 = vld [vmem:[%s8 + $0x48] sm:$0xff]
    %v1052 = vld [vmem:[%s8 + $0x50] sm:$0xff]
    %v1053 = vld [vmem:[%s8 + $0x58] sm:$0xff]
    %v1054 = vld [vmem:[%s8 + $0x60] sm:$0xff]
    %v1055 = vld [vmem:[%s8 + $0x68] sm:$0xff]
    %v1056 = vld [vmem:[%s8 + $0x70] sm:$0xff]
    %v1057 = vld [vmem:[%s8 + $0x78] sm:$0xff]
    %v1058 = vld [vmem:[%s8 + $0x80] sm:$0xff]
    %v1059 = vld [vmem:[%s8 + $0x88] sm:$0xff]
    %v1060 = vld [vmem:[%s8 + $0x90] sm:$0xff]
    %v1061 = vld [vmem:[%s8 + $0x98] sm:$0xff]
    %v1062 = vld [vmem:[%s8 + $0xa0] sm:$0xff]
    %v1063 = vld [vmem:[%s8 + $0xa8] sm:$0xff]
    %v1064 = vld [vmem:[%s8 + $0xb0] sm:$0xff]
    %v1065 = vld [vmem:[%s8 + $0xb8] sm:$0xff]
    %v1066 = vld [vmem:[%s8 + $0xc0] sm:$0xff]
    %v1067 = vld [vmem:[%s8 + $0xc8] sm:$0xff]
    %v1068 = vld [vmem:[%s8 + $0xd0] sm:$0xff]
    %v1069 = vld [vmem:[%s8 + $0xd8] sm:$0xff]
    %v1070 = vld [vmem:[%s8 + $0xe0] sm:$0xff]
    %v1071 = vld [vmem:[%s8 + $0xe8] sm:$0xff]
    %v1072 = vld [vmem:[%s8 + $0xf0] sm:$0xff]
    %v1073 = vld [vmem:[%s8 + $0xf8] sm:$0xff]
    %v1074 = vld [vmem:[%s8 + $0x100] sm:$0xff]
    %v1075 = vld [vmem:[%s8 + $0x108] sm:$0xff]
    %v1076 = vld [vmem:[%s8 + $0x110] sm:$0xff]
    %v1077 = vld [vmem:[%s8 + $0x118] sm:$0xff]
    %v1078 = vld [vmem:[%s8 + $0x120] sm:$0xff]
    %v1079 = vld [vmem:[%s8 + $0x128] sm:$0xff]
    %v1080 = vld [vmem:[%s8 + $0x130] sm:$0xff]
    %v1081 = vld [vmem:[%s8 + $0x138] sm:$0xff]
    %v1082 = vld [vmem:[%s8 + $0x140] sm:$0xff]
    %v1083 = vld [vmem:[%s8 + $0x148] sm:$0xff]
    %v1084 = vld [vmem:[%s8 + $0x150] sm:$0xff]
    %v1085 = vld [vmem:[%s8 + $0x158] sm:$0xff]
    %v1086 = vld [vmem:[%s8 + $0x160] sm:$0xff]
    %v1087 = vld [vmem:[%s8 + $0x168] sm:$0xff]
    %v1088 = vld [vmem:[%s8 + $0x170] sm:$0xff]
    %v1089 = vld [vmem:[%s8 + $0x178] sm:$0xff]
    %v1090 = vld [vmem:[%s8 + $0x180] sm:$0xff]
    %v1091 = vld [vmem:[%s8 + $0x188] sm:$0xff]
    %v1092 = vld [vmem:[%s8 + $0x190] sm:$0xff]
    %v1093 = vld [vmem:[%s8 + $0x198] sm:$0xff]
    %v1094 = vld [vmem:[%s8 + $0x1a0] sm:$0xff]
    %v1095 = vld [vmem:[%s8 + $0x1a8] sm:$0xff]
    %v1096 = vld [vmem:[%s8 + $0x1b0] sm:$0xff]
    %v1097 = vld [vmem:[%s8 + $0x1b8] sm:$0xff]
    %v1098 = vld [vmem:[%s8 + $0x1c0] sm:$0xff]
    %v1099 = vld [vmem:[%s8 + $0x1c8] sm:$0xff]
    %v1100 = vld [vmem:[%s8 + $0x1d0] sm:$0xff]
    %v1101 = vld [vmem:[%s8 + $0x1d8] sm:$0xff]
    %v1102 = vld [vmem:[%s8 + $0x1e0] sm:$0xff]
    %v1103 = vld [vmem:[%s8 + $0x1e8] sm:$0xff]
    %v1104 = vld [vmem:[%s8 + $0x1f0] sm:$0xff]
    %v1105 = vld [vmem:[%s8 + $0x1f8] sm:$0xff]
    %v1106 = vld [vmem:[%s8 + $0x200] sm:$0xff]
    %v1107 = vld [vmem:[%s8 + $0x208] sm:$0xff]
    %v1108 = vld [vmem:[%s8 + $0x210] sm:$0xff]
    %v1109 = vld [vmem:[%s8 + $0x218] sm:$0xff]
    %v1110 = vld [vmem:[%s8 + $0x220] sm:$0xff]
    %v1111 = vld [vmem:[%s8 + $0x228] sm:$0xff]
    %v1112 = vld [vmem:[%s8 + $0x230] sm:$0xff]
    %v1113 = vld [vmem:[%s8 + $0x238] sm:$0xff]
    %v1114 = vld [vmem:[%s8 + $0x240] sm:$0xff]
    %v1115 = vld [vmem:[%s8 + $0x248] sm:$0xff]
    %v1116 = vld [vmem:[%s8 + $0x250] sm:$0xff]
    %v1117 = vld [vmem:[%s8 + $0x258] sm:$0xff]
    %v1118 = vld [vmem:[%s8 + $0x260] sm:$0xff]
    %v1119 = vld [vmem:[%s8 + $0x268] sm:$0xff]
    %v1120 = vld [vmem:[%s8 + $0x270] sm:$0xff]
    %v1121 = vld [vmem:[%s8 + $0x278] sm:$0xff]
    %v1122 = vld [vmem:[%s8 + $0x280] sm:$0xff]
    %v1123 = vld [vmem:[%s8 + $0x288] sm:$0xff]
    %v1124 = vld [vmem:[%s8 + $0x290] sm:$0xff]
    %v1125 = vld [vmem:[%s8 + $0x298] sm:$0xff]
    %v1126 = vld [vmem:[%s8 + $0x2a0] sm:$0xff]
    %v1127 = vld [vmem:[%s8 + $0x2a8] sm:$0xff]
    %v1128 = vld [vmem:[%s8 + $0x2b0] sm:$0xff]
    %v1129 = vld [vmem:[%s8 + $0x2b8] sm:$0xff]
    %v1130 = vld [vmem:[%s8 + $0x2c0] sm:$0xff]
    %v1131 = vld [vmem:[%s8 + $0x2c8] sm:$0xff]
    %v1132 = vld [vmem:[%s8 + $0x2d0] sm:$0xff]
    %v1133 = vld [vmem:[%s8 + $0x2d8] sm:$0xff]
    %v1134 = vld [vmem:[%s8 + $0x2e0] sm:$0xff]
    %v1135 = vld [vmem:[%s8 + $0x2e8] sm:$0xff]
    %v1136 = vld [vmem:[%s8 + $0x2f0] sm:$0xff]
    %v1137 = vld [vmem:[%s8 + $0x2f8] sm:$0xff]
    %v1138 = vld [vmem:[%s8 + $0x300] sm:$0xff]
    %v1139 = vld [vmem:[%s8 + $0x308] sm:$0xff]
    %v1140 = vld [vmem:[%s8 + $0x310] sm:$0xff]
    %v1141 = vld [vmem:[%s8 + $0x318] sm:$0xff]
    %v1142 = vld [vmem:[%s8 + $0x320] sm:$0xff]
    %v1143 = vld [vmem:[%s8 + $0x328] sm:$0xff]
    %v1144 = vld [vmem:[%s8 + $0x330] sm:$0xff]
    %v1145 = vld [vmem:[%s8 + $0x338] sm:$0xff]
    %v1146 = vld [vmem:[%s8 + $0x340] sm:$0xff]
    %v1147 = vld [vmem:[%s8 + $0x348] sm:$0xff]
    %v1148 = vld [vmem:[%s8 + $0x350] sm:$0xff]
    %v1149 = vld [vmem:[%s8 + $0x358] sm:$0xff]
    %v1150 = vld [vmem:[%s8 + $0x360] sm:$0xff]
    %v1151 = vld [vmem:[%s8 + $0x368] sm:$0xff]
    %v1152 = vld [vmem:[%s8 + $0x370] sm:$0xff]
    %v1153 = vld [vmem:[%s8 + $0x378] sm:$0xff]
    %v1154 = vld [vmem:[%s8 + $0x380] sm:$0xff]
    %v1155 = vld [vmem:[%s8 + $0x388] sm:$0xff]
    %v1156 = vld [vmem:[%s8 + $0x390] sm:$0xff]
    %v1157 = vld [vmem:[%s8 + $0x398] sm:$0xff]
    %v1158 = vld [vmem:[%s8 + $0x3a0] sm:$0xff]
    %v1159 = vld [vmem:[%s8 + $0x3a8] sm:$0xff]
    %v1160 = vld [vmem:[%s8 + $0x3b0] sm:$0xff]
    %v1161 = vld [vmem:[%s8 + $0x3b8] sm:$0xff]
    %v1162 = vld [vmem:[%s8 + $0x3c0] sm:$0xff]
    %v1163 = vld [vmem:[%s8 + $0x3c8] sm:$0xff]
    %v1164 = vld [vmem:[%s8 + $0x3d0] sm:$0xff]
    %v1165 = vld [vmem:[%s8 + $0x3d8] sm:$0xff]
    %v1166 = vld [vmem:[%s8 + $0x3e0] sm:$0xff]
    %v1167 = vld [vmem:[%s8 + $0x3e8] sm:$0xff]
    %v1168 = vld [vmem:[%s8 + $0x3f0] sm:$0xff]
    %v1169 = vld [vmem:[%s8 + $0x3f8] sm:$0xff]
    %v1170 = vld [vmem:[%s9] sm:$0xf]
    %v1172 = vlaneseq
    %v1173 = vshrl.u32 %v1172, 7
    %v1174 = vsub.s32 0, %v1173
    %v1175 = vrot.slane %v1170, %v1174
    %v1176 = vlaneseq
    %v1177 = vshrl.u32 %v1176, 7
    %v1178 = vsub.s32 1, %v1177
    %v1179 = vrot.slane %v1170, %v1178
    %v1180 = vlaneseq
    %v1181 = vshrl.u32 %v1180, 7
    %v1182 = vsub.s32 2, %v1181
    %v1183 = vrot.slane %v1170, %v1182
    %v1184 = vlaneseq
    %v1185 = vshrl.u32 %v1184, 7
    %v1186 = vsub.s32 3, %v1185
    %v1187 = vrot.slane %v1170, %v1186
    %v1192 = vld [vmem:[#allocation2] sm:$0xff]
    %v1193 = vld [vmem:[#allocation2 + $0x8] sm:$0xff]
    %v1194 = vld [vmem:[#allocation2 + $0x10] sm:$0xff]
    %v1195 = vld [vmem:[#allocation2 + $0x18] sm:$0xff]
    %1196 = vmatprep.subr.mxu0 %v979
    %1197 = vmatpush1.msra.mxu0 %v978
    %1198 = vmatprep.subr.mxu0 %v983
    %1199 = vmatpush1.msra.mxu0 %v982
    %1200 = vmatprep.subr.mxu0 %v987
    %1201 = vmatpush1.msra.mxu0 %v986
    %1202 = vmatprep.subr.mxu0 %v991
    %1203 = vmatpush1.msra.mxu0 %v990
    %1204 = vmatprep.subr.mxu0 %v995
    %1205 = vmatpush1.msra.mxu0 %v994
    %1206 = vmatprep.subr.mxu0 %v999
    %1207 = vmatpush1.msra.mxu0 %v998
    %1208 = vmatprep.subr.mxu0 %v1003
    %1209 = vmatpush1.msra.mxu0 %v1002
    %1210 = vmatprep.subr.mxu0 %v1007
    %1211 = vmatpush1.msra.mxu0 %v1006
    %1212 = vmatprep.subr.mxu0 %v1011
    %1213 = vmatpush1.msra.mxu0 %v1010
    %1214 = vmatprep.subr.mxu0 %v1015
    %1215 = vmatpush1.msra.mxu0 %v1014
    %1216 = vmatprep.subr.mxu0 %v1019
    %1217 = vmatpush1.msra.mxu0 %v1018
    %1218 = vmatprep.subr.mxu0 %v1023
    %1219 = vmatpush1.msra.mxu0 %v1022
    %1220 = vmatprep.subr.mxu0 %v1027
    %1221 = vmatpush1.msra.mxu0 %v1026
    %1222 = vmatprep.subr.mxu0 %v1031
    %1223 = vmatpush1.msra.mxu0 %v1030
    %1224 = vmatprep.subr.mxu0 %v1035
    %1225 = vmatpush1.msra.mxu0 %v1034
    %1226 = vmatprep.subr.mxu0 %v1039
    %1227 = vmatpush1.msra.mxu0 %v1038
    %1228 = vmatprep.subr.mxu0 0.0
    %1229 = vmatpush1.msra.mxu0 0.0
    %1230 = vmatprep.subr.mxu0 0.0
    %1231 = vmatpush1.msra.mxu0 0.0
    %1232 = vmatprep.subr.mxu0 0.0
    %1233 = vmatpush1.msra.mxu0 0.0
    %1234 = vmatprep.subr.mxu0 0.0
    %1235 = vmatpush1.msra.mxu0 0.0
    %1236 = vmatprep.subr.mxu0 0.0
    %1237 = vmatpush1.msra.mxu0 0.0
    %1238 = vmatprep.subr.mxu0 0.0
    %1239 = vmatpush1.msra.mxu0 0.0
    %1240 = vmatprep.subr.mxu0 0.0
    %1241 = vmatpush1.msra.mxu0 0.0
    %1242 = vmatprep.subr.mxu0 0.0
    %1243 = vmatpush1.msra.mxu0 0.0
    %1244 = vmatprep.subr.mxu0 0.0
    %1245 = vmatpush1.msra.mxu0 0.0
    %1246 = vmatprep.subr.mxu0 0.0
    %1247 = vmatpush1.msra.mxu0 0.0
    %1248 = vmatprep.subr.mxu0 0.0
    %1249 = vmatpush1.msra.mxu0 0.0
    %1250 = vmatprep.subr.mxu0 0.0
    %1251 = vmatpush1.msra.mxu0 0.0
    %1252 = vmatprep.subr.mxu0 0.0
    %1253 = vmatpush1.msra.mxu0 0.0
    %1254 = vmatprep.subr.mxu0 0.0
    %1255 = vmatpush1.msra.mxu0 0.0
    %1256 = vmatprep.subr.mxu0 0.0
    %1257 = vmatpush1.msra.mxu0 0.0
    %1258 = vmatprep.subr.mxu0 0.0
    %1259 = vmatpush1.msra.mxu0 0.0
    %1260 = vmatprep.mubr.f32.mxu0 0.0
    %1261 = vmatmul.mubr.f32.gmra.mrb[0].mxu0 0.0
    %v1262 = vpop.f32.mrb[0].mxu0
    %v1263 = vadd.f32 0.0, %v1262
    %v1264 = vpop.f32.mrb[0].mxu0
    %v1265 = vadd.f32 0.0, %v1264
    %1266 = vdwg.mxu0
    %1267 = vmatprep.subr.mxu0 %v981
    %1268 = vmatpush1.msra.mxu0 %v980
    %1269 = vmatprep.subr.mxu0 %v985
    %1270 = vmatpush1.msra.mxu0 %v984
    %1271 = vmatprep.subr.mxu0 %v989
    %1272 = vmatpush1.msra.mxu0 %v988
    %1273 = vmatprep.subr.mxu0 %v993
    %1274 = vmatpush1.msra.mxu0 %v992
    %1275 = vmatprep.subr.mxu0 %v997
    %1276 = vmatpush1.msra.mxu0 %v996
    %1277 = vmatprep.subr.mxu0 %v1001
    %1278 = vmatpush1.msra.mxu0 %v1000
    %1279 = vmatprep.subr.mxu0 %v1005
    %1280 = vmatpush1.msra.mxu0 %v1004
    %1281 = vmatprep.subr.mxu0 %v1009
    %1282 = vmatpush1.msra.mxu0 %v1008
    %1283 = vmatprep.subr.mxu0 %v1013
    %1284 = vmatpush1.msra.mxu0 %v1012
    %1285 = vmatprep.subr.mxu0 %v1017
    %1286 = vmatpush1.msra.mxu0 %v1016
    %1287 = vmatprep.subr.mxu0 %v1021
    %1288 = vmatpush1.msra.mxu0 %v1020
    %1289 = vmatprep.subr.mxu0 %v1025
    %1290 = vmatpush1.msra.mxu0 %v1024
    %1291 = vmatprep.subr.mxu0 %v1029
    %1292 = vmatpush1.msra.mxu0 %v1028
    %1293 = vmatprep.subr.mxu0 %v1033
    %1294 = vmatpush1.msra.mxu0 %v1032
    %1295 = vmatprep.subr.mxu0 %v1037
    %1296 = vmatpush1.msra.mxu0 %v1036
    %1297 = vmatprep.subr.mxu0 %v1041
    %1298 = vmatpush1.msra.mxu0 %v1040
    %1299 = vmatprep.subr.mxu0 0.0
    %1300 = vmatpush1.msra.mxu0 0.0
    %1301 = vmatprep.subr.mxu0 0.0
    %1302 = vmatpush1.msra.mxu0 0.0
    %1303 = vmatprep.subr.mxu0 0.0
    %1304 = vmatpush1.msra.mxu0 0.0
    %1305 = vmatprep.subr.mxu0 0.0
    %1306 = vmatpush1.msra.mxu0 0.0
    %1307 = vmatprep.subr.mxu0 0.0
    %1308 = vmatpush1.msra.mxu0 0.0
    %1309 = vmatprep.subr.mxu0 0.0
    %1310 = vmatpush1.msra.mxu0 0.0
    %1311 = vmatprep.subr.mxu0 0.0
    %1312 = vmatpush1.msra.mxu0 0.0
    %1313 = vmatprep.subr.mxu0 0.0
    %1314 = vmatpush1.msra.mxu0 0.0
    %1315 = vmatprep.subr.mxu0 0.0
    %1316 = vmatpush1.msra.mxu0 0.0
    %1317 = vmatprep.subr.mxu0 0.0
    %1318 = vmatpush1.msra.mxu0 0.0
    %1319 = vmatprep.subr.mxu0 0.0
    %1320 = vmatpush1.msra.mxu0 0.0
    %1321 = vmatprep.subr.mxu0 0.0
    %1322 = vmatpush1.msra.mxu0 0.0
    %1323 = vmatprep.subr.mxu0 0.0
    %1324 = vmatpush1.msra.mxu0 0.0
    %1325 = vmatprep.subr.mxu0 0.0
    %1326 = vmatpush1.msra.mxu0 0.0
    %1327 = vmatprep.subr.mxu0 0.0
    %1328 = vmatpush1.msra.mxu0 0.0
    %1329 = vmatprep.subr.mxu0 0.0
    %1330 = vmatpush1.msra.mxu0 0.0
    %1331 = vmatprep.mubr.f32.mxu0 0.0
    %1332 = vmatmul.mubr.f32.gmra.mrb[0].mxu0 0.0
    %v1333 = vpop.f32.mrb[0].mxu0
    %v1334 = vadd.f32 0.0, %v1333
    %v1335 = vpop.f32.mrb[0].mxu0
    %v1336 = vadd.f32 0.0, %v1335
    %1337 = vdwg.mxu0
    %v1338 = vadd.f32 %v1192, %v1263
    %v1339 = vadd.f32 %v1193, %v1265
    %v1340 = vadd.f32 %v1194, %v1334
    %v1341 = vadd.f32 %v1195, %v1336
    %v1342 = vxor.u32 %v1338, 2147483648
    %v1343 = vmul.f32 %v1342, 1.442695
    %v1344 = vpow.pop %v1343
    %v1345 = vadd.f32 %v1344, 1.0
    %v1346 = vrcp.pop %v1345
    %v1347 = vmul.f32 1.0, %v1346
    %v1348 = vxor.u32 %v1339, 2147483648
    %v1349 = vmul.f32 %v1348, 1.442695
    %v1350 = vpow.pop %v1349
    %v1351 = vadd.f32 %v1350, 1.0
    %v1352 = vrcp.pop %v1351
    %v1353 = vmul.f32 1.0, %v1352
    %v1354 = vtanh.pop %v1340
    %v1355 = vxor.u32 %v1341, 2147483648
    %v1356 = vmul.f32 %v1355, 1.442695
    %v1357 = vpow.pop %v1356
    %v1358 = vadd.f32 %v1357, 1.0
    %v1359 = vrcp.pop %v1358
    %v1360 = vmul.f32 1.0, %v1359
    %v1361 = vmul.f32 %v1353, 0.0
    %v1362 = vmul.f32 %v1347, %v1354
    %v1363 = vadd.f32 %v1361, %v1362
    %v1364 = vtanh.pop %v1363
    %v1365 = vmul.f32 %v1360, %v1364
    %1366 = vmatprep.subr.mxu0 %v1043
    %1367 = vmatpush1.msra.mxu0 %v1042
    %1368 = vmatprep.subr.mxu0 %v1047
    %1369 = vmatpush1.msra.mxu0 %v1046
    %1370 = vmatprep.subr.mxu0 %v1051
    %1371 = vmatpush1.msra.mxu0 %v1050
    %1372 = vmatprep.subr.mxu0 %v1055
    %1373 = vmatpush1.msra.mxu0 %v1054
    %1374 = vmatprep.subr.mxu0 %v1059
    %1375 = vmatpush1.msra.mxu0 %v1058
    %1376 = vmatprep.subr.mxu0 %v1063
    %1377 = vmatpush1.msra.mxu0 %v1062
    %1378 = vmatprep.subr.mxu0 %v1067
    %1379 = vmatpush1.msra.mxu0 %v1066
    %1380 = vmatprep.subr.mxu0 %v1071
    %1381 = vmatpush1.msra.mxu0 %v1070
    %1382 = vmatprep.subr.mxu0 %v1075
    %1383 = vmatpush1.msra.mxu0 %v1074
    %1384 = vmatprep.subr.mxu0 %v1079
    %1385 = vmatpush1.msra.mxu0 %v1078
    %1386 = vmatprep.subr.mxu0 %v1083
    %1387 = vmatpush1.msra.mxu0 %v1082
    %1388 = vmatprep.subr.mxu0 %v1087
    %1389 = vmatpush1.msra.mxu0 %v1086
    %1390 = vmatprep.subr.mxu0 %v1091
    %1391 = vmatpush1.msra.mxu0 %v1090
    %1392 = vmatprep.subr.mxu0 %v1095
    %1393 = vmatpush1.msra.mxu0 %v1094
    %1394 = vmatprep.subr.mxu0 %v1099
    %1395 = vmatpush1.msra.mxu0 %v1098
    %1396 = vmatprep.subr.mxu0 %v1103
    %1397 = vmatpush1.msra.mxu0 %v1102
    %1398 = vmatprep.subr.mxu0 %v1107
    %1399 = vmatpush1.msra.mxu0 %v1106
    %1400 = vmatprep.subr.mxu0 %v1111
    %1401 = vmatpush1.msra.mxu0 %v1110
    %1402 = vmatprep.subr.mxu0 %v1115
    %1403 = vmatpush1.msra.mxu0 %v1114
    %1404 = vmatprep.subr.mxu0 %v1119
    %1405 = vmatpush1.msra.mxu0 %v1118
    %1406 = vmatprep.subr.mxu0 %v1123
    %1407 = vmatpush1.msra.mxu0 %v1122
    %1408 = vmatprep.subr.mxu0 %v1127
    %1409 = vmatpush1.msra.mxu0 %v1126
    %1410 = vmatprep.subr.mxu0 %v1131
    %1411 = vmatpush1.msra.mxu0 %v1130
    %1412 = vmatprep.subr.mxu0 %v1135
    %1413 = vmatpush1.msra.mxu0 %v1134
    %1414 = vmatprep.subr.mxu0 %v1139
    %1415 = vmatpush1.msra.mxu0 %v1138
    %1416 = vmatprep.subr.mxu0 %v1143
    %1417 = vmatpush1.msra.mxu0 %v1142
    %1418 = vmatprep.subr.mxu0 %v1147
    %1419 = vmatpush1.msra.mxu0 %v1146
    %1420 = vmatprep.subr.mxu0 %v1151
    %1421 = vmatpush1.msra.mxu0 %v1150
    %1422 = vmatprep.subr.mxu0 %v1155
    %1423 = vmatpush1.msra.mxu0 %v1154
    %1424 = vmatprep.subr.mxu0 %v1159
    %1425 = vmatpush1.msra.mxu0 %v1158
    %1426 = vmatprep.subr.mxu0 %v1163
    %1427 = vmatpush1.msra.mxu0 %v1162
    %1428 = vmatprep.subr.mxu0 %v1167
    %1429 = vmatpush1.msra.mxu0 %v1166
    %1430 = vmatprep.mubr.f32.mxu0 0.0
    %1431 = vmatmul.mubr.f32.gmra.mrb[0].mxu0 %v1365
    %v1432 = vpop.f32.mrb[0].mxu0
    %v1433 = vadd.f32 %v1175, %v1432
    %v1434 = vpop.f32.mrb[0].mxu0
    %v1435 = vadd.f32 %v1179, %v1434
    %1436 = vdwg.mxu0
    %1437 = vmatprep.subr.mxu0 %v1045
    %1438 = vmatpush1.msra.mxu0 %v1044
    %1439 = vmatprep.subr.mxu0 %v1049
    %1440 = vmatpush1.msra.mxu0 %v1048
    %1441 = vmatprep.subr.mxu0 %v1053
    %1442 = vmatpush1.msra.mxu0 %v1052
    %1443 = vmatprep.subr.mxu0 %v1057
    %1444 = vmatpush1.msra.mxu0 %v1056
    %1445 = vmatprep.subr.mxu0 %v1061
    %1446 = vmatpush1.msra.mxu0 %v1060
    %1447 = vmatprep.subr.mxu0 %v1065
    %1448 = vmatpush1.msra.mxu0 %v1064
    %1449 = vmatprep.subr.mxu0 %v1069
    %1450 = vmatpush1.msra.mxu0 %v1068
    %1451 = vmatprep.subr.mxu0 %v1073
    %1452 = vmatpush1.msra.mxu0 %v1072
    %1453 = vmatprep.subr.mxu0 %v1077
    %1454 = vmatpush1.msra.mxu0 %v1076
    %1455 = vmatprep.subr.mxu0 %v1081
    %1456 = vmatpush1.msra.mxu0 %v1080
    %1457 = vmatprep.subr.mxu0 %v1085
    %1458 = vmatpush1.msra.mxu0 %v1084
    %1459 = vmatprep.subr.mxu0 %v1089
    %1460 = vmatpush1.msra.mxu0 %v1088
    %1461 = vmatprep.subr.mxu0 %v1093
    %1462 = vmatpush1.msra.mxu0 %v1092
    %1463 = vmatprep.subr.mxu0 %v1097
    %1464 = vmatpush1.msra.mxu0 %v1096
    %1465 = vmatprep.subr.mxu0 %v1101
    %1466 = vmatpush1.msra.mxu0 %v1100
    %1467 = vmatprep.subr.mxu0 %v1105
    %1468 = vmatpush1.msra.mxu0 %v1104
    %1469 = vmatprep.subr.mxu0 %v1109
    %1470 = vmatpush1.msra.mxu0 %v1108
    %1471 = vmatprep.subr.mxu0 %v1113
    %1472 = vmatpush1.msra.mxu0 %v1112
    %1473 = vmatprep.subr.mxu0 %v1117
    %1474 = vmatpush1.msra.mxu0 %v1116
    %1475 = vmatprep.subr.mxu0 %v1121
    %1476 = vmatpush1.msra.mxu0 %v1120
    %1477 = vmatprep.subr.mxu0 %v1125
    %1478 = vmatpush1.msra.mxu0 %v1124
    %1479 = vmatprep.subr.mxu0 %v1129
    %1480 = vmatpush1.msra.mxu0 %v1128
    %1481 = vmatprep.subr.mxu0 %v1133
    %1482 = vmatpush1.msra.mxu0 %v1132
    %1483 = vmatprep.subr.mxu0 %v1137
    %1484 = vmatpush1.msra.mxu0 %v1136
    %1485 = vmatprep.subr.mxu0 %v1141
    %1486 = vmatpush1.msra.mxu0 %v1140
    %1487 = vmatprep.subr.mxu0 %v1145
    %1488 = vmatpush1.msra.mxu0 %v1144
    %1489 = vmatprep.subr.mxu0 %v1149
    %1490 = vmatpush1.msra.mxu0 %v1148
    %1491 = vmatprep.subr.mxu0 %v1153
    %1492 = vmatpush1.msra.mxu0 %v1152
    %1493 = vmatprep.subr.mxu0 %v1157
    %1494 = vmatpush1.msra.mxu0 %v1156
    %1495 = vmatprep.subr.mxu0 %v1161
    %1496 = vmatpush1.msra.mxu0 %v1160
    %1497 = vmatprep.subr.mxu0 %v1165
    %1498 = vmatpush1.msra.mxu0 %v1164
    %1499 = vmatprep.subr.mxu0 %v1169
    %1500 = vmatpush1.msra.mxu0 %v1168
    %1501 = vmatprep.mubr.f32.mxu0 0.0
    %1502 = vmatmul.mubr.f32.gmra.mrb[0].mxu0 %v1365
    %v1503 = vpop.f32.mrb[0].mxu0
    %v1504 = vadd.f32 %v1183, %v1503
    %v1505 = vpop.f32.mrb[0].mxu0
    %v1506 = vadd.f32 %v1187, %v1505
    %1507 = vdwg.mxu0
    %v1508 = vxor.u32 %v1433, 2147483648
    %v1509 = vmul.f32 %v1508, 1.442695
    %v1510 = vpow.pop %v1509
    %v1511 = vadd.f32 %v1510, 1.0
    %v1512 = vrcp.pop %v1511
    %v1513 = vmul.f32 1.0, %v1512
    %v1514 = vxor.u32 %v1435, 2147483648
    %v1515 = vmul.f32 %v1514, 1.442695
    %v1516 = vpow.pop %v1515
    %v1517 = vadd.f32 %v1516, 1.0
    %v1518 = vrcp.pop %v1517
    %v1519 = vmul.f32 1.0, %v1518
    %v1520 = vtanh.pop %v1504
    %v1521 = vxor.u32 %v1506, 2147483648
    %v1522 = vmul.f32 %v1521, 1.442695
    %v1523 = vpow.pop %v1522
    %v1524 = vadd.f32 %v1523, 1.0
    %v1525 = vrcp.pop %v1524
    %v1526 = vmul.f32 1.0, %v1525
    %v1527 = vmul.f32 %v1519, 0.0
    %v1528 = vmul.f32 %v1513, %v1520
    %v1529 = vadd.f32 %v1527, %v1528
    %v1530 = vtanh.pop %v1529
    %v1531 = vmul.f32 %v1526, %v1530
    %s1532 = scalar_lea.vmem [#allocation2], 32
    %v1533 = vld [vmem:[%s1532] sm:$0xff]
    %v1534 = vld [vmem:[%s1532 + $0x8] sm:$0xff]
    %v1535 = vld [vmem:[%s1532 + $0x10] sm:$0xff]
    %v1536 = vld [vmem:[%s1532 + $0x18] sm:$0xff]
    %1537 = vmatprep.subr.mxu0 %v979
    %1538 = vmatpush1.msra.mxu0 %v978
    %1539 = vmatprep.subr.mxu0 %v983
    %1540 = vmatpush1.msra.mxu0 %v982
    %1541 = vmatprep.subr.mxu0 %v987
    %1542 = vmatpush1.msra.mxu0 %v986
    %1543 = vmatprep.subr.mxu0 %v991
    %1544 = vmatpush1.msra.mxu0 %v990
    %1545 = vmatprep.subr.mxu0 %v995
    %1546 = vmatpush1.msra.mxu0 %v994
    %1547 = vmatprep.subr.mxu0 %v999
    %1548 = vmatpush1.msra.mxu0 %v998
    %1549 = vmatprep.subr.mxu0 %v1003
    %1550 = vmatpush1.msra.mxu0 %v1002
    %1551 = vmatprep.subr.mxu0 %v1007
    %1552 = vmatpush1.msra.mxu0 %v1006
    %1553 = vmatprep.subr.mxu0 %v1011
    %1554 = vmatpush1.msra.mxu0 %v1010
    %1555 = vmatprep.subr.mxu0 %v1015
    %1556 = vmatpush1.msra.mxu0 %v1014
    %1557 = vmatprep.subr.mxu0 %v1019
    %1558 = vmatpush1.msra.mxu0 %v1018
    %1559 = vmatprep.subr.mxu0 %v1023
    %1560 = vmatpush1.msra.mxu0 %v1022
    %1561 = vmatprep.subr.mxu0 %v1027
    %1562 = vmatpush1.msra.mxu0 %v1026
    %1563 = vmatprep.subr.mxu0 %v1031
    %1564 = vmatpush1.msra.mxu0 %v1030
    %1565 = vmatprep.subr.mxu0 %v1035
    %1566 = vmatpush1.msra.mxu0 %v1034
    %1567 = vmatprep.subr.mxu0 %v1039
    %1568 = vmatpush1.msra.mxu0 %v1038
    %1569 = vmatprep.subr.mxu0 0.0
    %1570 = vmatpush1.msra.mxu0 0.0
    %1571 = vmatprep.subr.mxu0 0.0
    %1572 = vmatpush1.msra.mxu0 0.0
    %1573 = vmatprep.subr.mxu0 0.0
    %1574 = vmatpush1.msra.mxu0 0.0
    %1575 = vmatprep.subr.mxu0 0.0
    %1576 = vmatpush1.msra.mxu0 0.0
    %1577 = vmatprep.subr.mxu0 0.0
    %1578 = vmatpush1.msra.mxu0 0.0
    %1579 = vmatprep.subr.mxu0 0.0
    %1580 = vmatpush1.msra.mxu0 0.0
    %1581 = vmatprep.subr.mxu0 0.0
    %1582 = vmatpush1.msra.mxu0 0.0
    %1583 = vmatprep.subr.mxu0 0.0
    %1584 = vmatpush1.msra.mxu0 0.0
    %1585 = vmatprep.subr.mxu0 0.0
    %1586 = vmatpush1.msra.mxu0 0.0
    %1587 = vmatprep.subr.mxu0 0.0
    %1588 = vmatpush1.msra.mxu0 0.0
    %1589 = vmatprep.subr.mxu0 0.0
    %1590 = vmatpush1.msra.mxu0 0.0
    %1591 = vmatprep.subr.mxu0 0.0
    %1592 = vmatpush1.msra.mxu0 0.0
    %1593 = vmatprep.subr.mxu0 0.0
    %1594 = vmatpush1.msra.mxu0 0.0
    %1595 = vmatprep.subr.mxu0 0.0
    %1596 = vmatpush1.msra.mxu0 0.0
    %1597 = vmatprep.subr.mxu0 0.0
    %1598 = vmatpush1.msra.mxu0 0.0
    %1599 = vmatprep.subr.mxu0 0.0
    %1600 = vmatpush1.msra.mxu0 0.0
    %1601 = vmatprep.mubr.f32.mxu0 0.0
    %1602 = vmatmul.mubr.f32.gmra.mrb[0].mxu0 %v1365
    %v1603 = vpop.f32.mrb[0].mxu0
    %v1604 = vadd.f32 0.0, %v1603
    %v1605 = vpop.f32.mrb[0].mxu0
    %v1606 = vadd.f32 0.0, %v1605
    %1607 = vdwg.mxu0
    %1608 = vmatprep.subr.mxu0 %v981
    %1609 = vmatpush1.msra.mxu0 %v980
    %1610 = vmatprep.subr.mxu0 %v985
    %1611 = vmatpush1.msra.mxu0 %v984
    %1612 = vmatprep.subr.mxu0 %v989
    %1613 = vmatpush1.msra.mxu0 %v988
    %1614 = vmatprep.subr.mxu0 %v993
    %1615 = vmatpush1.msra.mxu0 %v992
    %1616 = vmatprep.subr.mxu0 %v997
    %1617 = vmatpush1.msra.mxu0 %v996
    %1618 = vmatprep.subr.mxu0 %v1001
    %1619 = vmatpush1.msra.mxu0 %v1000
    %1620 = vmatprep.subr.mxu0 %v1005
    %1621 = vmatpush1.msra.mxu0 %v1004
    %1622 = vmatprep.subr.mxu0 %v1009
    %1623 = vmatpush1.msra.mxu0 %v1008
    %1624 = vmatprep.subr.mxu0 %v1013
    %1625 = vmatpush1.msra.mxu0 %v1012
    %1626 = vmatprep.subr.mxu0 %v1017
    %1627 = vmatpush1.msra.mxu0 %v1016
    %1628 = vmatprep.subr.mxu0 %v1021
    %1629 = vmatpush1.msra.mxu0 %v1020
    %1630 = vmatprep.subr.mxu0 %v1025
    %1631 = vmatpush1.msra.mxu0 %v1024
    %1632 = vmatprep.subr.mxu0 %v1029
    %1633 = vmatpush1.msra.mxu0 %v1028
    %1634 = vmatprep.subr.mxu0 %v1033
    %1635 = vmatpush1.msra.mxu0 %v1032
    %1636 = vmatprep.subr.mxu0 %v1037
    %1637 = vmatpush1.msra.mxu0 %v1036
    %1638 = vmatprep.subr.mxu0 %v1041
    %1639 = vmatpush1.msra.mxu0 %v1040
    %1640 = vmatprep.subr.mxu0 0.0
    %1641 = vmatpush1.msra.mxu0 0.0
    %1642 = vmatprep.subr.mxu0 0.0
    %1643 = vmatpush1.msra.mxu0 0.0
    %1644 = vmatprep.subr.mxu0 0.0
    %1645 = vmatpush1.msra.mxu0 0.0
    %1646 = vmatprep.subr.mxu0 0.0
    %1647 = vmatpush1.msra.mxu0 0.0
    %1648 = vmatprep.subr.mxu0 0.0
    %1649 = vmatpush1.msra.mxu0 0.0
    %1650 = vmatprep.subr.mxu0 0.0
    %1651 = vmatpush1.msra.mxu0 0.0
    %1652 = vmatprep.subr.mxu0 0.0
    %1653 = vmatpush1.msra.mxu0 0.0
    %1654 = vmatprep.subr.mxu0 0.0
    %1655 = vmatpush1.msra.mxu0 0.0
    %1656 = vmatprep.subr.mxu0 0.0
    %1657 = vmatpush1.msra.mxu0 0.0
    %1658 = vmatprep.subr.mxu0 0.0
    %1659 = vmatpush1.msra.mxu0 0.0
    %1660 = vmatprep.subr.mxu0 0.0
    %1661 = vmatpush1.msra.mxu0 0.0
    %1662 = vmatprep.subr.mxu0 0.0
    %1663 = vmatpush1.msra.mxu0 0.0
    %1664 = vmatprep.subr.mxu0 0.0
    %1665 = vmatpush1.msra.mxu0 0.0
    %1666 = vmatprep.subr.mxu0 0.0
    %1667 = vmatpush1.msra.mxu0 0.0
    %1668 = vmatprep.subr.mxu0 0.0
    %1669 = vmatpush1.msra.mxu0 0.0
    %1670 = vmatprep.subr.mxu0 0.0
    %1671 = vmatpush1.msra.mxu0 0.0
    %1672 = vmatprep.mubr.f32.mxu0 0.0
    %1673 = vmatmul.mubr.f32.gmra.mrb[0].mxu0 %v1365
    %v1674 = vpop.f32.mrb[0].mxu0
    %v1675 = vadd.f32 0.0, %v1674
    %v1676 = vpop.f32.mrb[0].mxu0
    %v1677 = vadd.f32 0.0, %v1676
    %1678 = vdwg.mxu0
    %v1679 = vadd.f32 %v1533, %v1604
    %v1680 = vadd.f32 %v1534, %v1606
    %v1681 = vadd.f32 %v1535, %v1675
    %v1682 = vadd.f32 %v1536, %v1677
    %v1683 = vxor.u32 %v1679, 2147483648
    %v1684 = vmul.f32 %v1683, 1.442695
    %v1685 = vpow.pop %v1684
    %v1686 = vadd.f32 %v1685, 1.0
    %v1687 = vrcp.pop %v1686
    %v1688 = vmul.f32 1.0, %v1687
    %v1689 = vxor.u32 %v1680, 2147483648
    %v1690 = vmul.f32 %v1689, 1.442695
    %v1691 = vpow.pop %v1690
    %v1692 = vadd.f32 %v1691, 1.0
    %v1693 = vrcp.pop %v1692
    %v1694 = vmul.f32 1.0, %v1693
    %v1695 = vtanh.pop %v1681
    %v1696 = vxor.u32 %v1682, 2147483648
    %v1697 = vmul.f32 %v1696, 1.442695
    %v1698 = vpow.pop %v1697
    %v1699 = vadd.f32 %v1698, 1.0
    %v1700 = vrcp.pop %v1699
    %v1701 = vmul.f32 1.0, %v1700
    %v1702 = vmul.f32 %v1694, %v1363
    %v1703 = vmul.f32 %v1688, %v1695
    %v1704 = vadd.f32 %v1702, %v1703
    %v1705 = vtanh.pop %v1704
    %v1706 = vmul.f32 %v1701, %v1705
    %1707 = vmatprep.subr.mxu0 %v1043
    %1708 = vmatpush1.msra.mxu0 %v1042
    %1709 = vmatprep.subr.mxu0 %v1047
    %1710 = vmatpush1.msra.mxu0 %v1046
    %1711 = vmatprep.subr.mxu0 %v1051
    %1712 = vmatpush1.msra.mxu0 %v1050
    %1713 = vmatprep.subr.mxu0 %v1055
    %1714 = vmatpush1.msra.mxu0 %v1054
    %1715 = vmatprep.subr.mxu0 %v1059
    %1716 = vmatpush1.msra.mxu0 %v1058
    %1717 = vmatprep.subr.mxu0 %v1063
    %1718 = vmatpush1.msra.mxu0 %v1062
    %1719 = vmatprep.subr.mxu0 %v1067
    %1720 = vmatpush1.msra.mxu0 %v1066
    %1721 = vmatprep.subr.mxu0 %v1071
    %1722 = vmatpush1.msra.mxu0 %v1070
    %1723 = vmatprep.subr.mxu0 %v1075
    %1724 = vmatpush1.msra.mxu0 %v1074
    %1725 = vmatprep.subr.mxu0 %v1079
    %1726 = vmatpush1.msra.mxu0 %v1078
    %1727 = vmatprep.subr.mxu0 %v1083
    %1728 = vmatpush1.msra.mxu0 %v1082
    %1729 = vmatprep.subr.mxu0 %v1087
    %1730 = vmatpush1.msra.mxu0 %v1086
    %1731 = vmatprep.subr.mxu0 %v1091
    %1732 = vmatpush1.msra.mxu0 %v1090
    %1733 = vmatprep.subr.mxu0 %v1095
    %1734 = vmatpush1.msra.mxu0 %v1094
    %1735 = vmatprep.subr.mxu0 %v1099
    %1736 = vmatpush1.msra.mxu0 %v1098
    %1737 = vmatprep.subr.mxu0 %v1103
    %1738 = vmatpush1.msra.mxu0 %v1102
    %1739 = vmatprep.subr.mxu0 %v1107
    %1740 = vmatpush1.msra.mxu0 %v1106
    %1741 = vmatprep.subr.mxu0 %v1111
    %1742 = vmatpush1.msra.mxu0 %v1110
    %1743 = vmatprep.subr.mxu0 %v1115
    %1744 = vmatpush1.msra.mxu0 %v1114
    %1745 = vmatprep.subr.mxu0 %v1119
    %1746 = vmatpush1.msra.mxu0 %v1118
    %1747 = vmatprep.subr.mxu0 %v1123
    %1748 = vmatpush1.msra.mxu0 %v1122
    %1749 = vmatprep.subr.mxu0 %v1127
    %1750 = vmatpush1.msra.mxu0 %v1126
    %1751 = vmatprep.subr.mxu0 %v1131
    %1752 = vmatpush1.msra.mxu0 %v1130
    %1753 = vmatprep.subr.mxu0 %v1135
    %1754 = vmatpush1.msra.mxu0 %v1134
    %1755 = vmatprep.subr.mxu0 %v1139
    %1756 = vmatpush1.msra.mxu0 %v1138
    %1757 = vmatprep.subr.mxu0 %v1143
    %1758 = vmatpush1.msra.mxu0 %v1142
    %1759 = vmatprep.subr.mxu0 %v1147
    %1760 = vmatpush1.msra.mxu0 %v1146
    %1761 = vmatprep.subr.mxu0 %v1151
    %1762 = vmatpush1.msra.mxu0 %v1150
    %1763 = vmatprep.subr.mxu0 %v1155
    %1764 = vmatpush1.msra.mxu0 %v1154
    %1765 = vmatprep.subr.mxu0 %v1159
    %1766 = vmatpush1.msra.mxu0 %v1158
    %1767 = vmatprep.subr.mxu0 %v1163
    %1768 = vmatpush1.msra.mxu0 %v1162
    %1769 = vmatprep.subr.mxu0 %v1167
    %1770 = vmatpush1.msra.mxu0 %v1166
    %1771 = vmatprep.mubr.f32.mxu0 %v1531
    %1772 = vmatmul.mubr.f32.gmra.mrb[0].mxu0 %v1706
    %v1773 = vpop.f32.mrb[0].mxu0
    %v1774 = vadd.f32 %v1175, %v1773
    %v1775 = vpop.f32.mrb[0].mxu0
    %v1776 = vadd.f32 %v1179, %v1775
    %1777 = vdwg.mxu0
    %1778 = vmatprep.subr.mxu0 %v1045
    %1779 = vmatpush1.msra.mxu0 %v1044
    %1780 = vmatprep.subr.mxu0 %v1049
    %1781 = vmatpush1.msra.mxu0 %v1048
    %1782 = vmatprep.subr.mxu0 %v1053
    %1783 = vmatpush1.msra.mxu0 %v1052
    %1784 = vmatprep.subr.mxu0 %v1057
    %1785 = vmatpush1.msra.mxu0 %v1056
    %1786 = vmatprep.subr.mxu0 %v1061
    %1787 = vmatpush1.msra.mxu0 %v1060
    %1788 = vmatprep.subr.mxu0 %v1065
    %1789 = vmatpush1.msra.mxu0 %v1064
    %1790 = vmatprep.subr.mxu0 %v1069
    %1791 = vmatpush1.msra.mxu0 %v1068
    %1792 = vmatprep.subr.mxu0 %v1073
    %1793 = vmatpush1.msra.mxu0 %v1072
    %1794 = vmatprep.subr.mxu0 %v1077
    %1795 = vmatpush1.msra.mxu0 %v1076
    %1796 = vmatprep.subr.mxu0 %v1081
    %1797 = vmatpush1.msra.mxu0 %v1080
    %1798 = vmatprep.subr.mxu0 %v1085
    %1799 = vmatpush1.msra.mxu0 %v1084
    %1800 = vmatprep.subr.mxu0 %v1089
    %1801 = vmatpush1.msra.mxu0 %v1088
    %1802 = vmatprep.subr.mxu0 %v1093
    %1803 = vmatpush1.msra.mxu0 %v1092
    %1804 = vmatprep.subr.mxu0 %v1097
    %1805 = vmatpush1.msra.mxu0 %v1096
    %1806 = vmatprep.subr.mxu0 %v1101
    %1807 = vmatpush1.msra.mxu0 %v1100
    %1808 = vmatprep.subr.mxu0 %v1105
    %1809 = vmatpush1.msra.mxu0 %v1104
    %1810 = vmatprep.subr.mxu0 %v1109
    %1811 = vmatpush1.msra.mxu0 %v1108
    %1812 = vmatprep.subr.mxu0 %v1113
    %1813 = vmatpush1.msra.mxu0 %v1112
    %1814 = vmatprep.subr.mxu0 %v1117
    %1815 = vmatpush1.msra.mxu0 %v1116
    %1816 = vmatprep.subr.mxu0 %v1121
    %1817 = vmatpush1.msra.mxu0 %v1120
    %1818 = vmatprep.subr.mxu0 %v1125
    %1819 = vmatpush1.msra.mxu0 %v1124
    %1820 = vmatprep.subr.mxu0 %v1129
    %1821 = vmatpush1.msra.mxu0 %v1128
    %1822 = vmatprep.subr.mxu0 %v1133
    %1823 = vmatpush1.msra.mxu0 %v1132
    %1824 = vmatprep.subr.mxu0 %v1137
    %1825 = vmatpush1.msra.mxu0 %v1136
    %1826 = vmatprep.subr.mxu0 %v1141
    %1827 = vmatpush1.msra.mxu0 %v1140
    %1828 = vmatprep.subr.mxu0 %v1145
    %1829 = vmatpush1.msra.mxu0 %v1144
    %1830 = vmatprep.subr.mxu0 %v1149
    %1831 = vmatpush1.msra.mxu0 %v1148
    %1832 = vmatprep.subr.mxu0 %v1153
    %1833 = vmatpush1.msra.mxu0 %v1152
    %1834 = vmatprep.subr.mxu0 %v1157
    %1835 = vmatpush1.msra.mxu0 %v1156
    %1836 = vmatprep.subr.mxu0 %v1161
    %1837 = vmatpush1.msra.mxu0 %v1160
    %1838 = vmatprep.subr.mxu0 %v1165
    %1839 = vmatpush1.msra.mxu0 %v1164
    %1840 = vmatprep.subr.mxu0 %v1169
    %1841 = vmatpush1.msra.mxu0 %v1168
    %1842 = vmatprep.mubr.f32.mxu0 %v1531
    %1843 = vmatmul.mubr.f32.gmra.mrb[0].mxu0 %v1706
    %v1844 = vpop.f32.mrb[0].mxu0
    %v1845 = vadd.f32 %v1183, %v1844
    %v1846 = vpop.f32.mrb[0].mxu0
    %v1847 = vadd.f32 %v1187, %v1846
    %1848 = vdwg.mxu0
    %v1849 = vxor.u32 %v1774, 2147483648
    %v1850 = vmul.f32 %v1849, 1.442695
    %v1851 = vpow.pop %v1850
    %v1852 = vadd.f32 %v1851, 1.0
    %v1853 = vrcp.pop %v1852
    %v1854 = vmul.f32 1.0, %v1853
    %v1855 = vxor.u32 %v1776, 2147483648
    %v1856 = vmul.f32 %v1855, 1.442695
    %v1857 = vpow.pop %v1856
    %v1858 = vadd.f32 %v1857, 1.0
    %v1859 = vrcp.pop %v1858
    %v1860 = vmul.f32 1.0, %v1859
    %v1861 = vtanh.pop %v1845
    %v1862 = vxor.u32 %v1847, 2147483648
    %v1863 = vmul.f32 %v1862, 1.442695
    %v1864 = vpow.pop %v1863
    %v1865 = vadd.f32 %v1864, 1.0
    %v1866 = vrcp.pop %v1865
    %v1867 = vmul.f32 1.0, %v1866
    %v1868 = vmul.f32 %v1860, %v1529
    %v1869 = vmul.f32 %v1854, %v1861
    %v1870 = vadd.f32 %v1868, %v1869
    %v1871 = vtanh.pop %v1870
    %v1872 = vmul.f32 %v1867, %v1871
    %s1873 = scalar_lea.vmem [#allocation2], 64
    %v1874 = vld [vmem:[%s1873] sm:$0xff]
    %v1875 = vld [vmem:[%s1873 + $0x8] sm:$0xff]
    %v1876 = vld [vmem:[%s1873 + $0x10] sm:$0xff]
    %v1877 = vld [vmem:[%s1873 + $0x18] sm:$0xff]
    %1878 = vmatprep.subr.mxu0 %v979
    %1879 = vmatpush1.msra.mxu0 %v978
    %1880 = vmatprep.subr.mxu0 %v983
    %1881 = vmatpush1.msra.mxu0 %v982
    %1882 = vmatprep.subr.mxu0 %v987
    %1883 = vmatpush1.msra.mxu0 %v986
    %1884 = vmatprep.subr.mxu0 %v991
    %1885 = vmatpush1.msra.mxu0 %v990
    %1886 = vmatprep.subr.mxu0 %v995
    %1887 = vmatpush1.msra.mxu0 %v994
    %1888 = vmatprep.subr.mxu0 %v999
    %1889 = vmatpush1.msra.mxu0 %v998
    %1890 = vmatprep.subr.mxu0 %v1003
    %1891 = vmatpush1.msra.mxu0 %v1002
    %1892 = vmatprep.subr.mxu0 %v1007
    %1893 = vmatpush1.msra.mxu0 %v1006
    %1894 = vmatprep.subr.mxu0 %v1011
    %1895 = vmatpush1.msra.mxu0 %v1010
    %1896 = vmatprep.subr.mxu0 %v1015
    %1897 = vmatpush1.msra.mxu0 %v1014
    %1898 = vmatprep.subr.mxu0 %v1019
    %1899 = vmatpush1.msra.mxu0 %v1018
    %1900 = vmatprep.subr.mxu0 %v1023
    %1901 = vmatpush1.msra.mxu0 %v1022
    %1902 = vmatprep.subr.mxu0 %v1027
    %1903 = vmatpush1.msra.mxu0 %v1026
    %1904 = vmatprep.subr.mxu0 %v1031
    %1905 = vmatpush1.msra.mxu0 %v1030
    %1906 = vmatprep.subr.mxu0 %v1035
    %1907 = vmatpush1.msra.mxu0 %v1034
    %1908 = vmatprep.subr.mxu0 %v1039
    %1909 = vmatpush1.msra.mxu0 %v1038
    %1910 = vmatprep.subr.mxu0 0.0
    %1911 = vmatpush1.msra.mxu0 0.0
    %1912 = vmatprep.subr.mxu0 0.0
    %1913 = vmatpush1.msra.mxu0 0.0
    %1914 = vmatprep.subr.mxu0 0.0
    %1915 = vmatpush1.msra.mxu0 0.0
    %1916 = vmatprep.subr.mxu0 0.0
    %1917 = vmatpush1.msra.mxu0 0.0
    %1918 = vmatprep.subr.mxu0 0.0
    %1919 = vmatpush1.msra.mxu0 0.0
    %1920 = vmatprep.subr.mxu0 0.0
    %1921 = vmatpush1.msra.mxu0 0.0
    %1922 = vmatprep.subr.mxu0 0.0
    %1923 = vmatpush1.msra.mxu0 0.0
    %1924 = vmatprep.subr.mxu0 0.0
    %1925 = vmatpush1.msra.mxu0 0.0
    %1926 = vmatprep.subr.mxu0 0.0
    %1927 = vmatpush1.msra.mxu0 0.0
    %1928 = vmatprep.subr.mxu0 0.0
    %1929 = vmatpush1.msra.mxu0 0.0
    %1930 = vmatprep.subr.mxu0 0.0
    %1931 = vmatpush1.msra.mxu0 0.0
    %1932 = vmatprep.subr.mxu0 0.0
    %1933 = vmatpush1.msra.mxu0 0.0
    %1934 = vmatprep.subr.mxu0 0.0
    %1935 = vmatpush1.msra.mxu0 0.0
    %1936 = vmatprep.subr.mxu0 0.0
    %1937 = vmatpush1.msra.mxu0 0.0
    %1938 = vmatprep.subr.mxu0 0.0
    %1939 = vmatpush1.msra.mxu0 0.0
    %1940 = vmatprep.subr.mxu0 0.0
    %1941 = vmatpush1.msra.mxu0 0.0
    %1942 = vmatprep.mubr.f32.mxu0 0.0
    %1943 = vmatmul.mubr.f32.gmra.mrb[0].mxu0 %v1706
    %v1944 = vpop.f32.mrb[0].mxu0
    %v1945 = vadd.f32 0.0, %v1944
    %v1946 = vpop.f32.mrb[0].mxu0
    %v1947 = vadd.f32 0.0, %v1946
    %1948 = vdwg.mxu0
    %1949 = vmatprep.subr.mxu0 %v981
    %1950 = vmatpush1.msra.mxu0 %v980
    %1951 = vmatprep.subr.mxu0 %v985
    %1952 = vmatpush1.msra.mxu0 %v984
    %1953 = vmatprep.subr.mxu0 %v989
    %1954 = vmatpush1.msra.mxu0 %v988
    %1955 = vmatprep.subr.mxu0 %v993
    %1956 = vmatpush1.msra.mxu0 %v992
    %1957 = vmatprep.subr.mxu0 %v997
    %1958 = vmatpush1.msra.mxu0 %v996
    %1959 = vmatprep.subr.mxu0 %v1001
    %1960 = vmatpush1.msra.mxu0 %v1000
    %1961 = vmatprep.subr.mxu0 %v1005
    %1962 = vmatpush1.msra.mxu0 %v1004
    %1963 = vmatprep.subr.mxu0 %v1009
    %1964 = vmatpush1.msra.mxu0 %v1008
    %1965 = vmatprep.subr.mxu0 %v1013
    %1966 = vmatpush1.msra.mxu0 %v1012
    %1967 = vmatprep.subr.mxu0 %v1017
    %1968 = vmatpush1.msra.mxu0 %v1016
    %1969 = vmatprep.subr.mxu0 %v1021
    %1970 = vmatpush1.msra.mxu0 %v1020
    %1971 = vmatprep.subr.mxu0 %v1025
    %1972 = vmatpush1.msra.mxu0 %v1024
    %1973 = vmatprep.subr.mxu0 %v1029
    %1974 = vmatpush1.msra.mxu0 %v1028
    %1975 = vmatprep.subr.mxu0 %v1033
    %1976 = vmatpush1.msra.mxu0 %v1032
    %1977 = vmatprep.subr.mxu0 %v1037
    %1978 = vmatpush1.msra.mxu0 %v1036
    %1979 = vmatprep.subr.mxu0 %v1041
    %1980 = vmatpush1.msra.mxu0 %v1040
    %1981 = vmatprep.subr.mxu0 0.0
    %1982 = vmatpush1.msra.mxu0 0.0
    %1983 = vmatprep.subr.mxu0 0.0
    %1984 = vmatpush1.msra.mxu0 0.0
    %1985 = vmatprep.subr.mxu0 0.0
    %1986 = vmatpush1.msra.mxu0 0.0
    %1987 = vmatprep.subr.mxu0 0.0
    %1988 = vmatpush1.msra.mxu0 0.0
    %1989 = vmatprep.subr.mxu0 0.0
    %1990 = vmatpush1.msra.mxu0 0.0
    %1991 = vmatprep.subr.mxu0 0.0
    %1992 = vmatpush1.msra.mxu0 0.0
    %1993 = vmatprep.subr.mxu0 0.0
    %1994 = vmatpush1.msra.mxu0 0.0
    %1995 = vmatprep.subr.mxu0 0.0
    %1996 = vmatpush1.msra.mxu0 0.0
    %1997 = vmatprep.subr.mxu0 0.0
    %1998 = vmatpush1.msra.mxu0 0.0
    %1999 = vmatprep.subr.mxu0 0.0
    %2000 = vmatpush1.msra.mxu0 0.0
    %2001 = vmatprep.subr.mxu0 0.0
    %2002 = vmatpush1.msra.mxu0 0.0
    %2003 = vmatprep.subr.mxu0 0.0
    %2004 = vmatpush1.msra.mxu0 0.0
    %2005 = vmatprep.subr.mxu0 0.0
    %2006 = vmatpush1.msra.mxu0 0.0
    %2007 = vmatprep.subr.mxu0 0.0
    %2008 = vmatpush1.msra.mxu0 0.0
    %2009 = vmatprep.subr.mxu0 0.0
    %2010 = vmatpush1.msra.mxu0 0.0
    %2011 = vmatprep.subr.mxu0 0.0
    %2012 = vmatpush1.msra.mxu0 0.0
    %2013 = vmatprep.mubr.f32.mxu0 0.0
    %2014 = vmatmul.mubr.f32.gmra.mrb[0].mxu0 %v1706
    %v2015 = vpop.f32.mrb[0].mxu0
    %v2016 = vadd.f32 0.0, %v2015
    %v2017 = vpop.f32.mrb[0].mxu0
    %v2018 = vadd.f32 0.0, %v2017
    %2019 = vdwg.mxu0
    %v2020 = vadd.f32 %v1874, %v1945
    %v2021 = vadd.f32 %v1875, %v1947
    %v2022 = vadd.f32 %v1876, %v2016
    %v2023 = vadd.f32 %v1877, %v2018
    %v2024 = vxor.u32 %v2020, 2147483648
    %v2025 = vmul.f32 %v2024, 1.442695
    %v2026 = vpow.pop %v2025
    %v2027 = vadd.f32 %v2026, 1.0
    %v2028 = vrcp.pop %v2027
    %v2029 = vmul.f32 1.0, %v2028
    %v2030 = vxor.u32 %v2021, 2147483648
    %v2031 = vmul.f32 %v2030, 1.442695
    %v2032 = vpow.pop %v2031
    %v2033 = vadd.f32 %v2032, 1.0
    %v2034 = vrcp.pop %v2033
    %v2035 = vmul.f32 1.0, %v2034
    %v2036 = vtanh.pop %v2022
    %v2037 = vxor.u32 %v2023, 2147483648
    %v2038 = vmul.f32 %v2037, 1.442695
    %v2039 = vpow.pop %v2038
    %v2040 = vadd.f32 %v2039, 1.0
    %v2041 = vrcp.pop %v2040
    %v2042 = vmul.f32 1.0, %v2041
    %v2043 = vmul.f32 %v2035, %v1704
    %v2044 = vmul.f32 %v2029, %v2036
    %v2045 = vadd.f32 %v2043, %v2044
    %v2046 = vtanh.pop %v2045
    %v2047 = vmul.f32 %v2042, %v2046
    %2048 = vmatprep.subr.mxu0 %v1043
    %2049 = vmatpush1.msra.mxu0 %v1042
    %2050 = vmatprep.subr.mxu0 %v1047
    %2051 = vmatpush1.msra.mxu0 %v1046
    %2052 = vmatprep.subr.mxu0 %v1051
    %2053 = vmatpush1.msra.mxu0 %v1050
    %2054 = vmatprep.subr.mxu0 %v1055
    %2055 = vmatpush1.msra.mxu0 %v1054
    %2056 = vmatprep.subr.mxu0 %v1059
    %2057 = vmatpush1.msra.mxu0 %v1058
    %2058 = vmatprep.subr.mxu0 %v1063
    %2059 = vmatpush1.msra.mxu0 %v1062
    %2060 = vmatprep.subr.mxu0 %v1067
    %2061 = vmatpush1.msra.mxu0 %v1066
    %2062 = vmatprep.subr.mxu0 %v1071
    %2063 = vmatpush1.msra.mxu0 %v1070
    %2064 = vmatprep.subr.mxu0 %v1075
    %2065 = vmatpush1.msra.mxu0 %v1074
    %2066 = vmatprep.subr.mxu0 %v1079
    %2067 = vmatpush1.msra.mxu0 %v1078
    %2068 = vmatprep.subr.mxu0 %v1083
    %2069 = vmatpush1.msra.mxu0 %v1082
    %2070 = vmatprep.subr.mxu0 %v1087
    %2071 = vmatpush1.msra.mxu0 %v1086
    %2072 = vmatprep.subr.mxu0 %v1091
    %2073 = vmatpush1.msra.mxu0 %v1090
    %2074 = vmatprep.subr.mxu0 %v1095
    %2075 = vmatpush1.msra.mxu0 %v1094
    %2076 = vmatprep.subr.mxu0 %v1099
    %2077 = vmatpush1.msra.mxu0 %v1098
    %2078 = vmatprep.subr.mxu0 %v1103
    %2079 = vmatpush1.msra.mxu0 %v1102
    %2080 = vmatprep.subr.mxu0 %v1107
    %2081 = vmatpush1.msra.mxu0 %v1106
    %2082 = vmatprep.subr.mxu0 %v1111
    %2083 = vmatpush1.msra.mxu0 %v1110
    %2084 = vmatprep.subr.mxu0 %v1115
    %2085 = vmatpush1.msra.mxu0 %v1114
    %2086 = vmatprep.subr.mxu0 %v1119
    %2087 = vmatpush1.msra.mxu0 %v1118
    %2088 = vmatprep.subr.mxu0 %v1123
    %2089 = vmatpush1.msra.mxu0 %v1122
    %2090 = vmatprep.subr.mxu0 %v1127
    %2091 = vmatpush1.msra.mxu0 %v1126
    %2092 = vmatprep.subr.mxu0 %v1131
    %2093 = vmatpush1.msra.mxu0 %v1130
    %2094 = vmatprep.subr.mxu0 %v1135
    %2095 = vmatpush1.msra.mxu0 %v1134
    %2096 = vmatprep.subr.mxu0 %v1139
    %2097 = vmatpush1.msra.mxu0 %v1138
    %2098 = vmatprep.subr.mxu0 %v1143
    %2099 = vmatpush1.msra.mxu0 %v1142
    %2100 = vmatprep.subr.mxu0 %v1147
    %2101 = vmatpush1.msra.mxu0 %v1146
    %2102 = vmatprep.subr.mxu0 %v1151
    %2103 = vmatpush1.msra.mxu0 %v1150
    %2104 = vmatprep.subr.mxu0 %v1155
    %2105 = vmatpush1.msra.mxu0 %v1154
    %2106 = vmatprep.subr.mxu0 %v1159
    %2107 = vmatpush1.msra.mxu0 %v1158
    %2108 = vmatprep.subr.mxu0 %v1163
    %2109 = vmatpush1.msra.mxu0 %v1162
    %2110 = vmatprep.subr.mxu0 %v1167
    %2111 = vmatpush1.msra.mxu0 %v1166
    %2112 = vmatprep.mubr.f32.mxu0 %v1872
    %2113 = vmatmul.mubr.f32.gmra.mrb[0].mxu0 %v2047
    %v2114 = vpop.f32.mrb[0].mxu0
    %v2115 = vadd.f32 %v1175, %v2114
    %v2116 = vpop.f32.mrb[0].mxu0
    %v2117 = vadd.f32 %v1179, %v2116
    %2118 = vdwg.mxu0
    %2119 = vmatprep.subr.mxu0 %v1045
    %2120 = vmatpush1.msra.mxu0 %v1044
    %2121 = vmatprep.subr.mxu0 %v1049
    %2122 = vmatpush1.msra.mxu0 %v1048
    %2123 = vmatprep.subr.mxu0 %v1053
    %2124 = vmatpush1.msra.mxu0 %v1052
    %2125 = vmatprep.subr.mxu0 %v1057
    %2126 = vmatpush1.msra.mxu0 %v1056
    %2127 = vmatprep.subr.mxu0 %v1061
    %2128 = vmatpush1.msra.mxu0 %v1060
    %2129 = vmatprep.subr.mxu0 %v1065
    %2130 = vmatpush1.msra.mxu0 %v1064
    %2131 = vmatprep.subr.mxu0 %v1069
    %2132 = vmatpush1.msra.mxu0 %v1068
    %2133 = vmatprep.subr.mxu0 %v1073
    %2134 = vmatpush1.msra.mxu0 %v1072
    %2135 = vmatprep.subr.mxu0 %v1077
    %2136 = vmatpush1.msra.mxu0 %v1076
    %2137 = vmatprep.subr.mxu0 %v1081
    %2138 = vmatpush1.msra.mxu0 %v1080
    %2139 = vmatprep.subr.mxu0 %v1085
    %2140 = vmatpush1.msra.mxu0 %v1084
    %2141 = vmatprep.subr.mxu0 %v1089
    %2142 = vmatpush1.msra.mxu0 %v1088
    %2143 = vmatprep.subr.mxu0 %v1093
    %2144 = vmatpush1.msra.mxu0 %v1092
    %2145 = vmatprep.subr.mxu0 %v1097
    %2146 = vmatpush1.msra.mxu0 %v1096
    %2147 = vmatprep.subr.mxu0 %v1101
    %2148 = vmatpush1.msra.mxu0 %v1100
    %2149 = vmatprep.subr.mxu0 %v1105
    %2150 = vmatpush1.msra.mxu0 %v1104
    %2151 = vmatprep.subr.mxu0 %v1109
    %2152 = vmatpush1.msra.mxu0 %v1108
    %2153 = vmatprep.subr.mxu0 %v1113
    %2154 = vmatpush1.msra.mxu0 %v1112
    %2155 = vmatprep.subr.mxu0 %v1117
    %2156 = vmatpush1.msra.mxu0 %v1116
    %2157 = vmatprep.subr.mxu0 %v1121
    %2158 = vmatpush1.msra.mxu0 %v1120
    %2159 = vmatprep.subr.mxu0 %v1125
    %2160 = vmatpush1.msra.mxu0 %v1124
    %2161 = vmatprep.subr.mxu0 %v1129
    %2162 = vmatpush1.msra.mxu0 %v1128
    %2163 = vmatprep.subr.mxu0 %v1133
    %2164 = vmatpush1.msra.mxu0 %v1132
    %2165 = vmatprep.subr.mxu0 %v1137
    %2166 = vmatpush1.msra.mxu0 %v1136
    %2167 = vmatprep.subr.mxu0 %v1141
    %2168 = vmatpush1.msra.mxu0 %v1140
    %2169 = vmatprep.subr.mxu0 %v1145
    %2170 = vmatpush1.msra.mxu0 %v1144
    %2171 = vmatprep.subr.mxu0 %v1149
    %2172 = vmatpush1.msra.mxu0 %v1148
    %2173 = vmatprep.subr.mxu0 %v1153
    %2174 = vmatpush1.msra.mxu0 %v1152
    %2175 = vmatprep.subr.mxu0 %v1157
    %2176 = vmatpush1.msra.mxu0 %v1156
    %2177 = vmatprep.subr.mxu0 %v1161
    %2178 = vmatpush1.msra.mxu0 %v1160
    %2179 = vmatprep.subr.mxu0 %v1165
    %2180 = vmatpush1.msra.mxu0 %v1164
    %2181 = vmatprep.subr.mxu0 %v1169
    %2182 = vmatpush1.msra.mxu0 %v1168
    %2183 = vmatprep.mubr.f32.mxu0 %v1872
    %2184 = vmatmul.mubr.f32.gmra.mrb[0].mxu0 %v2047
    %v2185 = vpop.f32.mrb[0].mxu0
    %v2186 = vadd.f32 %v1183, %v2185
    %v2187 = vpop.f32.mrb[0].mxu0
    %v2188 = vadd.f32 %v1187, %v2187
    %2189 = vdwg.mxu0
    %v2190 = vxor.u32 %v2115, 2147483648
    %v2191 = vmul.f32 %v2190, 1.442695
    %v2192 = vpow.pop %v2191
    %v2193 = vadd.f32 %v2192, 1.0
    %v2194 = vrcp.pop %v2193
    %v2195 = vmul.f32 1.0, %v2194
    %v2196 = vxor.u32 %v2117, 2147483648
    %v2197 = vmul.f32 %v2196, 1.442695
    %v2198 = vpow.pop %v2197
    %v2199 = vadd.f32 %v2198, 1.0
    %v2200 = vrcp.pop %v2199
    %v2201 = vmul.f32 1.0, %v2200
    %v2202 = vtanh.pop %v2186
    %v2203 = vxor.u32 %v2188, 2147483648
    %v2204 = vmul.f32 %v2203, 1.442695
    %v2205 = vpow.pop %v2204
    %v2206 = vadd.f32 %v2205, 1.0
    %v2207 = vrcp.pop %v2206
    %v2208 = vmul.f32 1.0, %v2207
    %v2209 = vmul.f32 %v2201, %v1870
    %v2210 = vmul.f32 %v2195, %v2202
    %v2211 = vadd.f32 %v2209, %v2210
    %v2212 = vtanh.pop %v2211
    %v2213 = vmul.f32 %v2208, %v2212
    %s2214 = scalar_lea.vmem [#allocation2], 96
    %v2215 = vld [vmem:[%s2214] sm:$0xff]
    %v2216 = vld [vmem:[%s2214 + $0x8] sm:$0xff]
    %v2217 = vld [vmem:[%s2214 + $0x10] sm:$0xff]
    %v2218 = vld [vmem:[%s2214 + $0x18] sm:$0xff]
    %2219 = vmatprep.subr.mxu0 %v979
    %2220 = vmatpush1.msra.mxu0 %v978
    %2221 = vmatprep.subr.mxu0 %v983
    %2222 = vmatpush1.msra.mxu0 %v982
    %2223 = vmatprep.subr.mxu0 %v987
    %2224 = vmatpush1.msra.mxu0 %v986
    %2225 = vmatprep.subr.mxu0 %v991
    %2226 = vmatpush1.msra.mxu0 %v990
    %2227 = vmatprep.subr.mxu0 %v995
    %2228 = vmatpush1.msra.mxu0 %v994
    %2229 = vmatprep.subr.mxu0 %v999
    %2230 = vmatpush1.msra.mxu0 %v998
    %2231 = vmatprep.subr.mxu0 %v1003
    %2232 = vmatpush1.msra.mxu0 %v1002
    %2233 = vmatprep.subr.mxu0 %v1007
    %2234 = vmatpush1.msra.mxu0 %v1006
    %2235 = vmatprep.subr.mxu0 %v1011
    %2236 = vmatpush1.msra.mxu0 %v1010
    %2237 = vmatprep.subr.mxu0 %v1015
    %2238 = vmatpush1.msra.mxu0 %v1014
    %2239 = vmatprep.subr.mxu0 %v1019
    %2240 = vmatpush1.msra.mxu0 %v1018
    %2241 = vmatprep.subr.mxu0 %v1023
    %2242 = vmatpush1.msra.mxu0 %v1022
    %2243 = vmatprep.subr.mxu0 %v1027
    %2244 = vmatpush1.msra.mxu0 %v1026
    %2245 = vmatprep.subr.mxu0 %v1031
    %2246 = vmatpush1.msra.mxu0 %v1030
    %2247 = vmatprep.subr.mxu0 %v1035
    %2248 = vmatpush1.msra.mxu0 %v1034
    %2249 = vmatprep.subr.mxu0 %v1039
    %2250 = vmatpush1.msra.mxu0 %v1038
    %2251 = vmatprep.subr.mxu0 0.0
    %2252 = vmatpush1.msra.mxu0 0.0
    %2253 = vmatprep.subr.mxu0 0.0
    %2254 = vmatpush1.msra.mxu0 0.0
    %2255 = vmatprep.subr.mxu0 0.0
    %2256 = vmatpush1.msra.mxu0 0.0
    %2257 = vmatprep.subr.mxu0 0.0
    %2258 = vmatpush1.msra.mxu0 0.0
    %2259 = vmatprep.subr.mxu0 0.0
    %2260 = vmatpush1.msra.mxu0 0.0
    %2261 = vmatprep.subr.mxu0 0.0
    %2262 = vmatpush1.msra.mxu0 0.0
    %2263 = vmatprep.subr.mxu0 0.0
    %2264 = vmatpush1.msra.mxu0 0.0
    %2265 = vmatprep.subr.mxu0 0.0
    %2266 = vmatpush1.msra.mxu0 0.0
    %2267 = vmatprep.subr.mxu0 0.0
    %2268 = vmatpush1.msra.mxu0 0.0
    %2269 = vmatprep.subr.mxu0 0.0
    %2270 = vmatpush1.msra.mxu0 0.0
    %2271 = vmatprep.subr.mxu0 0.0
    %2272 = vmatpush1.msra.mxu0 0.0
    %2273 = vmatprep.subr.mxu0 0.0
    %2274 = vmatpush1.msra.mxu0 0.0
    %2275 = vmatprep.subr.mxu0 0.0
    %2276 = vmatpush1.msra.mxu0 0.0
    %2277 = vmatprep.subr.mxu0 0.0
    %2278 = vmatpush1.msra.mxu0 0.0
    %2279 = vmatprep.subr.mxu0 0.0
    %2280 = vmatpush1.msra.mxu0 0.0
    %2281 = vmatprep.subr.mxu0 0.0
    %2282 = vmatpush1.msra.mxu0 0.0
    %2283 = vmatprep.mubr.f32.mxu0 0.0
    %2284 = vmatmul.mubr.f32.gmra.mrb[0].mxu0 %v2047
    %v2285 = vpop.f32.mrb[0].mxu0
    %v2286 = vadd.f32 0.0, %v2285
    %v2287 = vpop.f32.mrb[0].mxu0
    %v2288 = vadd.f32 0.0, %v2287
    %2289 = vdwg.mxu0
    %2290 = vmatprep.subr.mxu0 %v981
    %2291 = vmatpush1.msra.mxu0 %v980
    %2292 = vmatprep.subr.mxu0 %v985
    %2293 = vmatpush1.msra.mxu0 %v984
    %2294 = vmatprep.subr.mxu0 %v989
    %2295 = vmatpush1.msra.mxu0 %v988
    %2296 = vmatprep.subr.mxu0 %v993
    %2297 = vmatpush1.msra.mxu0 %v992
    %2298 = vmatprep.subr.mxu0 %v997
    %2299 = vmatpush1.msra.mxu0 %v996
    %2300 = vmatprep.subr.mxu0 %v1001
    %2301 = vmatpush1.msra.mxu0 %v1000
    %2302 = vmatprep.subr.mxu0 %v1005
    %2303 = vmatpush1.msra.mxu0 %v1004
    %2304 = vmatprep.subr.mxu0 %v1009
    %2305 = vmatpush1.msra.mxu0 %v1008
    %2306 = vmatprep.subr.mxu0 %v1013
    %2307 = vmatpush1.msra.mxu0 %v1012
    %2308 = vmatprep.subr.mxu0 %v1017
    %2309 = vmatpush1.msra.mxu0 %v1016
    %2310 = vmatprep.subr.mxu0 %v1021
    %2311 = vmatpush1.msra.mxu0 %v1020
    %2312 = vmatprep.subr.mxu0 %v1025
    %2313 = vmatpush1.msra.mxu0 %v1024
    %2314 = vmatprep.subr.mxu0 %v1029
    %2315 = vmatpush1.msra.mxu0 %v1028
    %2316 = vmatprep.subr.mxu0 %v1033
    %2317 = vmatpush1.msra.mxu0 %v1032
    %2318 = vmatprep.subr.mxu0 %v1037
    %2319 = vmatpush1.msra.mxu0 %v1036
    %2320 = vmatprep.subr.mxu0 %v1041
    %2321 = vmatpush1.msra.mxu0 %v1040
    %2322 = vmatprep.subr.mxu0 0.0
    %2323 = vmatpush1.msra.mxu0 0.0
    %2324 = vmatprep.subr.mxu0 0.0
    %2325 = vmatpush1.msra.mxu0 0.0
    %2326 = vmatprep.subr.mxu0 0.0
    %2327 = vmatpush1.msra.mxu0 0.0
    %2328 = vmatprep.subr.mxu0 0.0
    %2329 = vmatpush1.msra.mxu0 0.0
    %2330 = vmatprep.subr.mxu0 0.0
    %2331 = vmatpush1.msra.mxu0 0.0
    %2332 = vmatprep.subr.mxu0 0.0
    %2333 = vmatpush1.msra.mxu0 0.0
    %2334 = vmatprep.subr.mxu0 0.0
    %2335 = vmatpush1.msra.mxu0 0.0
    %2336 = vmatprep.subr.mxu0 0.0
    %2337 = vmatpush1.msra.mxu0 0.0
    %2338 = vmatprep.subr.mxu0 0.0
    %2339 = vmatpush1.msra.mxu0 0.0
    %2340 = vmatprep.subr.mxu0 0.0
    %2341 = vmatpush1.msra.mxu0 0.0
    %2342 = vmatprep.subr.mxu0 0.0
    %2343 = vmatpush1.msra.mxu0 0.0
    %2344 = vmatprep.subr.mxu0 0.0
    %2345 = vmatpush1.msra.mxu0 0.0
    %2346 = vmatprep.subr.mxu0 0.0
    %2347 = vmatpush1.msra.mxu0 0.0
    %2348 = vmatprep.subr.mxu0 0.0
    %2349 = vmatpush1.msra.mxu0 0.0
    %2350 = vmatprep.subr.mxu0 0.0
    %2351 = vmatpush1.msra.mxu0 0.0
    %2352 = vmatprep.subr.mxu0 0.0
    %2353 = vmatpush1.msra.mxu0 0.0
    %2354 = vmatprep.mubr.f32.mxu0 0.0
    %2355 = vmatmul.mubr.f32.gmra.mrb[0].mxu0 %v2047
    %v2356 = vpop.f32.mrb[0].mxu0
    %v2357 = vadd.f32 0.0, %v2356
    %v2358 = vpop.f32.mrb[0].mxu0
    %v2359 = vadd.f32 0.0, %v2358
    %2360 = vdwg.mxu0
    %v2361 = vadd.f32 %v2215, %v2286
    %v2362 = vadd.f32 %v2216, %v2288
    %v2363 = vadd.f32 %v2217, %v2357
    %v2364 = vadd.f32 %v2218, %v2359
    %v2365 = vxor.u32 %v2361, 2147483648
    %v2366 = vmul.f32 %v2365, 1.442695
    %v2367 = vpow.pop %v2366
    %v2368 = vadd.f32 %v2367, 1.0
    %v2369 = vrcp.pop %v2368
    %v2370 = vmul.f32 1.0, %v2369
    %v2371 = vxor.u32 %v2362, 2147483648
    %v2372 = vmul.f32 %v2371, 1.442695
    %v2373 = vpow.pop %v2372
    %v2374 = vadd.f32 %v2373, 1.0
    %v2375 = vrcp.pop %v2374
    %v2376 = vmul.f32 1.0, %v2375
    %v2377 = vtanh.pop %v2363
    %v2378 = vxor.u32 %v2364, 2147483648
    %v2379 = vmul.f32 %v2378, 1.442695
    %v2380 = vpow.pop %v2379
    %v2381 = vadd.f32 %v2380, 1.0
    %v2382 = vrcp.pop %v2381
    %v2383 = vmul.f32 1.0, %v2382
    %v2384 = vmul.f32 %v2376, %v2045
    %v2385 = vmul.f32 %v2370, %v2377
    %v2386 = vadd.f32 %v2384, %v2385
    %v2387 = vtanh.pop %v2386
    %v2388 = vmul.f32 %v2383, %v2387
    %2389 = vmatprep.subr.mxu0 %v1043
    %2390 = vmatpush1.msra.mxu0 %v1042
    %2391 = vmatprep.subr.mxu0 %v1047
    %2392 = vmatpush1.msra.mxu0 %v1046
    %2393 = vmatprep.subr.mxu0 %v1051
    %2394 = vmatpush1.msra.mxu0 %v1050
    %2395 = vmatprep.subr.mxu0 %v1055
    %2396 = vmatpush1.msra.mxu0 %v1054
    %2397 = vmatprep.subr.mxu0 %v1059
    %2398 = vmatpush1.msra.mxu0 %v1058
    %2399 = vmatprep.subr.mxu0 %v1063
    %2400 = vmatpush1.msra.mxu0 %v1062
    %2401 = vmatprep.subr.mxu0 %v1067
    %2402 = vmatpush1.msra.mxu0 %v1066
    %2403 = vmatprep.subr.mxu0 %v1071
    %2404 = vmatpush1.msra.mxu0 %v1070
    %2405 = vmatprep.subr.mxu0 %v1075
    %2406 = vmatpush1.msra.mxu0 %v1074
    %2407 = vmatprep.subr.mxu0 %v1079
    %2408 = vmatpush1.msra.mxu0 %v1078
    %2409 = vmatprep.subr.mxu0 %v1083
    %2410 = vmatpush1.msra.mxu0 %v1082
    %2411 = vmatprep.subr.mxu0 %v1087
    %2412 = vmatpush1.msra.mxu0 %v1086
    %2413 = vmatprep.subr.mxu0 %v1091
    %2414 = vmatpush1.msra.mxu0 %v1090
    %2415 = vmatprep.subr.mxu0 %v1095
    %2416 = vmatpush1.msra.mxu0 %v1094
    %2417 = vmatprep.subr.mxu0 %v1099
    %2418 = vmatpush1.msra.mxu0 %v1098
    %2419 = vmatprep.subr.mxu0 %v1103
    %2420 = vmatpush1.msra.mxu0 %v1102
    %2421 = vmatprep.subr.mxu0 %v1107
    %2422 = vmatpush1.msra.mxu0 %v1106
    %2423 = vmatprep.subr.mxu0 %v1111
    %2424 = vmatpush1.msra.mxu0 %v1110
    %2425 = vmatprep.subr.mxu0 %v1115
    %2426 = vmatpush1.msra.mxu0 %v1114
    %2427 = vmatprep.subr.mxu0 %v1119
    %2428 = vmatpush1.msra.mxu0 %v1118
    %2429 = vmatprep.subr.mxu0 %v1123
    %2430 = vmatpush1.msra.mxu0 %v1122
    %2431 = vmatprep.subr.mxu0 %v1127
    %2432 = vmatpush1.msra.mxu0 %v1126
    %2433 = vmatprep.subr.mxu0 %v1131
    %2434 = vmatpush1.msra.mxu0 %v1130
    %2435 = vmatprep.subr.mxu0 %v1135
    %2436 = vmatpush1.msra.mxu0 %v1134
    %2437 = vmatprep.subr.mxu0 %v1139
    %2438 = vmatpush1.msra.mxu0 %v1138
    %2439 = vmatprep.subr.mxu0 %v1143
    %2440 = vmatpush1.msra.mxu0 %v1142
    %2441 = vmatprep.subr.mxu0 %v1147
    %2442 = vmatpush1.msra.mxu0 %v1146
    %2443 = vmatprep.subr.mxu0 %v1151
    %2444 = vmatpush1.msra.mxu0 %v1150
    %2445 = vmatprep.subr.mxu0 %v1155
    %2446 = vmatpush1.msra.mxu0 %v1154
    %2447 = vmatprep.subr.mxu0 %v1159
    %2448 = vmatpush1.msra.mxu0 %v1158
    %2449 = vmatprep.subr.mxu0 %v1163
    %2450 = vmatpush1.msra.mxu0 %v1162
    %2451 = vmatprep.subr.mxu0 %v1167
    %2452 = vmatpush1.msra.mxu0 %v1166
    %2453 = vmatprep.mubr.f32.mxu0 %v2213
    %2454 = vmatmul.mubr.f32.gmra.mrb[0].mxu0 %v2388
    %v2455 = vpop.f32.mrb[0].mxu0
    %v2456 = vadd.f32 %v1175, %v2455
    %v2457 = vpop.f32.mrb[0].mxu0
    %v2458 = vadd.f32 %v1179, %v2457
    %2459 = vdwg.mxu0
    %2460 = vmatprep.subr.mxu0 %v1045
    %2461 = vmatpush1.msra.mxu0 %v1044
    %2462 = vmatprep.subr.mxu0 %v1049
    %2463 = vmatpush1.msra.mxu0 %v1048
    %2464 = vmatprep.subr.mxu0 %v1053
    %2465 = vmatpush1.msra.mxu0 %v1052
    %2466 = vmatprep.subr.mxu0 %v1057
    %2467 = vmatpush1.msra.mxu0 %v1056
    %2468 = vmatprep.subr.mxu0 %v1061
    %2469 = vmatpush1.msra.mxu0 %v1060
    %2470 = vmatprep.subr.mxu0 %v1065
    %2471 = vmatpush1.msra.mxu0 %v1064
    %2472 = vmatprep.subr.mxu0 %v1069
    %2473 = vmatpush1.msra.mxu0 %v1068
    %2474 = vmatprep.subr.mxu0 %v1073
    %2475 = vmatpush1.msra.mxu0 %v1072
    %2476 = vmatprep.subr.mxu0 %v1077
    %2477 = vmatpush1.msra.mxu0 %v1076
    %2478 = vmatprep.subr.mxu0 %v1081
    %2479 = vmatpush1.msra.mxu0 %v1080
    %2480 = vmatprep.subr.mxu0 %v1085
    %2481 = vmatpush1.msra.mxu0 %v1084
    %2482 = vmatprep.subr.mxu0 %v1089
    %2483 = vmatpush1.msra.mxu0 %v1088
    %2484 = vmatprep.subr.mxu0 %v1093
    %2485 = vmatpush1.msra.mxu0 %v1092
    %2486 = vmatprep.subr.mxu0 %v1097
    %2487 = vmatpush1.msra.mxu0 %v1096
    %2488 = vmatprep.subr.mxu0 %v1101
    %2489 = vmatpush1.msra.mxu0 %v1100
    %2490 = vmatprep.subr.mxu0 %v1105
    %2491 = vmatpush1.msra.mxu0 %v1104
    %2492 = vmatprep.subr.mxu0 %v1109
    %2493 = vmatpush1.msra.mxu0 %v1108
    %2494 = vmatprep.subr.mxu0 %v1113
    %2495 = vmatpush1.msra.mxu0 %v1112
    %2496 = vmatprep.subr.mxu0 %v1117
    %2497 = vmatpush1.msra.mxu0 %v1116
    %2498 = vmatprep.subr.mxu0 %v1121
    %2499 = vmatpush1.msra.mxu0 %v1120
    %2500 = vmatprep.subr.mxu0 %v1125
    %2501 = vmatpush1.msra.mxu0 %v1124
    %2502 = vmatprep.subr.mxu0 %v1129
    %2503 = vmatpush1.msra.mxu0 %v1128
    %2504 = vmatprep.subr.mxu0 %v1133
    %2505 = vmatpush1.msra.mxu0 %v1132
    %2506 = vmatprep.subr.mxu0 %v1137
    %2507 = vmatpush1.msra.mxu0 %v1136
    %2508 = vmatprep.subr.mxu0 %v1141
    %2509 = vmatpush1.msra.mxu0 %v1140
    %2510 = vmatprep.subr.mxu0 %v1145
    %2511 = vmatpush1.msra.mxu0 %v1144
    %2512 = vmatprep.subr.mxu0 %v1149
    %2513 = vmatpush1.msra.mxu0 %v1148
    %2514 = vmatprep.subr.mxu0 %v1153
    %2515 = vmatpush1.msra.mxu0 %v1152
    %2516 = vmatprep.subr.mxu0 %v1157
    %2517 = vmatpush1.msra.mxu0 %v1156
    %2518 = vmatprep.subr.mxu0 %v1161
    %2519 = vmatpush1.msra.mxu0 %v1160
    %2520 = vmatprep.subr.mxu0 %v1165
    %2521 = vmatpush1.msra.mxu0 %v1164
    %2522 = vmatprep.subr.mxu0 %v1169
    %2523 = vmatpush1.msra.mxu0 %v1168
    %2524 = vmatprep.mubr.f32.mxu0 %v2213
    %2525 = vmatmul.mubr.f32.gmra.mrb[0].mxu0 %v2388
    %v2526 = vpop.f32.mrb[0].mxu0
    %v2527 = vadd.f32 %v1183, %v2526
    %v2528 = vpop.f32.mrb[0].mxu0
    %v2529 = vadd.f32 %v1187, %v2528
    %2530 = vdwg.mxu0
    %v2531 = vxor.u32 %v2456, 2147483648
    %v2532 = vmul.f32 %v2531, 1.442695
    %v2533 = vpow.pop %v2532
    %v2534 = vadd.f32 %v2533, 1.0
    %v2535 = vrcp.pop %v2534
    %v2536 = vmul.f32 1.0, %v2535
    %v2537 = vxor.u32 %v2458, 2147483648
    %v2538 = vmul.f32 %v2537, 1.442695
    %v2539 = vpow.pop %v2538
    %v2540 = vadd.f32 %v2539, 1.0
    %v2541 = vrcp.pop %v2540
    %v2542 = vmul.f32 1.0, %v2541
    %v2543 = vtanh.pop %v2527
    %v2544 = vxor.u32 %v2529, 2147483648
    %v2545 = vmul.f32 %v2544, 1.442695
    %v2546 = vpow.pop %v2545
    %v2547 = vadd.f32 %v2546, 1.0
    %v2548 = vrcp.pop %v2547
    %v2549 = vmul.f32 1.0, %v2548
    %v2550 = vmul.f32 %v2542, %v2211
    %v2551 = vmul.f32 %v2536, %v2543
    %v2552 = vadd.f32 %v2550, %v2551
    %v2553 = vtanh.pop %v2552
    %v2554 = vmul.f32 %v2549, %v2553
    %v2555 = vld [vmem:[#allocation10] sm:$0xff]
    %v2556 = vld [vmem:[#allocation10 + $0x8] sm:$0xff]
    %v2557 = vld [vmem:[#allocation10 + $0x10] sm:$0xff]
    %v2558 = vld [vmem:[#allocation10 + $0x18] sm:$0xff]
    %v2559 = vld [vmem:[#allocation10 + $0x20] sm:$0xff]
    %v2560 = vld [vmem:[#allocation10 + $0x28] sm:$0xff]
    %v2561 = vld [vmem:[#allocation10 + $0x30] sm:$0xff]
    %v2562 = vld [vmem:[#allocation10 + $0x38] sm:$0xff]
    %v2563 = vld [vmem:[#allocation10 + $0x40] sm:$0xff]
    %v2564 = vld [vmem:[#allocation10 + $0x48] sm:$0xff]
    %v2565 = vld [vmem:[#allocation10 + $0x50] sm:$0xff]
    %v2566 = vld [vmem:[#allocation10 + $0x58] sm:$0xff]
    %v2567 = vld [vmem:[#allocation10 + $0x60] sm:$0xff]
    %v2568 = vld [vmem:[#allocation10 + $0x68] sm:$0xff]
    %v2569 = vld [vmem:[#allocation10 + $0x70] sm:$0xff]
    %v2570 = vld [vmem:[#allocation10 + $0x78] sm:$0xff]
    %v2571 = vld [vmem:[%s11] sm:$0x1]
    %v2573 = vlaneseq
    %v2574 = vshrl.u32 %v2573, 7
    %v2575 = vsub.s32 0, %v2574
    %v2576 = vrot.slane %v2571, %v2575
    %2578 = vmatprep.subr.mxu0 0.0
    %2579 = vmatpush1.msra.mxu0 %v2555
    %2580 = vmatprep.subr.mxu0 0.0
    %2581 = vmatpush1.msra.mxu0 %v2556
    %2582 = vmatprep.subr.mxu0 0.0
    %2583 = vmatpush1.msra.mxu0 %v2557
    %2584 = vmatprep.subr.mxu0 0.0
    %2585 = vmatpush1.msra.mxu0 %v2558
    %2586 = vmatprep.subr.mxu0 0.0
    %2587 = vmatpush1.msra.mxu0 %v2559
    %2588 = vmatprep.subr.mxu0 0.0
    %2589 = vmatpush1.msra.mxu0 %v2560
    %2590 = vmatprep.subr.mxu0 0.0
    %2591 = vmatpush1.msra.mxu0 %v2561
    %2592 = vmatprep.subr.mxu0 0.0
    %2593 = vmatpush1.msra.mxu0 %v2562
    %2594 = vmatprep.subr.mxu0 0.0
    %2595 = vmatpush1.msra.mxu0 %v2563
    %2596 = vmatprep.subr.mxu0 0.0
    %2597 = vmatpush1.msra.mxu0 %v2564
    %2598 = vmatprep.subr.mxu0 0.0
    %2599 = vmatpush1.msra.mxu0 %v2565
    %2600 = vmatprep.subr.mxu0 0.0
    %2601 = vmatpush1.msra.mxu0 %v2566
    %2602 = vmatprep.subr.mxu0 0.0
    %2603 = vmatpush1.msra.mxu0 %v2567
    %2604 = vmatprep.subr.mxu0 0.0
    %2605 = vmatpush1.msra.mxu0 %v2568
    %2606 = vmatprep.subr.mxu0 0.0
    %2607 = vmatpush1.msra.mxu0 %v2569
    %2608 = vmatprep.subr.mxu0 0.0
    %2609 = vmatpush1.msra.mxu0 %v2570
    %2610 = vmatprep.subr.mxu0 0.0
    %2611 = vmatpush1.msra.mxu0 0.0
    %2612 = vmatprep.subr.mxu0 0.0
    %2613 = vmatpush1.msra.mxu0 0.0
    %2614 = vmatprep.subr.mxu0 0.0
    %2615 = vmatpush1.msra.mxu0 0.0
    %2616 = vmatprep.subr.mxu0 0.0
    %2617 = vmatpush1.msra.mxu0 0.0
    %2618 = vmatprep.subr.mxu0 0.0
    %2619 = vmatpush1.msra.mxu0 0.0
    %2620 = vmatprep.subr.mxu0 0.0
    %2621 = vmatpush1.msra.mxu0 0.0
    %2622 = vmatprep.subr.mxu0 0.0
    %2623 = vmatpush1.msra.mxu0 0.0
    %2624 = vmatprep.subr.mxu0 0.0
    %2625 = vmatpush1.msra.mxu0 0.0
    %2626 = vmatprep.subr.mxu0 0.0
    %2627 = vmatpush1.msra.mxu0 0.0
    %2628 = vmatprep.subr.mxu0 0.0
    %2629 = vmatpush1.msra.mxu0 0.0
    %2630 = vmatprep.subr.mxu0 0.0
    %2631 = vmatpush1.msra.mxu0 0.0
    %2632 = vmatprep.subr.mxu0 0.0
    %2633 = vmatpush1.msra.mxu0 0.0
    %2634 = vmatprep.subr.mxu0 0.0
    %2635 = vmatpush1.msra.mxu0 0.0
    %2636 = vmatprep.subr.mxu0 0.0
    %2637 = vmatpush1.msra.mxu0 0.0
    %2638 = vmatprep.subr.mxu0 0.0
    %2639 = vmatpush1.msra.mxu0 0.0
    %2640 = vmatprep.subr.mxu0 0.0
    %2641 = vmatpush1.msra.mxu0 0.0
    %2642 = vmatprep.mubr.f32.mxu0 0.0
    %2643 = vmatmul.mubr.f32.gmra.mrb[0].mxu0 %v2554
    %v2644 = vpop.f32.mrb[0].mxu0
    %v2645 = vadd.f32 %v2576, %v2644
    %v2646 = vpop.f32.mrb[0].mxu0
    %2647 = vdwg.mxu0
    %vm2648 = vcmask 15360
    %2649 = vst.msk [vmem:[%s12] sm:$0xff] %vm2648, %v2645
    // Predicated region
    $region70: #{_lambda_.1} parent=1 // pred_check
      _
    $region71: #{_lambda_.1} parent=1 // pred_check_branch
      %2651 = sbr.rel (0) target = $region73
    $region72: #{_lambda_.1} parent=1 // pred_region
      _
    $region73: #{_lambda_.1} parent=1 // pred_fallthru
      _
    // Predicated region
    $region74: #{_lambda_.1} parent=1 // pred_check
      _
    $region75: #{_lambda_.1} parent=1 // pred_check_branch
      %2653 = sbr.rel (0) target = $region77
    $region76: #{_lambda_.1} parent=1 // pred_region
      _
    $region77: #{_lambda_.1} parent=1 // pred_fallthru
      _
    %2654 = vsyncpa [#allocation4], 1
    %2655 = vsyncpa [#allocation6], 1
    %2656 = vsyncpa [#allocation9], 1

</llo_original>
